<compile_context>
chip_gen: v7x
topology: tpu7x:2x2x1
jax: 0.10.0
libtpu: 0.0.40
codegen_flags: <defaults>
</compile_context>

<pallas_src>
import jax
import jax.numpy as jnp
from jax.experimental import pallas as pl
from jax.experimental.pallas import tpu as pltpu


# --------------------------------------------------------------------------- #
#  Kernel
# --------------------------------------------------------------------------- #
def _make_kernel(n_heads):
    eps = 1e-5

    def layer_norm(v, g, b):                      # f32 statistics (matches nn.LayerNorm)
        mu = jnp.mean(v, axis=-1, keepdims=True)
        var = jnp.mean((v - mu) ** 2, axis=-1, keepdims=True)
        return (v - mu) * jax.lax.rsqrt(var + eps) * g + b

    def kernel(x_ref, wqkv_ref, bqkv_ref, wo_ref, w1_ref, b1_ref, w2_ref,
               lvec_ref, fnorm_ref, pw_ref, pb_ref, out_ref, x_sc, o_sc):
        l = pl.program_id(1)                      # layer index (inner, "arbitrary" axis)
        Bt, L, D = x_ref.shape
        H = n_heads
        E = D // H
        rows = Bt * L

        # Load the batch tile into the carry scratch only on the first layer.
        @pl.when(l == 0)
        def _():
            x_sc[...] = x_ref[...].reshape(rows, D)

        lv = lvec_ref[0]                          # (6, D) packed per-layer vectors
        bo, b2 = lv[0:1, :], lv[1:2, :]
        g1, be1 = lv[2:3, :], lv[3:4, :]
        g2, be2 = lv[4:5, :], lv[5:6, :]

        x = x_sc[...]                             # (rows, D) f32 carry

        # ---- fused QKV projection: ONE (rows, D) @ (D, 3D) MXU pass -------------
        # 1/sqrt(E) is already folded into Wq/bq host-side.
        qkv = jnp.dot(x.astype(jnp.bfloat16), wqkv_ref[0],
                      preferred_element_type=jnp.float32) + bqkv_ref[0]
        qkv_bf = qkv.astype(jnp.bfloat16)

        # ---- per-head attention core --------------------------------------------
        # Small unrolled head loop (static lane offsets); layers are no longer
        # unrolled so the instruction footprint is bounded by H.
        # TODO(synk): stream KV blocks (flash-style online softmax) before scaling L.
        for h in range(H):
            q = qkv_bf[:, h * E:(h + 1) * E].reshape(Bt, L, E)
            k = qkv_bf[:, D + h * E:D + (h + 1) * E].reshape(Bt, L, E)
            v = qkv_bf[:, 2 * D + h * E:2 * D + (h + 1) * E].reshape(Bt, L, E)
            s = jnp.einsum('bqe,bke->bqk', q, k,
                           preferred_element_type=jnp.float32)       # pre-scaled
            s = s - jnp.max(s, axis=-1, keepdims=True)
            p = jnp.exp(s)
            # approx reciprocal runs on the EUP slot (~1e-3 rel vs exact softmax)
            p = p * pl.reciprocal(jnp.sum(p, axis=-1, keepdims=True), approx=True)
            o = jnp.einsum('bqk,bke->bqe', p.astype(jnp.bfloat16), v,
                           preferred_element_type=jnp.float32)
            o_sc[:, h * E:(h + 1) * E] = o.reshape(rows, E)

        # ---- single (rows, D) @ (D, D) output projection -------------------------
        attn = jnp.dot(o_sc[...].astype(jnp.bfloat16), wo_ref[0],
                       preferred_element_type=jnp.float32)
        x = layer_norm(x + attn + bo, g1, be1)

        # ---- position-wise FFN (Conv1d k=1 == per-position Linear) ---------------
        h1 = jnp.dot(x.astype(jnp.bfloat16), w1_ref[0],
                     preferred_element_type=jnp.float32) + b1_ref[0]
        h1 = jnp.maximum(h1, 0.0)
        y = jnp.dot(h1.astype(jnp.bfloat16), w2_ref[0],
                    preferred_element_type=jnp.float32) + b2
        x = layer_norm(x + y, g2, be2)
        x_sc[...] = x                             # carry to the next layer

        # ---- final LayerNorm + projection on the last layer ----------------------
        @pl.when(l == pl.num_programs(1) - 1)
        def _():
            fn = fnorm_ref[...]
            xf = layer_norm(x, fn[0:1, :], fn[1:2, :])
            out = jnp.dot(xf.astype(jnp.bfloat16), pw_ref[...],
                          preferred_element_type=jnp.float32) + pb_ref[...]
            out_ref[...] = out.reshape(Bt, L, out_ref.shape[-1])

    return kernel


# --------------------------------------------------------------------------- #
#  Host-side helpers
# --------------------------------------------------------------------------- #
_PACKED_ORDER = ('wqkv', 'bqkv', 'wo', 'w1', 'b1', 'w2',
                 'lvec', 'fnorm', 'proj_w', 'proj_b')


def _nbytes(a):
    return int(a.size) * a.dtype.itemsize


def _vmem_cap_bytes():
    """Usable VMEM budget for this generation (leave headroom for compiler scratch)."""
    try:
        info = pltpu.get_tpu_info()
        cap = int(getattr(info, "vmem_capacity_bytes", 0) or 0)
        if cap > 0:
            return max(32 * 2 ** 20, (cap * 3) // 4)   # ~96 MiB on v5e/v6e, ~48 MiB on v7x
    except Exception:
        pass
    return 48 * 2 ** 20                                 # safe on every generation


def _act_bytes(bt, L, D, d_ff, c_pad):
    rows = bt * L
    # x carry + o slab + fused qkv (f32 + bf16) + FFN hidden + projection output
    # + one head's (L, L) score/prob block.
    return rows * (10 * D + 3 * d_ff + 2 * c_pad) * 4 + bt * L * L * 12


def _pick_batch_tile(B, L, D, d_ff, c_pad, act_budget):
    divisors = [d for d in range(1, B + 1) if B % d == 0]
    fits = [d for d in divisors if _act_bytes(d, L, D, d_ff, c_pad) <= act_budget]
    if not fits:
        fits = [1]
    best = fits[-1]
    # Prefer a tile whose row count (bt*L) matches MXU geometry (multiple of 256)
    # if one exists at >= half the largest fitting tile.
    aligned = [d for d in fits if (d * L) % 256 == 0 and 2 * d >= best]
    if aligned:
        best = aligned[-1]
    # Keep >= 2 grid steps on the "parallel" batch axis when possible (v7x megacore).
    if best == B and B > 1:
        smaller = [d for d in fits if d < B]
        if smaller:
            best = smaller[-1]
    return best


def pack_params(layers, final_g, final_b, proj_w, proj_b, n_heads):
    """Fuse QKV weights, fold 1/sqrt(head_dim) into Wq/bq, pack small per-layer vectors,
    and pad the final projection to a lane-dense (multiple of 128) output width."""
    D = proj_w.shape[0]
    c_out = proj_w.shape[1]
    E = D // n_heads
    scale = 1.0 / (E ** 0.5)
    c_pad = ((c_out + 127) // 128) * 128

    wqkv, bqkv = [], []
    for p in layers:
        wqkv.append(jnp.concatenate([p['wq'] * scale, p['wk'], p['wv']], axis=1))
        bqkv.append(jnp.concatenate([p['bq'] * scale, p['bk'], p['bv']])[None, :])

    proj_w_p = jnp.zeros((D, c_pad), jnp.float32).at[:, :c_out].set(proj_w)
    proj_b_p = jnp.zeros((1, c_pad), jnp.float32).at[0, :c_out].set(proj_b)

    return {
        'wqkv': jnp.stack(wqkv).astype(jnp.bfloat16),                        # (NL, D, 3D)
        'bqkv': jnp.stack(bqkv).astype(jnp.float32),                         # (NL, 1, 3D)
        'wo': jnp.stack([p['wo'] for p in layers]).astype(jnp.bfloat16),     # (NL, D, D)
        'w1': jnp.stack([p['w1'] for p in layers]).astype(jnp.bfloat16),     # (NL, D, DFF)
        'b1': jnp.stack([p['b1'][None, :] for p in layers]).astype(jnp.float32),  # (NL,1,DFF)
        'w2': jnp.stack([p['w2'] for p in layers]).astype(jnp.bfloat16),     # (NL, DFF, D)
        'lvec': jnp.stack([jnp.stack([p['bo'], p['b2'], p['g1'], p['be1'],
                                      p['g2'], p['be2']]) for p in layers]
                          ).astype(jnp.float32),                             # (NL, 6, D)
        'fnorm': jnp.stack([final_g, final_b]).astype(jnp.float32),          # (2, D)
        'proj_w': proj_w_p.astype(jnp.bfloat16),                             # (D, c_pad)
        'proj_b': proj_b_p.astype(jnp.float32),                              # (1, c_pad)
    }


def decoder_wo_crossattn(x, packed, *, n_heads, num_layers, c_out, batch_tile=None):
    B, L, D = x.shape
    assert D % n_heads == 0
    assert packed['wqkv'].shape[0] == num_layers
    d_ff = packed['w1'].shape[-1]
    c_pad = packed['proj_w'].shape[-1]

    cap = _vmem_cap_bytes()
    bt = batch_tile or _pick_batch_tile(B, L, D, d_ff, c_pad, act_budget=cap // 3)
    assert B % bt == 0
    rows = bt * L
    D3 = 3 * D

    kernel = _make_kernel(n_heads)
    args = [packed[k] for k in _PACKED_ORDER]

    in_specs = [
        pl.BlockSpec((bt, L, D), lambda b, l: (b, 0, 0)),      # x (resident across l)
        pl.BlockSpec((1, D, D3), lambda b, l: (l, 0, 0)),      # fused Wqkv (per-layer)
        pl.BlockSpec((1, 1, D3), lambda b, l: (l, 0, 0)),      # fused bqkv
        pl.BlockSpec((1, D, D), lambda b, l: (l, 0, 0)),       # Wo
        pl.BlockSpec((1, D, d_ff), lambda b, l: (l, 0, 0)),    # W1 (conv1)
        pl.BlockSpec((1, 1, d_ff), lambda b, l: (l, 0, 0)),    # b1
        pl.BlockSpec((1, d_ff, D), lambda b, l: (l, 0, 0)),    # W2 (conv2)
        pl.BlockSpec((1, 6, D), lambda b, l: (l, 0, 0)),       # packed per-layer vectors
        pl.BlockSpec((2, D), lambda b, l: (0, 0)),             # final LN gamma/beta
        pl.BlockSpec((D, c_pad), lambda b, l: (0, 0)),         # projection W (padded)
        pl.BlockSpec((1, c_pad), lambda b, l: (0, 0)),         # projection b (padded)
    ]
    out_specs = pl.BlockSpec((bt, L, c_pad), lambda b, l: (b, 0, 0))

    # VMEM budget from real per-step sizes (double-buffered layer weights + IO blocks
    # + scratch + temporaries), clamped to the per-generation cap.
    layer_keys = ('wqkv', 'bqkv', 'wo', 'w1', 'b1', 'w2', 'lvec')
    per_layer = sum(_nbytes(packed[k]) // num_layers for k in layer_keys)
    resident = sum(_nbytes(packed[k]) for k in ('fnorm', 'proj_w', 'proj_b'))
    io_blocks = 2 * rows * D * 4 + 2 * rows * c_pad * 4
    scratch = 2 * rows * D * 4
    need = 2 * per_layer + 2 * resident + io_blocks + scratch \
        + _act_bytes(bt, L, D, d_ff, c_pad)
    vmem_limit = int(min(cap, max(32 * 2 ** 20, int(need * 1.25))))

    out = pl.pallas_call(
        kernel,
        out_shape=jax.ShapeDtypeStruct((B, L, c_pad), jnp.float32),
        grid_spec=pltpu.PrefetchScalarGridSpec(
            num_scalar_prefetch=0,
            grid=(B // bt, num_layers),
            in_specs=in_specs,
            out_specs=out_specs,
            scratch_shapes=[pltpu.VMEM((rows, D), jnp.float32),    # x carried across layers
                            pltpu.VMEM((rows, D), jnp.float32)]),  # per-head o slab
        compiler_params=pltpu.CompilerParams(
            dimension_semantics=("parallel", "arbitrary"),
            vmem_limit_bytes=vmem_limit),
    )(x, *args)
    return out[..., :c_out]                       # strip lane padding of c_out


# --------------------------------------------------------------------------- #
#  Pure-JAX reference (mm_dtype=bfloat16 mirrors the kernel's MXU input casts)
# --------------------------------------------------------------------------- #
def reference(x, layers, final_g, final_b, proj_w, proj_b, n_heads,
              mm_dtype=jnp.float32):
    def cast(a):
        return a.astype(mm_dtype)

    def mm(a, b):
        return jnp.dot(cast(a), cast(b), preferred_element_type=jnp.float32)

    def ln(v, g, b):
        mu = v.mean(-1, keepdims=True)
        var = ((v - mu) ** 2).mean(-1, keepdims=True)
        return (v - mu) * jax.lax.rsqrt(var + 1e-5) * g + b

    def mha(xx, p):
        Bb, Ll, Dd = xx.shape
        Hh, Ee = n_heads, Dd // n_heads
        x2 = xx.reshape(Bb * Ll, Dd)
        q = (mm(x2, p['wq']) + p['bq']).reshape(Bb, Ll, Hh, Ee)
        k = (mm(x2, p['wk']) + p['bk']).reshape(Bb, Ll, Hh, Ee)
        v = (mm(x2, p['wv']) + p['bv']).reshape(Bb, Ll, Hh, Ee)
        s = jnp.einsum('blhe,bshe->bhls', cast(q), cast(k),
                       preferred_element_type=jnp.float32) / jnp.sqrt(Ee)
        a = jax.nn.softmax(s, axis=-1)
        o = jnp.einsum('bhls,bshe->blhe', cast(a), cast(v),
                       preferred_element_type=jnp.float32).reshape(Bb * Ll, Dd)
        return (mm(o, p['wo']) + p['bo']).reshape(Bb, Ll, Dd)

    Bb, Ll, Dd = x.shape
    for p in layers:
        x1 = ln(x + mha(x, p), p['g1'], p['be1'])
        h1 = jnp.maximum(mm(x1.reshape(Bb * Ll, Dd), p['w1']) + p['b1'], 0.0)
        y = (mm(h1, p['w2']) + p['b2']).reshape(Bb, Ll, Dd)
        x = ln(x1 + y, p['g2'], p['be2'])
    x = ln(x, final_g, final_b)
    out = mm(x.reshape(Bb * Ll, Dd), proj_w) + proj_b
    return out.reshape(Bb, Ll, -1)


# --------------------------------------------------------------------------- #
#  Demo / self-test
# --------------------------------------------------------------------------- #
if __name__ == "__main__":
    B, L = 8, 16
    D, H, NL = 64, 4, 2
    DFF = 4 * D            # d_ff = d_ff or 4 * d_model
    C_OUT = 7              # projection = nn.Linear(d_model, c_out)

    key = jax.random.PRNGKey(0)
    keys = iter(jax.random.split(key, 64))

    def w(shape, scale=0.1):
        return (scale * jax.random.normal(next(keys), shape)).astype(jnp.float32)

    layers = []
    for _ in range(NL):
        layers.append({
            'wq': w((D, D)), 'bq': w((D,)),
            'wk': w((D, D)), 'bk': w((D,)),
            'wv': w((D, D)), 'bv': w((D,)),
            'wo': w((D, D)), 'bo': w((D,)),
            'w1': w((D, DFF)), 'b1': w((DFF,)),
            'w2': w((DFF, D)), 'b2': w((D,)),
            'g1': 1.0 + w((D,)), 'be1': w((D,)),
            'g2': 1.0 + w((D,)), 'be2': w((D,)),
        })
    final_g = 1.0 + w((D,))
    final_b = w((D,))
    proj_w = w((D, C_OUT))
    proj_b = w((C_OUT,))

    x = jax.random.normal(next(keys), (B, L, D), dtype=jnp.float32)

    packed = pack_params(layers, final_g, final_b, proj_w, proj_b, H)
    out = decoder_wo_crossattn(x, packed, n_heads=H, num_layers=NL, c_out=C_OUT)
    out = jax.block_until_ready(out)

    ref_bf = reference(x, layers, final_g, final_b, proj_w, proj_b, H,
                       mm_dtype=jnp.bfloat16)
    ref_f32 = reference(x, layers, final_g, final_b, proj_w, proj_b, H,
                        mm_dtype=jnp.float32)

    assert out.shape == (B, L, C_OUT)
    # Kernel uses bf16 MXU inputs with f32 accumulation (+ approx softmax reciprocal):
    # compare tightly against the bf16-matched reference, loosely against pure f32.
    assert jnp.allclose(out, ref_bf, atol=2e-2, rtol=2e-2), "mismatch vs bf16-matched ref"
    assert jnp.allclose(out, ref_f32, atol=1e-1, rtol=1e-1), "mismatch vs f32 reference"
    print("KERNEL_OK")
</pallas_src>

<mosaic_0001>
module attributes {stable_mosaic.version = 11 : i64} {
  func.func @kernel(%arg0: i32, %arg1: i32, %arg2: memref<4x16x64xf32, #tpu.memory_space<vmem>>, %arg3: memref<1x64x192xbf16, #tpu.memory_space<vmem>>, %arg4: memref<1x1x192xf32, #tpu.memory_space<vmem>>, %arg5: memref<1x64x64xbf16, #tpu.memory_space<vmem>>, %arg6: memref<1x64x256xbf16, #tpu.memory_space<vmem>>, %arg7: memref<1x1x256xf32, #tpu.memory_space<vmem>>, %arg8: memref<1x256x64xbf16, #tpu.memory_space<vmem>>, %arg9: memref<1x6x64xf32, #tpu.memory_space<vmem>>, %arg10: memref<2x64xf32, #tpu.memory_space<vmem>>, %arg11: memref<64x128xbf16, #tpu.memory_space<vmem>>, %arg12: memref<1x128xf32, #tpu.memory_space<vmem>>, %arg13: memref<4x16x128xf32, #tpu.memory_space<vmem>>, %arg14: memref<64x64xf32, #tpu.memory_space<vmem>>, %arg15: memref<64x64xf32, #tpu.memory_space<vmem>>) attributes {dimension_semantics = [#tpu.dimension_semantics<parallel>, #tpu.dimension_semantics<arbitrary>], iteration_bounds = array<i64: 2, 2>, scalar_prefetch = 0 : i64, scratch_operands = 2 : i64, tpu.core_type = #tpu.core_type<tc>, window_params = [{transform_indices = @transform_0, window_bounds = array<i64: 4, 16, 64>}, {transform_indices = @transform_1, window_bounds = array<i64: 1, 64, 192>}, {transform_indices = @transform_2, window_bounds = array<i64: 1, 1, 192>}, {transform_indices = @transform_3, window_bounds = array<i64: 1, 64, 64>}, {transform_indices = @transform_4, window_bounds = array<i64: 1, 64, 256>}, {transform_indices = @transform_5, window_bounds = array<i64: 1, 1, 256>}, {transform_indices = @transform_6, window_bounds = array<i64: 1, 256, 64>}, {transform_indices = @transform_7, window_bounds = array<i64: 1, 6, 64>}, {pipeline_mode = #tpu.pipeline_mode<synchronous>, transform_indices = @transform_8, window_bounds = array<i64: 2, 64>}, {pipeline_mode = #tpu.pipeline_mode<synchronous>, transform_indices = @transform_9, window_bounds = array<i64: 64, 128>}, {pipeline_mode = #tpu.pipeline_mode<synchronous>, transform_indices = @transform_10, window_bounds = array<i64: 1, 128>}, {transform_indices = @transform_11, window_bounds = array<i64: 4, 16, 128>}]} {
    %c0_i32 = arith.constant 0 : i32
    %0 = arith.cmpi eq, %arg1, %c0_i32 : i32
    %1 = arith.extui %0 : i1 to i32
    %c0_i32_0 = arith.constant 0 : i32
    %2 = arith.cmpi ne, %1, %c0_i32_0 : i32
    scf.if %2 {
      %c0_63 = arith.constant 0 : index
      %c0_64 = arith.constant 0 : index
      %c0_65 = arith.constant 0 : index
      %178 = vector.load %arg2[%c0_63, %c0_64, %c0_65] : memref<4x16x64xf32, #tpu.memory_space<vmem>>, vector<4x16x64xf32>
      %179 = vector.shape_cast %178 : vector<4x16x64xf32> to vector<64x64xf32>
      %c0_66 = arith.constant 0 : index
      %c0_67 = arith.constant 0 : index
      %180 = vector.load %arg14[%c0_66, %c0_67] : memref<64x64xf32, #tpu.memory_space<vmem>>, vector<64x64xf32>
      tpu.vector_store %arg14[%c0_66, %c0_67], %179 {strides = array<i32>} : memref<64x64xf32, #tpu.memory_space<vmem>>, vector<64x64xf32>,
    } else {
    }
    %c0 = arith.constant 0 : index
    %c0_1 = arith.constant 0 : index
    %c0_2 = arith.constant 0 : index
    %3 = vector.load %arg9[%c0, %c0_1, %c0_2] : memref<1x6x64xf32, #tpu.memory_space<vmem>>, vector<1x6x64xf32>
    %4 = vector.shape_cast %3 : vector<1x6x64xf32> to vector<6x64xf32>
    %5 = vector.extract_strided_slice %4 {offsets = [0, 0], sizes = [1, 64], strides = [1, 1]} : vector<6x64xf32> to vector<1x64xf32>
    %6 = vector.extract_strided_slice %4 {offsets = [1, 0], sizes = [1, 64], strides = [1, 1]} : vector<6x64xf32> to vector<1x64xf32>
    %7 = vector.extract_strided_slice %4 {offsets = [2, 0], sizes = [1, 64], strides = [1, 1]} : vector<6x64xf32> to vector<1x64xf32>
    %8 = vector.extract_strided_slice %4 {offsets = [3, 0], sizes = [1, 64], strides = [1, 1]} : vector<6x64xf32> to vector<1x64xf32>
    %9 = vector.extract_strided_slice %4 {offsets = [4, 0], sizes = [1, 64], strides = [1, 1]} : vector<6x64xf32> to vector<1x64xf32>
    %10 = vector.extract_strided_slice %4 {offsets = [5, 0], sizes = [1, 64], strides = [1, 1]} : vector<6x64xf32> to vector<1x64xf32>
    %c0_3 = arith.constant 0 : index
    %c0_4 = arith.constant 0 : index
    %11 = vector.load %arg14[%c0_3, %c0_4] : memref<64x64xf32, #tpu.memory_space<vmem>>, vector<64x64xf32>
    %12 = arith.truncf %11 : vector<64x64xf32> to vector<64x64xbf16>
    %c0_5 = arith.constant 0 : index
    %c0_6 = arith.constant 0 : index
    %c0_7 = arith.constant 0 : index
    %13 = vector.load %arg3[%c0_5, %c0_6, %c0_7] : memref<1x64x192xbf16, #tpu.memory_space<vmem>>, vector<1x64x192xbf16>
    %14 = vector.shape_cast %13 : vector<1x64x192xbf16> to vector<64x192xbf16>
    %cst = arith.constant dense<0.000000e+00> : vector<64x192xf32>
    %15 = tpu.matmul %12, %14, %cst {dimension_numbers = #tpu.dot_dimension_numbers<[1], [0], [0], [1], [0, 0, 1, 1], [], []>} : vector<64x64xbf16>, vector<64x192xbf16>, vector<64x192xf32> -> vector<64x192xf32>
    %c0_8 = arith.constant 0 : index
    %c0_9 = arith.constant 0 : index
    %c0_10 = arith.constant 0 : index
    %16 = vector.load %arg4[%c0_8, %c0_9, %c0_10] : memref<1x1x192xf32, #tpu.memory_space<vmem>>, vector<1x1x192xf32>
    %17 = vector.shape_cast %16 : vector<1x1x192xf32> to vector<1x192xf32>
    %18 = vector.broadcast %17 : vector<1x192xf32> to vector<64x192xf32>
    %19 = arith.addf %15, %18 : vector<64x192xf32>
    %20 = arith.truncf %19 : vector<64x192xf32> to vector<64x192xbf16>
    %21 = vector.extract_strided_slice %20 {offsets = [0, 0], sizes = [64, 16], strides = [1, 1]} : vector<64x192xbf16> to vector<64x16xbf16>
    %22 = vector.shape_cast %21 : vector<64x16xbf16> to vector<4x16x16xbf16>
    %23 = vector.extract_strided_slice %20 {offsets = [0, 64], sizes = [64, 16], strides = [1, 1]} : vector<64x192xbf16> to vector<64x16xbf16>
    %24 = vector.shape_cast %23 : vector<64x16xbf16> to vector<4x16x16xbf16>
    %25 = vector.extract_strided_slice %20 {offsets = [0, 128], sizes = [64, 16], strides = [1, 1]} : vector<64x192xbf16> to vector<64x16xbf16>
    %26 = vector.shape_cast %25 : vector<64x16xbf16> to vector<4x16x16xbf16>
    "tpu.trace_start"() <{level = 10 : i32, message = "bqe,bke->bqk"}> : () -> ()
    %cst_11 = arith.constant dense<0.000000e+00> : vector<4x16x16xf32>
    %27 = tpu.matmul %22, %24, %cst_11 {dimension_numbers = #tpu.dot_dimension_numbers<[2], [2], [1], [1], [0, 0, 0, 1, 1, 1], [0], [0]>} : vector<4x16x16xbf16>, vector<4x16x16xbf16>, vector<4x16x16xf32> -> vector<4x16x16xf32>
    "tpu.trace_stop"() : () -> ()
    %cst_12 = arith.constant dense<0xFF800000> : vector<4x16xf32>
    %28 = vector.multi_reduction <maximumf>, %27, %cst_12 [2] : vector<4x16x16xf32> to vector<4x16xf32>
    %29 = vector.shape_cast %28 : vector<4x16xf32> to vector<4x16x1xf32>
    %30 = vector.broadcast %29 : vector<4x16x1xf32> to vector<4x16x16xf32>
    %31 = arith.subf %27, %30 : vector<4x16x16xf32>
    %32 = math.exp %31 : vector<4x16x16xf32>
    %cst_13 = arith.constant dense<0.000000e+00> : vector<4x16xf32>
    %33 = vector.multi_reduction <add>, %32, %cst_13 [2] : vector<4x16x16xf32> to vector<4x16xf32>
    %34 = vector.shape_cast %33 : vector<4x16xf32> to vector<4x16x1xf32>
    %35 = tpu.reciprocal %34 {approx = true} : vector<4x16x1xf32> -> vector<4x16x1xf32>
    %36 = vector.broadcast %35 : vector<4x16x1xf32> to vector<4x16x16xf32>
    %37 = arith.mulf %32, %36 : vector<4x16x16xf32>
    %38 = arith.truncf %37 : vector<4x16x16xf32> to vector<4x16x16xbf16>
    "tpu.trace_start"() <{level = 10 : i32, message = "bqk,bke->bqe"}> : () -> ()
    %cst_14 = arith.constant dense<0.000000e+00> : vector<4x16x16xf32>
    %39 = tpu.matmul %38, %26, %cst_14 {dimension_numbers = #tpu.dot_dimension_numbers<[2], [1], [1], [2], [0, 0, 0, 1, 1, 2], [0], [0]>} : vector<4x16x16xbf16>, vector<4x16x16xbf16>, vector<4x16x16xf32> -> vector<4x16x16xf32>
    "tpu.trace_stop"() : () -> ()
    %40 = vector.shape_cast %39 : vector<4x16x16xf32> to vector<64x16xf32>
    %c0_15 = arith.constant 0 : index
    %c0_16 = arith.constant 0 : index
    %41 = vector.load %arg15[%c0_15, %c0_16] : memref<64x64xf32, #tpu.memory_space<vmem>>, vector<64x16xf32>
    tpu.vector_store %arg15[%c0_15, %c0_16], %40 {strides = array<i32>} : memref<64x64xf32, #tpu.memory_space<vmem>>, vector<64x16xf32>,
    %42 = vector.extract_strided_slice %20 {offsets = [0, 16], sizes = [64, 16], strides = [1, 1]} : vector<64x192xbf16> to vector<64x16xbf16>
    %43 = vector.shape_cast %42 : vector<64x16xbf16> to vector<4x16x16xbf16>
    %44 = vector.extract_strided_slice %20 {offsets = [0, 80], sizes = [64, 16], strides = [1, 1]} : vector<64x192xbf16> to vector<64x16xbf16>
    %45 = vector.shape_cast %44 : vector<64x16xbf16> to vector<4x16x16xbf16>
    %46 = vector.extract_strided_slice %20 {offsets = [0, 144], sizes = [64, 16], strides = [1, 1]} : vector<64x192xbf16> to vector<64x16xbf16>
    %47 = vector.shape_cast %46 : vector<64x16xbf16> to vector<4x16x16xbf16>
    "tpu.trace_start"() <{level = 10 : i32, message = "bqe,bke->bqk"}> : () -> ()
    %cst_17 = arith.constant dense<0.000000e+00> : vector<4x16x16xf32>
    %48 = tpu.matmul %43, %45, %cst_17 {dimension_numbers = #tpu.dot_dimension_numbers<[2], [2], [1], [1], [0, 0, 0, 1, 1, 1], [0], [0]>} : vector<4x16x16xbf16>, vector<4x16x16xbf16>, vector<4x16x16xf32> -> vector<4x16x16xf32>
    "tpu.trace_stop"() : () -> ()
    %cst_18 = arith.constant dense<0xFF800000> : vector<4x16xf32>
    %49 = vector.multi_reduction <maximumf>, %48, %cst_18 [2] : vector<4x16x16xf32> to vector<4x16xf32>
    %50 = vector.shape_cast %49 : vector<4x16xf32> to vector<4x16x1xf32>
    %51 = vector.broadcast %50 : vector<4x16x1xf32> to vector<4x16x16xf32>
    %52 = arith.subf %48, %51 : vector<4x16x16xf32>
    %53 = math.exp %52 : vector<4x16x16xf32>
    %cst_19 = arith.constant dense<0.000000e+00> : vector<4x16xf32>
    %54 = vector.multi_reduction <add>, %53, %cst_19 [2] : vector<4x16x16xf32> to vector<4x16xf32>
    %55 = vector.shape_cast %54 : vector<4x16xf32> to vector<4x16x1xf32>
    %56 = tpu.reciprocal %55 {approx = true} : vector<4x16x1xf32> -> vector<4x16x1xf32>
    %57 = vector.broadcast %56 : vector<4x16x1xf32> to vector<4x16x16xf32>
    %58 = arith.mulf %53, %57 : vector<4x16x16xf32>
    %59 = arith.truncf %58 : vector<4x16x16xf32> to vector<4x16x16xbf16>
    "tpu.trace_start"() <{level = 10 : i32, message = "bqk,bke->bqe"}> : () -> ()
    %cst_20 = arith.constant dense<0.000000e+00> : vector<4x16x16xf32>
    %60 = tpu.matmul %59, %47, %cst_20 {dimension_numbers = #tpu.dot_dimension_numbers<[2], [1], [1], [2], [0, 0, 0, 1, 1, 2], [0], [0]>} : vector<4x16x16xbf16>, vector<4x16x16xbf16>, vector<4x16x16xf32> -> vector<4x16x16xf32>
    "tpu.trace_stop"() : () -> ()
    %61 = vector.shape_cast %60 : vector<4x16x16xf32> to vector<64x16xf32>
    %c0_21 = arith.constant 0 : index
    %c16 = arith.constant 16 : index
    %62 = vector.load %arg15[%c0_21, %c16] : memref<64x64xf32, #tpu.memory_space<vmem>>, vector<64x16xf32>
    tpu.vector_store %arg15[%c0_21, %c16], %61 {strides = array<i32>} : memref<64x64xf32, #tpu.memory_space<vmem>>, vector<64x16xf32>,
    %63 = vector.extract_strided_slice %20 {offsets = [0, 32], sizes = [64, 16], strides = [1, 1]} : vector<64x192xbf16> to vector<64x16xbf16>
    %64 = vector.shape_cast %63 : vector<64x16xbf16> to vector<4x16x16xbf16>
    %65 = vector.extract_strided_slice %20 {offsets = [0, 96], sizes = [64, 16], strides = [1, 1]} : vector<64x192xbf16> to vector<64x16xbf16>
    %66 = vector.shape_cast %65 : vector<64x16xbf16> to vector<4x16x16xbf16>
    %67 = vector.extract_strided_slice %20 {offsets = [0, 160], sizes = [64, 16], strides = [1, 1]} : vector<64x192xbf16> to vector<64x16xbf16>
    %68 = vector.shape_cast %67 : vector<64x16xbf16> to vector<4x16x16xbf16>
    "tpu.trace_start"() <{level = 10 : i32, message = "bqe,bke->bqk"}> : () -> ()
    %cst_22 = arith.constant dense<0.000000e+00> : vector<4x16x16xf32>
    %69 = tpu.matmul %64, %66, %cst_22 {dimension_numbers = #tpu.dot_dimension_numbers<[2], [2], [1], [1], [0, 0, 0, 1, 1, 1], [0], [0]>} : vector<4x16x16xbf16>, vector<4x16x16xbf16>, vector<4x16x16xf32> -> vector<4x16x16xf32>
    "tpu.trace_stop"() : () -> ()
    %cst_23 = arith.constant dense<0xFF800000> : vector<4x16xf32>
    %70 = vector.multi_reduction <maximumf>, %69, %cst_23 [2] : vector<4x16x16xf32> to vector<4x16xf32>
    %71 = vector.shape_cast %70 : vector<4x16xf32> to vector<4x16x1xf32>
    %72 = vector.broadcast %71 : vector<4x16x1xf32> to vector<4x16x16xf32>
    %73 = arith.subf %69, %72 : vector<4x16x16xf32>
    %74 = math.exp %73 : vector<4x16x16xf32>
    %cst_24 = arith.constant dense<0.000000e+00> : vector<4x16xf32>
    %75 = vector.multi_reduction <add>, %74, %cst_24 [2] : vector<4x16x16xf32> to vector<4x16xf32>
    %76 = vector.shape_cast %75 : vector<4x16xf32> to vector<4x16x1xf32>
    %77 = tpu.reciprocal %76 {approx = true} : vector<4x16x1xf32> -> vector<4x16x1xf32>
    %78 = vector.broadcast %77 : vector<4x16x1xf32> to vector<4x16x16xf32>
    %79 = arith.mulf %74, %78 : vector<4x16x16xf32>
    %80 = arith.truncf %79 : vector<4x16x16xf32> to vector<4x16x16xbf16>
    "tpu.trace_start"() <{level = 10 : i32, message = "bqk,bke->bqe"}> : () -> ()
    %cst_25 = arith.constant dense<0.000000e+00> : vector<4x16x16xf32>
    %81 = tpu.matmul %80, %68, %cst_25 {dimension_numbers = #tpu.dot_dimension_numbers<[2], [1], [1], [2], [0, 0, 0, 1, 1, 2], [0], [0]>} : vector<4x16x16xbf16>, vector<4x16x16xbf16>, vector<4x16x16xf32> -> vector<4x16x16xf32>
    "tpu.trace_stop"() : () -> ()
    %82 = vector.shape_cast %81 : vector<4x16x16xf32> to vector<64x16xf32>
    %c0_26 = arith.constant 0 : index
    %c32 = arith.constant 32 : index
    %83 = vector.load %arg15[%c0_26, %c32] : memref<64x64xf32, #tpu.memory_space<vmem>>, vector<64x16xf32>
    tpu.vector_store %arg15[%c0_26, %c32], %82 {strides = array<i32>} : memref<64x64xf32, #tpu.memory_space<vmem>>, vector<64x16xf32>,
    %84 = vector.extract_strided_slice %20 {offsets = [0, 48], sizes = [64, 16], strides = [1, 1]} : vector<64x192xbf16> to vector<64x16xbf16>
    %85 = vector.shape_cast %84 : vector<64x16xbf16> to vector<4x16x16xbf16>
    %86 = vector.extract_strided_slice %20 {offsets = [0, 112], sizes = [64, 16], strides = [1, 1]} : vector<64x192xbf16> to vector<64x16xbf16>
    %87 = vector.shape_cast %86 : vector<64x16xbf16> to vector<4x16x16xbf16>
    %88 = vector.extract_strided_slice %20 {offsets = [0, 176], sizes = [64, 16], strides = [1, 1]} : vector<64x192xbf16> to vector<64x16xbf16>
    %89 = vector.shape_cast %88 : vector<64x16xbf16> to vector<4x16x16xbf16>
    "tpu.trace_start"() <{level = 10 : i32, message = "bqe,bke->bqk"}> : () -> ()
    %cst_27 = arith.constant dense<0.000000e+00> : vector<4x16x16xf32>
    %90 = tpu.matmul %85, %87, %cst_27 {dimension_numbers = #tpu.dot_dimension_numbers<[2], [2], [1], [1], [0, 0, 0, 1, 1, 1], [0], [0]>} : vector<4x16x16xbf16>, vector<4x16x16xbf16>, vector<4x16x16xf32> -> vector<4x16x16xf32>
    "tpu.trace_stop"() : () -> ()
    %cst_28 = arith.constant dense<0xFF800000> : vector<4x16xf32>
    %91 = vector.multi_reduction <maximumf>, %90, %cst_28 [2] : vector<4x16x16xf32> to vector<4x16xf32>
    %92 = vector.shape_cast %91 : vector<4x16xf32> to vector<4x16x1xf32>
    %93 = vector.broadcast %92 : vector<4x16x1xf32> to vector<4x16x16xf32>
    %94 = arith.subf %90, %93 : vector<4x16x16xf32>
    %95 = math.exp %94 : vector<4x16x16xf32>
    %cst_29 = arith.constant dense<0.000000e+00> : vector<4x16xf32>
    %96 = vector.multi_reduction <add>, %95, %cst_29 [2] : vector<4x16x16xf32> to vector<4x16xf32>
    %97 = vector.shape_cast %96 : vector<4x16xf32> to vector<4x16x1xf32>
    %98 = tpu.reciprocal %97 {approx = true} : vector<4x16x1xf32> -> vector<4x16x1xf32>
    %99 = vector.broadcast %98 : vector<4x16x1xf32> to vector<4x16x16xf32>
    %100 = arith.mulf %95, %99 : vector<4x16x16xf32>
    %101 = arith.truncf %100 : vector<4x16x16xf32> to vector<4x16x16xbf16>
    "tpu.trace_start"() <{level = 10 : i32, message = "bqk,bke->bqe"}> : () -> ()
    %cst_30 = arith.constant dense<0.000000e+00> : vector<4x16x16xf32>
    %102 = tpu.matmul %101, %89, %cst_30 {dimension_numbers = #tpu.dot_dimension_numbers<[2], [1], [1], [2], [0, 0, 0, 1, 1, 2], [0], [0]>} : vector<4x16x16xbf16>, vector<4x16x16xbf16>, vector<4x16x16xf32> -> vector<4x16x16xf32>
    "tpu.trace_stop"() : () -> ()
    %103 = vector.shape_cast %102 : vector<4x16x16xf32> to vector<64x16xf32>
    %c0_31 = arith.constant 0 : index
    %c48 = arith.constant 48 : index
    %104 = vector.load %arg15[%c0_31, %c48] : memref<64x64xf32, #tpu.memory_space<vmem>>, vector<64x16xf32>
    tpu.vector_store %arg15[%c0_31, %c48], %103 {strides = array<i32>} : memref<64x64xf32, #tpu.memory_space<vmem>>, vector<64x16xf32>,
    %c0_32 = arith.constant 0 : index
    %c0_33 = arith.constant 0 : index
    %105 = vector.load %arg15[%c0_32, %c0_33] : memref<64x64xf32, #tpu.memory_space<vmem>>, vector<64x64xf32>
    %106 = arith.truncf %105 : vector<64x64xf32> to vector<64x64xbf16>
    %c0_34 = arith.constant 0 : index
    %c0_35 = arith.constant 0 : index
    %c0_36 = arith.constant 0 : index
    %107 = vector.load %arg5[%c0_34, %c0_35, %c0_36] : memref<1x64x64xbf16, #tpu.memory_space<vmem>>, vector<1x64x64xbf16>
    %108 = vector.shape_cast %107 : vector<1x64x64xbf16> to vector<64x64xbf16>
    %cst_37 = arith.constant dense<0.000000e+00> : vector<64x64xf32>
    %109 = tpu.matmul %106, %108, %cst_37 {dimension_numbers = #tpu.dot_dimension_numbers<[1], [0], [0], [1], [0, 0, 1, 1], [], []>} : vector<64x64xbf16>, vector<64x64xbf16>, vector<64x64xf32> -> vector<64x64xf32>
    %110 = arith.addf %11, %109 : vector<64x64xf32>
    %111 = vector.broadcast %5 : vector<1x64xf32> to vector<64x64xf32>
    %112 = arith.addf %110, %111 : vector<64x64xf32>
    %cst_38 = arith.constant dense<0.000000e+00> : vector<64xf32>
    %113 = vector.multi_reduction <add>, %112, %cst_38 [1] : vector<64x64xf32> to vector<64xf32>
    %114 = vector.shape_cast %113 : vector<64xf32> to vector<64x1xf32>
    %cst_39 = arith.constant 6.400000e+01 : f32
    %115 = vector.broadcast %cst_39 : f32 to vector<64x1xf32>
    %116 = arith.divf %114, %115 : vector<64x1xf32>
    %117 = vector.broadcast %116 : vector<64x1xf32> to vector<64x64xf32>
    %118 = arith.subf %112, %117 : vector<64x64xf32>
    %119 = arith.mulf %118, %118 : vector<64x64xf32>
    %cst_40 = arith.constant dense<0.000000e+00> : vector<64xf32>
    %120 = vector.multi_reduction <add>, %119, %cst_40 [1] : vector<64x64xf32> to vector<64xf32>
    %121 = vector.shape_cast %120 : vector<64xf32> to vector<64x1xf32>
    %cst_41 = arith.constant 6.400000e+01 : f32
    %122 = vector.broadcast %cst_41 : f32 to vector<64x1xf32>
    %123 = arith.divf %121, %122 : vector<64x1xf32>
    %124 = vector.broadcast %116 : vector<64x1xf32> to vector<64x64xf32>
    %125 = arith.subf %112, %124 : vector<64x64xf32>
    %cst_42 = arith.constant 9.99999974E-6 : f32
    %126 = vector.broadcast %cst_42 : f32 to vector<64x1xf32>
    %127 = arith.addf %123, %126 : vector<64x1xf32>
    %128 = math.rsqrt %127 : vector<64x1xf32>
    %129 = vector.broadcast %128 : vector<64x1xf32> to vector<64x64xf32>
    %130 = arith.mulf %125, %129 : vector<64x64xf32>
    %131 = vector.broadcast %7 : vector<1x64xf32> to vector<64x64xf32>
    %132 = arith.mulf %130, %131 : vector<64x64xf32>
    %133 = vector.broadcast %8 : vector<1x64xf32> to vector<64x64xf32>
    %134 = arith.addf %132, %133 : vector<64x64xf32>
    %135 = arith.truncf %134 : vector<64x64xf32> to vector<64x64xbf16>
    %c0_43 = arith.constant 0 : index
    %c0_44 = arith.constant 0 : index
    %c0_45 = arith.constant 0 : index
    %136 = vector.load %arg6[%c0_43, %c0_44, %c0_45] : memref<1x64x256xbf16, #tpu.memory_space<vmem>>, vector<1x64x256xbf16>
    %137 = vector.shape_cast %136 : vector<1x64x256xbf16> to vector<64x256xbf16>
    %cst_46 = arith.constant dense<0.000000e+00> : vector<64x256xf32>
    %138 = tpu.matmul %135, %137, %cst_46 {dimension_numbers = #tpu.dot_dimension_numbers<[1], [0], [0], [1], [0, 0, 1, 1], [], []>} : vector<64x64xbf16>, vector<64x256xbf16>, vector<64x256xf32> -> vector<64x256xf32>
    %c0_47 = arith.constant 0 : index
    %c0_48 = arith.constant 0 : index
    %c0_49 = arith.constant 0 : index
    %139 = vector.load %arg7[%c0_47, %c0_48, %c0_49] : memref<1x1x256xf32, #tpu.memory_space<vmem>>, vector<1x1x256xf32>
    %140 = vector.shape_cast %139 : vector<1x1x256xf32> to vector<1x256xf32>
    %141 = vector.broadcast %140 : vector<1x256xf32> to vector<64x256xf32>
    %142 = arith.addf %138, %141 : vector<64x256xf32>
    %cst_50 = arith.constant 0.000000e+00 : f32
    %143 = vector.broadcast %cst_50 : f32 to vector<64x256xf32>
    %144 = arith.maximumf %142, %143 : vector<64x256xf32>
    %145 = arith.truncf %144 : vector<64x256xf32> to vector<64x256xbf16>
    %c0_51 = arith.constant 0 : index
    %c0_52 = arith.constant 0 : index
    %c0_53 = arith.constant 0 : index
    %146 = vector.load %arg8[%c0_51, %c0_52, %c0_53] : memref<1x256x64xbf16, #tpu.memory_space<vmem>>, vector<1x256x64xbf16>
    %147 = vector.shape_cast %146 : vector<1x256x64xbf16> to vector<256x64xbf16>
    %cst_54 = arith.constant dense<0.000000e+00> : vector<64x64xf32>
    %148 = tpu.matmul %145, %147, %cst_54 {dimension_numbers = #tpu.dot_dimension_numbers<[1], [0], [0], [1], [0, 0, 1, 1], [], []>} : vector<64x256xbf16>, vector<256x64xbf16>, vector<64x64xf32> -> vector<64x64xf32>
    %149 = vector.broadcast %6 : vector<1x64xf32> to vector<64x64xf32>
    %150 = arith.addf %148, %149 : vector<64x64xf32>
    %151 = arith.addf %134, %150 : vector<64x64xf32>
    %cst_55 = arith.constant dense<0.000000e+00> : vector<64xf32>
    %152 = vector.multi_reduction <add>, %151, %cst_55 [1] : vector<64x64xf32> to vector<64xf32>
    %153 = vector.shape_cast %152 : vector<64xf32> to vector<64x1xf32>
    %cst_56 = arith.constant 6.400000e+01 : f32
    %154 = vector.broadcast %cst_56 : f32 to vector<64x1xf32>
    %155 = arith.divf %153, %154 : vector<64x1xf32>
    %156 = vector.broadcast %155 : vector<64x1xf32> to vector<64x64xf32>
    %157 = arith.subf %151, %156 : vector<64x64xf32>
    %158 = arith.mulf %157, %157 : vector<64x64xf32>
    %cst_57 = arith.constant dense<0.000000e+00> : vector<64xf32>
    %159 = vector.multi_reduction <add>, %158, %cst_57 [1] : vector<64x64xf32> to vector<64xf32>
    %160 = vector.shape_cast %159 : vector<64xf32> to vector<64x1xf32>
    %cst_58 = arith.constant 6.400000e+01 : f32
    %161 = vector.broadcast %cst_58 : f32 to vector<64x1xf32>
    %162 = arith.divf %160, %161 : vector<64x1xf32>
    %163 = vector.broadcast %155 : vector<64x1xf32> to vector<64x64xf32>
    %164 = arith.subf %151, %163 : vector<64x64xf32>
    %cst_59 = arith.constant 9.99999974E-6 : f32
    %165 = vector.broadcast %cst_59 : f32 to vector<64x1xf32>
    %166 = arith.addf %162, %165 : vector<64x1xf32>
    %167 = math.rsqrt %166 : vector<64x1xf32>
    %168 = vector.broadcast %167 : vector<64x1xf32> to vector<64x64xf32>
    %169 = arith.mulf %164, %168 : vector<64x64xf32>
    %170 = vector.broadcast %9 : vector<1x64xf32> to vector<64x64xf32>
    %171 = arith.mulf %169, %170 : vector<64x64xf32>
    %172 = vector.broadcast %10 : vector<1x64xf32> to vector<64x64xf32>
    %173 = arith.addf %171, %172 : vector<64x64xf32>
    %c0_60 = arith.constant 0 : index
    %c0_61 = arith.constant 0 : index
    %174 = vector.load %arg14[%c0_60, %c0_61] : memref<64x64xf32, #tpu.memory_space<vmem>>, vector<64x64xf32>
    tpu.vector_store %arg14[%c0_60, %c0_61], %173 {strides = array<i32>} : memref<64x64xf32, #tpu.memory_space<vmem>>, vector<64x64xf32>,
    %c1_i32 = arith.constant 1 : i32
    %175 = arith.cmpi eq, %arg1, %c1_i32 : i32
    %176 = arith.extui %175 : i1 to i32
    %c0_i32_62 = arith.constant 0 : i32
    %177 = arith.cmpi ne, %176, %c0_i32_62 : i32
    scf.if %177 {
      %c0_63 = arith.constant 0 : index
      %c0_64 = arith.constant 0 : index
      %178 = vector.load %arg10[%c0_63, %c0_64] : memref<2x64xf32, #tpu.memory_space<vmem>>, vector<2x64xf32>
      %179 = vector.extract_strided_slice %178 {offsets = [0, 0], sizes = [1, 64], strides = [1, 1]} : vector<2x64xf32> to vector<1x64xf32>
      %180 = vector.extract_strided_slice %178 {offsets = [1, 0], sizes = [1, 64], strides = [1, 1]} : vector<2x64xf32> to vector<1x64xf32>
      %cst_65 = arith.constant dense<0.000000e+00> : vector<64xf32>
      %181 = vector.multi_reduction <add>, %173, %cst_65 [1] : vector<64x64xf32> to vector<64xf32>
      %182 = vector.shape_cast %181 : vector<64xf32> to vector<64x1xf32>
      %cst_66 = arith.constant 6.400000e+01 : f32
      %183 = vector.broadcast %cst_66 : f32 to vector<64x1xf32>
      %184 = arith.divf %182, %183 : vector<64x1xf32>
      %185 = vector.broadcast %184 : vector<64x1xf32> to vector<64x64xf32>
      %186 = arith.subf %173, %185 : vector<64x64xf32>
      %187 = arith.mulf %186, %186 : vector<64x64xf32>
      %cst_67 = arith.constant dense<0.000000e+00> : vector<64xf32>
      %188 = vector.multi_reduction <add>, %187, %cst_67 [1] : vector<64x64xf32> to vector<64xf32>
      %189 = vector.shape_cast %188 : vector<64xf32> to vector<64x1xf32>
      %cst_68 = arith.constant 6.400000e+01 : f32
      %190 = vector.broadcast %cst_68 : f32 to vector<64x1xf32>
      %191 = arith.divf %189, %190 : vector<64x1xf32>
      %192 = vector.broadcast %184 : vector<64x1xf32> to vector<64x64xf32>
      %193 = arith.subf %173, %192 : vector<64x64xf32>
      %cst_69 = arith.constant 9.99999974E-6 : f32
      %194 = vector.broadcast %cst_69 : f32 to vector<64x1xf32>
      %195 = arith.addf %191, %194 : vector<64x1xf32>
      %196 = math.rsqrt %195 : vector<64x1xf32>
      %197 = vector.broadcast %196 : vector<64x1xf32> to vector<64x64xf32>
      %198 = arith.mulf %193, %197 : vector<64x64xf32>
      %199 = vector.broadcast %179 : vector<1x64xf32> to vector<64x64xf32>
      %200 = arith.mulf %198, %199 : vector<64x64xf32>
      %201 = vector.broadcast %180 : vector<1x64xf32> to vector<64x64xf32>
      %202 = arith.addf %200, %201 : vector<64x64xf32>
      %203 = arith.truncf %202 : vector<64x64xf32> to vector<64x64xbf16>
      %c0_70 = arith.constant 0 : index
      %c0_71 = arith.constant 0 : index
      %204 = vector.load %arg11[%c0_70, %c0_71] : memref<64x128xbf16, #tpu.memory_space<vmem>>, vector<64x128xbf16>
      %cst_72 = arith.constant dense<0.000000e+00> : vector<64x128xf32>
      %205 = tpu.matmul %203, %204, %cst_72 {dimension_numbers = #tpu.dot_dimension_numbers<[1], [0], [0], [1], [0, 0, 1, 1], [], []>} : vector<64x64xbf16>, vector<64x128xbf16>, vector<64x128xf32> -> vector<64x128xf32>
      %c0_73 = arith.constant 0 : index
      %c0_74 = arith.constant 0 : index
      %206 = vector.load %arg12[%c0_73, %c0_74] : memref<1x128xf32, #tpu.memory_space<vmem>>, vector<1x128xf32>
      %207 = vector.broadcast %206 : vector<1x128xf32> to vector<64x128xf32>
      %208 = arith.addf %205, %207 : vector<64x128xf32>
      %209 = vector.shape_cast %208 : vector<64x128xf32> to vector<4x16x128xf32>
      %c0_75 = arith.constant 0 : index
      %c0_76 = arith.constant 0 : index
      %c0_77 = arith.constant 0 : index
      %210 = vector.load %arg13[%c0_75, %c0_76, %c0_77] : memref<4x16x128xf32, #tpu.memory_space<vmem>>, vector<4x16x128xf32>
      tpu.vector_store %arg13[%c0_75, %c0_76, %c0_77], %209 {strides = array<i32>} : memref<4x16x128xf32, #tpu.memory_space<vmem>>, vector<4x16x128xf32>,
    } else {
    }
    return
  }
  func.func @transform_0(%arg0: i32, %arg1: i32) -> (i32, i32, i32) {
    %c0_i32 = arith.constant 0 : i32
    %c0_i32_0 = arith.constant 0 : i32
    %c0_i32_1 = arith.constant 0 : i32
    return %arg0, %c0_i32, %c0_i32_0 : i32, i32, i32
  }
  func.func @transform_1(%arg0: i32, %arg1: i32) -> (i32, i32, i32) {
    %c0_i32 = arith.constant 0 : i32
    %c0_i32_0 = arith.constant 0 : i32
    %c0_i32_1 = arith.constant 0 : i32
    return %arg1, %c0_i32, %c0_i32_0 : i32, i32, i32
  }
  func.func @transform_2(%arg0: i32, %arg1: i32) -> (i32, i32, i32) {
    %c0_i32 = arith.constant 0 : i32
    %c0_i32_0 = arith.constant 0 : i32
    %c0_i32_1 = arith.constant 0 : i32
    return %arg1, %c0_i32, %c0_i32_0 : i32, i32, i32
  }
  func.func @transform_3(%arg0: i32, %arg1: i32) -> (i32, i32, i32) {
    %c0_i32 = arith.constant 0 : i32
    %c0_i32_0 = arith.constant 0 : i32
    %c0_i32_1 = arith.constant 0 : i32
    return %arg1, %c0_i32, %c0_i32_0 : i32, i32, i32
  }
  func.func @transform_4(%arg0: i32, %arg1: i32) -> (i32, i32, i32) {
    %c0_i32 = arith.constant 0 : i32
    %c0_i32_0 = arith.constant 0 : i32
    %c0_i32_1 = arith.constant 0 : i32
    return %arg1, %c0_i32, %c0_i32_0 : i32, i32, i32
  }
  func.func @transform_5(%arg0: i32, %arg1: i32) -> (i32, i32, i32) {
    %c0_i32 = arith.constant 0 : i32
    %c0_i32_0 = arith.constant 0 : i32
    %c0_i32_1 = arith.constant 0 : i32
    return %arg1, %c0_i32, %c0_i32_0 : i32, i32, i32
  }
  func.func @transform_6(%arg0: i32, %arg1: i32) -> (i32, i32, i32) {
    %c0_i32 = arith.constant 0 : i32
    %c0_i32_0 = arith.constant 0 : i32
    %c0_i32_1 = arith.constant 0 : i32
    return %arg1, %c0_i32, %c0_i32_0 : i32, i32, i32
  }
  func.func @transform_7(%arg0: i32, %arg1: i32) -> (i32, i32, i32) {
    %c0_i32 = arith.constant 0 : i32
    %c0_i32_0 = arith.constant 0 : i32
    %c0_i32_1 = arith.constant 0 : i32
    return %arg1, %c0_i32, %c0_i32_0 : i32, i32, i32
  }
  func.func @transform_8(%arg0: i32, %arg1: i32) -> (i32, i32) {
    %c0_i32 = arith.constant 0 : i32
    %c0_i32_0 = arith.constant 0 : i32
    %c0_i32_1 = arith.constant 0 : i32
    return %c0_i32, %c0_i32_0 : i32, i32
  }
  func.func @transform_9(%arg0: i32, %arg1: i32) -> (i32, i32) {
    %c0_i32 = arith.constant 0 : i32
    %c0_i32_0 = arith.constant 0 : i32
    %c0_i32_1 = arith.constant 0 : i32
    return %c0_i32, %c0_i32_0 : i32, i32
  }
  func.func @transform_10(%arg0: i32, %arg1: i32) -> (i32, i32) {
    %c0_i32 = arith.constant 0 : i32
    %c0_i32_0 = arith.constant 0 : i32
    %c0_i32_1 = arith.constant 0 : i32
    return %c0_i32, %c0_i32_0 : i32, i32
  }
  func.func @transform_11(%arg0: i32, %arg1: i32) -> (i32, i32, i32) {
    %c0_i32 = arith.constant 0 : i32
    %c0_i32_0 = arith.constant 0 : i32
    %c0_i32_1 = arith.constant 0 : i32
    return %arg0, %c0_i32, %c0_i32_0 : i32, i32, i32
  }
}

</mosaic_0001>

<llo_original>
// kernel: tpu_custom_call.1
$region0: #{tpu_custom_call.1}
  #allocation0 [shape = 'u32[]', space=smem, size = 0x4, offset = 0x4, fixed_abs, tag = 'smem constant byte address 0x4 - core index']
  #allocation1 [shape = 'u32[144,128]{1,0:T(1,128)}', space=vmem, size = 0x12000, scoped, tag = 'internal scratch']
  #allocation2 [shape = 'f32[64,64]{1,0:T(8,128)}', space=vmem, size = 0x8000, scoped, tag = 'scratch operand']
  #allocation3 [shape = 'f32[64,64]{1,0:T(8,128)}', space=vmem, size = 0x8000, scoped, tag = 'scratch operand']
  %s0 = inlined_call_operand.vmem [shape: f32[8,16,64], index: 0, kind: input, shape index: {}]
  %s1 = inlined_call_operand.vmem [shape: bf16[2,64,192], index: 1, kind: input, shape index: {}]
  %s2 = inlined_call_operand.hbm [shape: f32[2,1,192], index: 2, kind: input, shape index: {}]
  %s3 = inlined_call_operand.hbm [shape: bf16[2,64,64], index: 3, kind: input, shape index: {}]
  %s4 = inlined_call_operand.vmem [shape: bf16[2,64,256], index: 4, kind: input, shape index: {}]
  %s5 = inlined_call_operand.vmem [shape: f32[2,1,256], index: 5, kind: input, shape index: {}]
  %s6 = inlined_call_operand.vmem [shape: bf16[2,256,64], index: 6, kind: input, shape index: {}]
  %s7 = inlined_call_operand.vmem [shape: f32[2,6,64], index: 7, kind: input, shape index: {}]
  %s8 = inlined_call_operand.vmem [shape: f32[2,64], index: 8, kind: input, shape index: {}]
  %s9 = inlined_call_operand.vmem [shape: bf16[64,128], index: 9, kind: input, shape index: {}]
  %s10 = inlined_call_operand.vmem [shape: f32[1,128], index: 10, kind: input, shape index: {}]
  %s11 = inlined_call_operand.hbm [shape: f32[8,16,128], index: 11, kind: output, shape index: {}]
  %s12 = sld [smem:[#allocation0]]
  $region93: #{tpu_custom_call.1} parent=0
    _
  %s14 = ssub.s32 1, %s12
  %s15 = scalar_select 0, %s14, %s12
  $region1: #{tpu_custom_call.1} parent=0
    #allocation4 [shape = 'u8[2048]{0}', space=vmem, size = 0x800, scoped, tag = 'input window, operand 2']
    #allocation5 [shape = 's32[2]{0}', space=sflag, size = 0x8, scoped, tag = 'scoped memory for tpu_custom_call.1']
    #allocation6 [shape = 's32[2]{0}', space=sflag, size = 0x8, scoped, tag = 'scoped memory for tpu_custom_call.1']
    #allocation7 [shape = 'u8[32768]{0}', space=vmem, size = 0x8000, scoped, tag = 'input window, operand 3']
    #allocation8 [shape = 's32[2]{0}', space=sflag, size = 0x8, scoped, tag = 'scoped memory for tpu_custom_call.1']
    #allocation9 [shape = 'u8[65536]{0}', space=vmem, size = 0x10000, scoped, tag = 'output window, operand 0']
    %16 = vsyncpa [#allocation5], 0
    %s17 = scalar_lea.sflag [#allocation5], 1
    %18 = vsyncpa %s17, 0
    %19 = vsyncpa [#allocation8], 0
    %s20 = scalar_lea.sflag [#allocation8], 1
    %21 = vsyncpa %s20, 0
    %22 = vsyncpa [#allocation6], 0
    %s23 = scalar_lea.sflag [#allocation6], 1
    %24 = vsyncpa %s23, 0
    loop: start=0, step=1, limit=6
    $region2: #{tpu_custom_call.1} parent=1 // loop_pre_header
      _
    $region3: #{tpu_custom_call.1} parent=1 // loop_header
      %s26 = sphi 0, %s30
      %p27 = scmp.ge.s32.totalorder %s26, 6
      %s33 = sphi 0, %s45
      %s34 = sphi 0, %s41
      %s35 = sphi 0, %s33
      %s36 = sphi 0, %s34
      %s37 = sphi 0, %s35
      %s38 = sphi 0, %s36
      %s48 = sphi 0, %s50
      %s51 = sphi 0, %s48
      %s52 = sphi 0, %s51
      %s68 = sphi 0, %s52
      %s74 = sphi 0, %s76
      %s77 = sphi 0, %s74
      %s78 = sphi 0, %s77
      %s94 = sphi 0, %s78
      %s100 = sphi 0, %s102
      %s103 = sphi 0, %s100
      %s104 = sphi 0, %s103
      %s120 = sphi 0, %s104
      %s126 = sphi 0, %s128
      %s129 = sphi 0, %s126
      %s130 = sphi 0, %s129
      %s146 = sphi 0, %s130
      %s152 = sphi 0, %s154
      %s155 = sphi 0, %s152
      %s156 = sphi 0, %s155
      %s172 = sphi 0, %s156
      %s178 = sphi 0, %s180
      %s181 = sphi 0, %s178
      %s182 = sphi 0, %s181
      %s198 = sphi 0, %s182
      %s204 = sphi 0, %s206
      %s207 = sphi 0, %s204
      %s208 = sphi 0, %s207
      %s224 = sphi 0, %s208
      %s230 = sphi 0, %s232
      %s233 = sphi 0, %s230
      %s234 = sphi 0, %s233
      %s250 = sphi 0, %s234
      %s254 = sphi 0, %s254
      %s256 = sphi 0, %s254
      %s257 = sphi 0, %s256
      %s271 = sphi 0, %s257
      %s275 = sphi 0, %s275
      %s277 = sphi 0, %s275
      %s278 = sphi 0, %s277
      %s292 = sphi 0, %s278
      %s296 = sphi 0, %s296
      %s298 = sphi 0, %s296
      %s299 = sphi 0, %s298
      %s313 = sphi 0, %s299
      %s319 = sphi 0, %s321
      %s322 = sphi 0, %s319
      %s323 = sphi 0, %s322
      %s339 = sphi 0, %s323
    $region4: #{tpu_custom_call.1} parent=1 // loop_header_branch
      %29 = sbr.rel (%p27) target = $region8
    $region5: #{tpu_custom_call.1} parent=1 // loop_body
      %s31 = ssub.s32 %s26, 1
      %s32 = ssub.s32 %s26, 2
      %s39 = sadd.s32 1, %s34
      %p40 = scmp.ge.s32.totalorder %s39, 2
      %s41 = scalar_select %p40, 0, %s39
      %s42 = sadd.s32 1, %s33
      %s43 = scalar_select %p40, %s42, %s33
      %p44 = scmp.ge.s32.totalorder %s43, 2
      %s45 = scalar_select %p44, 0, %s43
      %s46 = ssub.s32 %s33, %s45
      %p47 = scmp.eq.s32.totalorder %s46, 0
      %s49 = sadd.s32 %s48, 1
      %s50 = scalar_select %p47, %s48, %s49
      %p53 = pneg %p47
      %p54 = scmp.eq.s32.totalorder %s26, 3
      %p55 = por %p53, %p54
      %p56 = scmp.ne.s32.totalorder %s48, %s51
      %p57 = scmp.eq.s32.totalorder %s26, 0
      %p58 = por %p56, %p57
      %p59 = scmp.ne.s32.totalorder %s48, %s51
      %p60 = scmp.eq.s32.totalorder %s31, 3
      %p61 = por %p59, %p60
      %p62 = scmp.ne.s32.totalorder %s51, %s52
      %p63 = scmp.eq.s32.totalorder %s31, 0
      %p64 = por %p62, %p63
      %p65 = scmp.ne.s32.totalorder %s51, %s52
      %p66 = scmp.eq.s32.totalorder %s32, 3
      %p67 = por %p65, %p66
      %p69 = scmp.ne.s32.totalorder %s52, %s68
      %p70 = scmp.eq.s32.totalorder %s32, 0
      %p71 = por %p69, %p70
      %s72 = ssub.s32 %s34, %s41
      %p73 = scmp.eq.s32.totalorder %s72, 0
      %s75 = sadd.s32 %s74, 1
      %s76 = scalar_select %p73, %s74, %s75
      %p79 = pneg %p73
      %p80 = scmp.eq.s32.totalorder %s26, 3
      %p81 = por %p79, %p80
      %p82 = scmp.ne.s32.totalorder %s74, %s77
      %p83 = scmp.eq.s32.totalorder %s26, 0
      %p84 = por %p82, %p83
      %p85 = scmp.ne.s32.totalorder %s74, %s77
      %p86 = scmp.eq.s32.totalorder %s31, 3
      %p87 = por %p85, %p86
      %p88 = scmp.ne.s32.totalorder %s77, %s78
      %p89 = scmp.eq.s32.totalorder %s31, 0
      %p90 = por %p88, %p89
      %p91 = scmp.ne.s32.totalorder %s77, %s78
      %p92 = scmp.eq.s32.totalorder %s32, 3
      %p93 = por %p91, %p92
      %p95 = scmp.ne.s32.totalorder %s78, %s94
      %p96 = scmp.eq.s32.totalorder %s32, 0
      %p97 = por %p95, %p96
      %s98 = ssub.s32 %s34, %s41
      %p99 = scmp.eq.s32.totalorder %s98, 0
      %s101 = sadd.s32 %s100, 1
      %s102 = scalar_select %p99, %s100, %s101
      %p105 = pneg %p99
      %p106 = scmp.eq.s32.totalorder %s26, 3
      %p107 = por %p105, %p106
      %p108 = scmp.ne.s32.totalorder %s100, %s103
      %p109 = scmp.eq.s32.totalorder %s26, 0
      %p110 = por %p108, %p109
      %p111 = scmp.ne.s32.totalorder %s100, %s103
      %p112 = scmp.eq.s32.totalorder %s31, 3
      %p113 = por %p111, %p112
      %p114 = scmp.ne.s32.totalorder %s103, %s104
      %p115 = scmp.eq.s32.totalorder %s31, 0
      %p116 = por %p114, %p115
      %p117 = scmp.ne.s32.totalorder %s103, %s104
      %p118 = scmp.eq.s32.totalorder %s32, 3
      %p119 = por %p117, %p118
      %p121 = scmp.ne.s32.totalorder %s104, %s120
      %p122 = scmp.eq.s32.totalorder %s32, 0
      %p123 = por %p121, %p122
      %s124 = ssub.s32 %s34, %s41
      %p125 = scmp.eq.s32.totalorder %s124, 0
      %s127 = sadd.s32 %s126, 1
      %s128 = scalar_select %p125, %s126, %s127
      %p131 = pneg %p125
      %p132 = scmp.eq.s32.totalorder %s26, 3
      %p133 = por %p131, %p132
      %p134 = scmp.ne.s32.totalorder %s126, %s129
      %p135 = scmp.eq.s32.totalorder %s26, 0
      %p136 = por %p134, %p135
      %p137 = scmp.ne.s32.totalorder %s126, %s129
      %p138 = scmp.eq.s32.totalorder %s31, 3
      %p139 = por %p137, %p138
      %p140 = scmp.ne.s32.totalorder %s129, %s130
      %p141 = scmp.eq.s32.totalorder %s31, 0
      %p142 = por %p140, %p141
      %p143 = scmp.ne.s32.totalorder %s129, %s130
      %p144 = scmp.eq.s32.totalorder %s32, 3
      %p145 = por %p143, %p144
      %p147 = scmp.ne.s32.totalorder %s130, %s146
      %p148 = scmp.eq.s32.totalorder %s32, 0
      %p149 = por %p147, %p148
      %s150 = ssub.s32 %s34, %s41
      %p151 = scmp.eq.s32.totalorder %s150, 0
      %s153 = sadd.s32 %s152, 1
      %s154 = scalar_select %p151, %s152, %s153
      %p157 = pneg %p151
      %p158 = scmp.eq.s32.totalorder %s26, 3
      %p159 = por %p157, %p158
      %p160 = scmp.ne.s32.totalorder %s152, %s155
      %p161 = scmp.eq.s32.totalorder %s26, 0
      %p162 = por %p160, %p161
      %p163 = scmp.ne.s32.totalorder %s152, %s155
      %p164 = scmp.eq.s32.totalorder %s31, 3
      %p165 = por %p163, %p164
      %p166 = scmp.ne.s32.totalorder %s155, %s156
      %p167 = scmp.eq.s32.totalorder %s31, 0
      %p168 = por %p166, %p167
      %p169 = scmp.ne.s32.totalorder %s155, %s156
      %p170 = scmp.eq.s32.totalorder %s32, 3
      %p171 = por %p169, %p170
      %p173 = scmp.ne.s32.totalorder %s156, %s172
      %p174 = scmp.eq.s32.totalorder %s32, 0
      %p175 = por %p173, %p174
      %s176 = ssub.s32 %s34, %s41
      %p177 = scmp.eq.s32.totalorder %s176, 0
      %s179 = sadd.s32 %s178, 1
      %s180 = scalar_select %p177, %s178, %s179
      %p183 = pneg %p177
      %p184 = scmp.eq.s32.totalorder %s26, 3
      %p185 = por %p183, %p184
      %p186 = scmp.ne.s32.totalorder %s178, %s181
      %p187 = scmp.eq.s32.totalorder %s26, 0
      %p188 = por %p186, %p187
      %p189 = scmp.ne.s32.totalorder %s178, %s181
      %p190 = scmp.eq.s32.totalorder %s31, 3
      %p191 = por %p189, %p190
      %p192 = scmp.ne.s32.totalorder %s181, %s182
      %p193 = scmp.eq.s32.totalorder %s31, 0
      %p194 = por %p192, %p193
      %p195 = scmp.ne.s32.totalorder %s181, %s182
      %p196 = scmp.eq.s32.totalorder %s32, 3
      %p197 = por %p195, %p196
      %p199 = scmp.ne.s32.totalorder %s182, %s198
      %p200 = scmp.eq.s32.totalorder %s32, 0
      %p201 = por %p199, %p200
      %s202 = ssub.s32 %s34, %s41
      %p203 = scmp.eq.s32.totalorder %s202, 0
      %s205 = sadd.s32 %s204, 1
      %s206 = scalar_select %p203, %s204, %s205
      %p209 = pneg %p203
      %p210 = scmp.eq.s32.totalorder %s26, 3
      %p211 = por %p209, %p210
      %p212 = scmp.ne.s32.totalorder %s204, %s207
      %p213 = scmp.eq.s32.totalorder %s26, 0
      %p214 = por %p212, %p213
      %p215 = scmp.ne.s32.totalorder %s204, %s207
      %p216 = scmp.eq.s32.totalorder %s31, 3
      %p217 = por %p215, %p216
      %p218 = scmp.ne.s32.totalorder %s207, %s208
      %p219 = scmp.eq.s32.totalorder %s31, 0
      %p220 = por %p218, %p219
      %p221 = scmp.ne.s32.totalorder %s207, %s208
      %p222 = scmp.eq.s32.totalorder %s32, 3
      %p223 = por %p221, %p222
      %p225 = scmp.ne.s32.totalorder %s208, %s224
      %p226 = scmp.eq.s32.totalorder %s32, 0
      %p227 = por %p225, %p226
      %s228 = ssub.s32 %s34, %s41
      %p229 = scmp.eq.s32.totalorder %s228, 0
      %s231 = sadd.s32 %s230, 1
      %s232 = scalar_select %p229, %s230, %s231
      %p235 = pneg %p229
      %p236 = scmp.eq.s32.totalorder %s26, 3
      %p237 = por %p235, %p236
      %p238 = scmp.ne.s32.totalorder %s230, %s233
      %p239 = scmp.eq.s32.totalorder %s26, 0
      %p240 = por %p238, %p239
      %p241 = scmp.ne.s32.totalorder %s230, %s233
      %p242 = scmp.eq.s32.totalorder %s31, 3
      %p243 = por %p241, %p242
      %p244 = scmp.ne.s32.totalorder %s233, %s234
      %p245 = scmp.eq.s32.totalorder %s31, 0
      %p246 = por %p244, %p245
      %p247 = scmp.ne.s32.totalorder %s233, %s234
      %p248 = scmp.eq.s32.totalorder %s32, 3
      %p249 = por %p247, %p248
      %p251 = scmp.ne.s32.totalorder %s234, %s250
      %p252 = scmp.eq.s32.totalorder %s32, 0
      %p253 = por %p251, %p252
      %s255 = sadd.s32 %s254, 1
      %p258 = scmp.eq.s32.totalorder %s26, 3
      %p259 = scmp.ne.s32.totalorder %s254, %s256
      %p260 = scmp.eq.s32.totalorder %s26, 0
      %p261 = por %p259, %p260
      %p262 = scmp.ne.s32.totalorder %s254, %s256
      %p263 = scmp.eq.s32.totalorder %s31, 3
      %p264 = por %p262, %p263
      %p265 = scmp.ne.s32.totalorder %s256, %s257
      %p266 = scmp.eq.s32.totalorder %s31, 0
      %p267 = por %p265, %p266
      %p268 = scmp.ne.s32.totalorder %s256, %s257
      %p269 = scmp.eq.s32.totalorder %s32, 3
      %p270 = por %p268, %p269
      %p272 = scmp.ne.s32.totalorder %s257, %s271
      %p273 = scmp.eq.s32.totalorder %s32, 0
      %p274 = por %p272, %p273
      %s276 = sadd.s32 %s275, 1
      %p279 = scmp.eq.s32.totalorder %s26, 3
      %p280 = scmp.ne.s32.totalorder %s275, %s277
      %p281 = scmp.eq.s32.totalorder %s26, 0
      %p282 = por %p280, %p281
      %p283 = scmp.ne.s32.totalorder %s275, %s277
      %p284 = scmp.eq.s32.totalorder %s31, 3
      %p285 = por %p283, %p284
      %p286 = scmp.ne.s32.totalorder %s277, %s278
      %p287 = scmp.eq.s32.totalorder %s31, 0
      %p288 = por %p286, %p287
      %p289 = scmp.ne.s32.totalorder %s277, %s278
      %p290 = scmp.eq.s32.totalorder %s32, 3
      %p291 = por %p289, %p290
      %p293 = scmp.ne.s32.totalorder %s278, %s292
      %p294 = scmp.eq.s32.totalorder %s32, 0
      %p295 = por %p293, %p294
      %s297 = sadd.s32 %s296, 1
      %p300 = scmp.eq.s32.totalorder %s26, 3
      %p301 = scmp.ne.s32.totalorder %s296, %s298
      %p302 = scmp.eq.s32.totalorder %s26, 0
      %p303 = por %p301, %p302
      %p304 = scmp.ne.s32.totalorder %s296, %s298
      %p305 = scmp.eq.s32.totalorder %s31, 3
      %p306 = por %p304, %p305
      %p307 = scmp.ne.s32.totalorder %s298, %s299
      %p308 = scmp.eq.s32.totalorder %s31, 0
      %p309 = por %p307, %p308
      %p310 = scmp.ne.s32.totalorder %s298, %s299
      %p311 = scmp.eq.s32.totalorder %s32, 3
      %p312 = por %p310, %p311
      %p314 = scmp.ne.s32.totalorder %s299, %s313
      %p315 = scmp.eq.s32.totalorder %s32, 0
      %p316 = por %p314, %p315
      %s317 = ssub.s32 %s33, %s45
      %p318 = scmp.eq.s32.totalorder %s317, 0
      %s320 = sadd.s32 %s319, 1
      %s321 = scalar_select %p318, %s319, %s320
      %p324 = pneg %p318
      %p325 = scmp.eq.s32.totalorder %s26, 3
      %p326 = por %p324, %p325
      %p327 = scmp.ne.s32.totalorder %s319, %s322
      %p328 = scmp.eq.s32.totalorder %s26, 0
      %p329 = por %p327, %p328
      %p330 = scmp.ne.s32.totalorder %s319, %s322
      %p331 = scmp.eq.s32.totalorder %s31, 3
      %p332 = por %p330, %p331
      %p333 = scmp.ne.s32.totalorder %s322, %s323
      %p334 = scmp.eq.s32.totalorder %s31, 0
      %p335 = por %p333, %p334
      %p336 = scmp.ne.s32.totalorder %s322, %s323
      %p337 = scmp.eq.s32.totalorder %s32, 3
      %p338 = por %p336, %p337
      %p340 = scmp.ne.s32.totalorder %s323, %s339
      %p341 = scmp.eq.s32.totalorder %s32, 0
      %p342 = por %p340, %p341
      %p343 = scmp.le.s32.totalorder 1, %s26
      %p344 = scmp.lt.s32.totalorder %s26, 5
      %p345 = pnand %p343, %p344
      %p346 = pneg %p345
      // Predicated region
      $region9: #{tpu_custom_call.1} parent=5 // pred_check
        _
      $region10: #{tpu_custom_call.1} parent=5 // pred_check_branch
        %348 = sbr.rel (%p345) target = $region12
      $region11: #{tpu_custom_call.1} parent=5 // pred_region
        %s349 = ssub.s32 %s26, 1
        // Predicated region
        $region13: #{tpu_custom_call.1} parent=11 // pred_check
          %p350 = pneg %p267
        $region14: #{tpu_custom_call.1} parent=11 // pred_check_branch
          %352 = sbr.rel (%p350) target = $region16
        $region15: #{tpu_custom_call.1} parent=11 // pred_region
          _
        $region16: #{tpu_custom_call.1} parent=11 // pred_fallthru
          _
        // Predicated region
        $region17: #{tpu_custom_call.1} parent=11 // pred_check
          %p353 = pneg %p288
        $region18: #{tpu_custom_call.1} parent=11 // pred_check_branch
          %355 = sbr.rel (%p353) target = $region20
        $region19: #{tpu_custom_call.1} parent=11 // pred_region
          _
        $region20: #{tpu_custom_call.1} parent=11 // pred_fallthru
          _
        // Predicated region
        $region21: #{tpu_custom_call.1} parent=11 // pred_check
          %p356 = pneg %p309
        $region22: #{tpu_custom_call.1} parent=11 // pred_check_branch
          %358 = sbr.rel (%p356) target = $region24
        $region23: #{tpu_custom_call.1} parent=11 // pred_region
          _
        $region24: #{tpu_custom_call.1} parent=11 // pred_fallthru
          _
      $region12: #{tpu_custom_call.1} parent=5 // pred_fallthru
        _
      %p359 = scmp.lt.s32.totalorder %s26, 4
      // Predicated region
      $region25: #{tpu_custom_call.1} parent=5 // pred_check
        %p360 = pneg %p359
      $region26: #{tpu_custom_call.1} parent=5 // pred_check_branch
        %362 = sbr.rel (%p360) target = $region28
      $region27: #{tpu_custom_call.1} parent=5 // pred_region
        // Predicated region
        $region29: #{tpu_custom_call.1} parent=27 // pred_check
          %p363 = pneg %p58
        $region30: #{tpu_custom_call.1} parent=27 // pred_check_branch
          %365 = sbr.rel (%p363) target = $region32
        $region31: #{tpu_custom_call.1} parent=27 // pred_region
          %s366 = smul.u32 4, %s33
          %p367 = scmp.lt.s32.totalorder %s366, 7
          %s368 = scalar_select %p367, %s366, 7
          %s369 = smul.addr %s368, 2
          %s370 = smul.addr %s369, 8
          %s371 = scalar_lea.vmem %s0, %s370
          %s372 = smul.u32 4, %s33
        $region32: #{tpu_custom_call.1} parent=27 // pred_fallthru
          _
        // Predicated region
        $region33: #{tpu_custom_call.1} parent=27 // pred_check
          %p373 = pneg %p84
        $region34: #{tpu_custom_call.1} parent=27 // pred_check_branch
          %375 = sbr.rel (%p373) target = $region36
        $region35: #{tpu_custom_call.1} parent=27 // pred_region
          %p376 = scmp.lt.s32.totalorder %s34, 1
          %s377 = scalar_select %p376, %s34, 1
          %s378 = smul.addr %s377, 16
          %s379 = smul.addr %s378, 4
          %s380 = scalar_lea.vmem %s1, %s379
        $region36: #{tpu_custom_call.1} parent=27 // pred_fallthru
          _
        // Predicated region
        $region37: #{tpu_custom_call.1} parent=27 // pred_check
          %p381 = pneg %p110
        $region38: #{tpu_custom_call.1} parent=27 // pred_check_branch
          %383 = sbr.rel (%p381) target = $region40
        $region39: #{tpu_custom_call.1} parent=27 // pred_region
          %s384 = sand.u32 %s100, 1
          %s385 = scalar_lea.sflag [#allocation5], %s384
          %s386 = sand.u32 %s100, 1
          %s387 = smul.addr %s386, 2
          %s388 = scalar_lea.vmem [#allocation4], %s387
          %s390 = ssub.s32 32, 32
          %391 = vsyncadd %s385, %s390
          %s392 = smul.addr %s34, 2
          %s393 = smul.addr %s392, 16
          %s394 = scalar_lea.hbm %s2, %s393
          %s396 = sshll.u32 %s388, 4
          %s397 = int_to_ptr.vmem [resolvable:$true] %s396
          %399 = dma.hbm_to_vmem [thread:$0]  %s394, 32, %s397, %s385
        $region40: #{tpu_custom_call.1} parent=27 // pred_fallthru
          _
        // Predicated region
        $region41: #{tpu_custom_call.1} parent=27 // pred_check
          %p400 = pneg %p136
        $region42: #{tpu_custom_call.1} parent=27 // pred_check_branch
          %402 = sbr.rel (%p400) target = $region44
        $region43: #{tpu_custom_call.1} parent=27 // pred_region
          %s403 = sand.u32 %s126, 1
          %s404 = scalar_lea.sflag [#allocation8], %s403
          %s405 = sand.u32 %s126, 1
          %s406 = smul.addr %s405, 32
          %s407 = scalar_lea.vmem [#allocation7], %s406
          %s409 = ssub.s32 512, 512
          %410 = vsyncadd %s404, %s409
          %s411 = smul.addr %s34, 8
          %s412 = smul.addr %s411, 64
          %s413 = scalar_lea.hbm %s3, %s412
          %s414 = sshll.u32 %s407, 4
          %s415 = int_to_ptr.vmem [resolvable:$true] %s414
          %420 = dma.hbm_to_vmem [thread:$0]  %s413, 512, %s415, %s404, 64, 64, 4
        $region44: #{tpu_custom_call.1} parent=27 // pred_fallthru
          _
        // Predicated region
        $region45: #{tpu_custom_call.1} parent=27 // pred_check
          %p421 = pneg %p162
        $region46: #{tpu_custom_call.1} parent=27 // pred_check_branch
          %423 = sbr.rel (%p421) target = $region48
        $region47: #{tpu_custom_call.1} parent=27 // pred_region
          %p424 = scmp.lt.s32.totalorder %s34, 1
          %s425 = scalar_select %p424, %s34, 1
          %s426 = smul.addr %s425, 16
          %s427 = smul.addr %s426, 4
          %s428 = scalar_lea.vmem %s4, %s427
        $region48: #{tpu_custom_call.1} parent=27 // pred_fallthru
          _
        // Predicated region
        $region49: #{tpu_custom_call.1} parent=27 // pred_check
          %p429 = pneg %p188
        $region50: #{tpu_custom_call.1} parent=27 // pred_check_branch
          %431 = sbr.rel (%p429) target = $region52
        $region51: #{tpu_custom_call.1} parent=27 // pred_region
          %p432 = scmp.lt.s32.totalorder %s34, 1
          %s433 = scalar_select %p432, %s34, 1
          %s434 = smul.addr %s433, 2
          %s435 = scalar_lea.vmem %s5, %s434
        $region52: #{tpu_custom_call.1} parent=27 // pred_fallthru
          _
        // Predicated region
        $region53: #{tpu_custom_call.1} parent=27 // pred_check
          %p436 = pneg %p214
        $region54: #{tpu_custom_call.1} parent=27 // pred_check_branch
          %438 = sbr.rel (%p436) target = $region56
        $region55: #{tpu_custom_call.1} parent=27 // pred_region
          %p439 = scmp.lt.s32.totalorder %s34, 1
          %s440 = scalar_select %p439, %s34, 1
          %s441 = smul.addr %s440, 32
          %s442 = smul.addr %s441, 4
          %s443 = scalar_lea.vmem %s6, %s442
        $region56: #{tpu_custom_call.1} parent=27 // pred_fallthru
          _
        // Predicated region
        $region57: #{tpu_custom_call.1} parent=27 // pred_check
          %p444 = pneg %p240
        $region58: #{tpu_custom_call.1} parent=27 // pred_check_branch
          %446 = sbr.rel (%p444) target = $region60
        $region59: #{tpu_custom_call.1} parent=27 // pred_region
          %p447 = scmp.lt.s32.totalorder %s34, 1
          %s448 = scalar_select %p447, %s34, 1
          %s449 = smul.addr %s448, 8
          %s450 = scalar_lea.vmem %s7, %s449
        $region60: #{tpu_custom_call.1} parent=27 // pred_fallthru
          _
      $region28: #{tpu_custom_call.1} parent=5 // pred_fallthru
        _
      %p451 = scmp.le.s32.totalorder 1, %s26
      %p452 = scmp.lt.s32.totalorder %s26, 5
      %p453 = pnand %p451, %p452
      %p454 = pneg %p453
      // Predicated region
      $region61: #{tpu_custom_call.1} parent=5 // pred_check
        _
      $region62: #{tpu_custom_call.1} parent=5 // pred_check_branch
        %456 = sbr.rel (%p453) target = $region64
      $region63: #{tpu_custom_call.1} parent=5 // pred_region
        %s457 = ssub.s32 %s26, 1
        %s458 = sand.u32 %s103, 1
        %s459 = scalar_lea.sflag [#allocation5], %s458
        %s460 = sand.u32 %s103, 1
        %s461 = smul.addr %s460, 2
        %s462 = scalar_lea.vmem [#allocation4], %s461
        // Predicated region
        $region65: #{tpu_custom_call.1} parent=63 // pred_check
          %p463 = pneg %p116
        $region66: #{tpu_custom_call.1} parent=63 // pred_check_branch
          %465 = sbr.rel (%p463) target = $region68
        $region67: #{tpu_custom_call.1} parent=63 // pred_region
          %466 = dma.done %s459, 32
        $region68: #{tpu_custom_call.1} parent=63 // pred_fallthru
          _
        %s467 = sand.u32 %s129, 1
        %s468 = scalar_lea.sflag [#allocation8], %s467
        %s469 = sand.u32 %s129, 1
        %s470 = smul.addr %s469, 32
        %s471 = scalar_lea.vmem [#allocation7], %s470
        // Predicated region
        $region69: #{tpu_custom_call.1} parent=63 // pred_check
          %p472 = pneg %p142
        $region70: #{tpu_custom_call.1} parent=63 // pred_check_branch
          %474 = sbr.rel (%p472) target = $region72
        $region71: #{tpu_custom_call.1} parent=63 // pred_region
          %475 = dma.done %s468, 512
        $region72: #{tpu_custom_call.1} parent=63 // pred_fallthru
          _
        %s476 = smul.u32 4, %s35
        %p477 = scmp.lt.s32.totalorder %s476, 7
        %s478 = scalar_select %p477, %s476, 7
        %s479 = smul.addr %s478, 2
        %s480 = smul.addr %s479, 8
        %s481 = scalar_lea.vmem %s0, %s480
        %p482 = pneg %p64
        %p483 = pneg %p61
        %p484 = scmp.lt.s32.totalorder %s36, 1
        %s485 = scalar_select %p484, %s36, 1
        %s486 = smul.addr %s485, 16
        %s487 = smul.addr %s486, 4
        %s488 = scalar_lea.vmem %s1, %s487
        %p489 = pneg %p90
        %p490 = pneg %p87
        %s491 = sand.u32 %s103, 1
        %s492 = scalar_lea.sflag [#allocation5], %s491
        %s493 = sand.u32 %s103, 1
        %s494 = smul.addr %s493, 2
        %s495 = scalar_lea.vmem [#allocation4], %s494
        %p496 = pneg %p116
        %p497 = pneg %p113
        %s498 = sand.u32 %s129, 1
        %s499 = scalar_lea.sflag [#allocation8], %s498
        %s500 = sand.u32 %s129, 1
        %s501 = smul.addr %s500, 32
        %s502 = scalar_lea.vmem [#allocation7], %s501
        %p503 = pneg %p142
        %p504 = pneg %p139
        %p505 = scmp.lt.s32.totalorder %s36, 1
        %s506 = scalar_select %p505, %s36, 1
        %s507 = smul.addr %s506, 16
        %s508 = smul.addr %s507, 4
        %s509 = scalar_lea.vmem %s4, %s508
        %p510 = pneg %p168
        %p511 = pneg %p165
        %p512 = scmp.lt.s32.totalorder %s36, 1
        %s513 = scalar_select %p512, %s36, 1
        %s514 = smul.addr %s513, 2
        %s515 = scalar_lea.vmem %s5, %s514
        %p516 = pneg %p194
        %p517 = pneg %p191
        %p518 = scmp.lt.s32.totalorder %s36, 1
        %s519 = scalar_select %p518, %s36, 1
        %s520 = smul.addr %s519, 32
        %s521 = smul.addr %s520, 4
        %s522 = scalar_lea.vmem %s6, %s521
        %p523 = pneg %p220
        %p524 = pneg %p217
        %p525 = scmp.lt.s32.totalorder %s36, 1
        %s526 = scalar_select %p525, %s36, 1
        %s527 = smul.addr %s526, 8
        %s528 = scalar_lea.vmem %s7, %s527
        %p529 = pneg %p246
        %p530 = pneg %p243
        %p531 = pneg %p267
        %p532 = pneg %p264
        %p533 = pneg %p288
        %p534 = pneg %p285
        %p535 = pneg %p309
        %p536 = pneg %p306
        %p537 = pneg %p335
        %p538 = pneg %p332
        %s539 = sand.u32 %s322, 1
        %s540 = scalar_lea.sflag [#allocation6], %s539
        %s541 = sand.u32 %s322, 1
        %s542 = smul.addr %s541, 64
        %s543 = scalar_lea.vmem [#allocation9], %s542
        %s544 = smul.u32 4, %s35
        %p545 = scmp.lt.s32.totalorder %s544, 7
        %s546 = scalar_select %p545, %s544, 7
        %s547 = smul.addr %s546, 2
        %s548 = smul.addr %s547, 8
        %s549 = scalar_lea.vmem %s0, %s548
        %s550 = smul.u32 4, %s35
        %p551 = scmp.lt.s32.totalorder %s36, 1
        %s552 = scalar_select %p551, %s36, 1
        %s553 = smul.addr %s552, 16
        %s554 = smul.addr %s553, 4
        %s555 = scalar_lea.vmem %s1, %s554
        %p556 = scmp.lt.s32.totalorder %s36, 1
        %s557 = scalar_select %p556, %s36, 1
        %s558 = smul.addr %s557, 16
        %s559 = smul.addr %s558, 4
        %s560 = scalar_lea.vmem %s4, %s559
        %p561 = scmp.lt.s32.totalorder %s36, 1
        %s562 = scalar_select %p561, %s36, 1
        %s563 = smul.addr %s562, 2
        %s564 = scalar_lea.vmem %s5, %s563
        %p565 = scmp.lt.s32.totalorder %s36, 1
        %s566 = scalar_select %p565, %s36, 1
        %s567 = smul.addr %s566, 32
        %s568 = smul.addr %s567, 4
        %s569 = scalar_lea.vmem %s6, %s568
        %p570 = scmp.lt.s32.totalorder %s36, 1
        %s571 = scalar_select %p570, %s36, 1
        %s572 = smul.addr %s571, 8
        %s573 = scalar_lea.vmem %s7, %s572
        %s574 = smul.u32 4, %s35
        %p576 = scmp.eq.s32.totalorder %s36, 0
        // Predicated region
        $region73: #{tpu_custom_call.1} parent=63 // pred_check
          %p577 = pneg %p576
        $region74: #{tpu_custom_call.1} parent=63 // pred_check_branch
          %579 = sbr.rel (%p577) target = $region76
        $region75: #{tpu_custom_call.1} parent=63 // pred_region
          %v580 = vld [vmem:[%s549] sm:$0xff]
          %v581 = vld [vmem:[%s549 + $0x8] sm:$0xff]
          %v582 = vld [vmem:[%s549 + $0x10] sm:$0xff]
          %v583 = vld [vmem:[%s549 + $0x18] sm:$0xff]
          %v584 = vld [vmem:[%s549 + $0x20] sm:$0xff]
          %v585 = vld [vmem:[%s549 + $0x28] sm:$0xff]
          %v586 = vld [vmem:[%s549 + $0x30] sm:$0xff]
          %v587 = vld [vmem:[%s549 + $0x38] sm:$0xff]
          %vm588 = vcmask 523264
          %589 = vst.msk [vmem:[#allocation2] sm:$0xff] %vm588, %v580
          %590 = vst.msk [vmem:[#allocation2 + $0x8] sm:$0xff] %vm588, %v581
          %591 = vst.msk [vmem:[#allocation2 + $0x10] sm:$0xff] %vm588, %v582
          %592 = vst.msk [vmem:[#allocation2 + $0x18] sm:$0xff] %vm588, %v583
          %593 = vst.msk [vmem:[#allocation2 + $0x20] sm:$0xff] %vm588, %v584
          %594 = vst.msk [vmem:[#allocation2 + $0x28] sm:$0xff] %vm588, %v585
          %595 = vst.msk [vmem:[#allocation2 + $0x30] sm:$0xff] %vm588, %v586
          %596 = vst.msk [vmem:[#allocation2 + $0x38] sm:$0xff] %vm588, %v587
        $region76: #{tpu_custom_call.1} parent=63 // pred_fallthru
          _
        %v597 = vld [vmem:[%s573] sm:$0x3f]
        %v598 = vld [vmem:[#allocation2] sm:$0xff]
        %v599 = vld [vmem:[#allocation2 + $0x8] sm:$0xff]
        %v600 = vld [vmem:[#allocation2 + $0x10] sm:$0xff]
        %v601 = vld [vmem:[#allocation2 + $0x18] sm:$0xff]
        %v602 = vld [vmem:[#allocation2 + $0x20] sm:$0xff]
        %v603 = vld [vmem:[#allocation2 + $0x28] sm:$0xff]
        %v604 = vld [vmem:[#allocation2 + $0x30] sm:$0xff]
        %v605 = vld [vmem:[#allocation2 + $0x38] sm:$0xff]
        %v606 = vpack.c.bf16 %v599, %v598
        %v607 = vpack.c.bf16 %v601, %v600
        %v608 = vpack.c.bf16 %v603, %v602
        %v609 = vpack.c.bf16 %v605, %v604
        %v610 = vld [vmem:[%s555] sm:$0xff]
        %v611 = vld [vmem:[%s555 + $0x8] sm:$0xff]
        %v612 = vld [vmem:[%s555 + $0x10] sm:$0xff]
        %v613 = vld [vmem:[%s555 + $0x18] sm:$0xff]
        %v614 = vld [vmem:[%s555 + $0x20] sm:$0xff]
        %v615 = vld [vmem:[%s555 + $0x28] sm:$0xff]
        %v616 = vld [vmem:[%s555 + $0x30] sm:$0xff]
        %v617 = vld [vmem:[%s555 + $0x38] sm:$0xff]
        %v618 = vld [vmem:[%s462] sm:$0x3]
        %v620 = vlaneseq
        %v621 = vshrl.u32 %v620, 7
        %v622 = vsub.s32 0, %v621
        %v623 = vrot.slane %v618, %v622
        %v624 = vlaneseq
        %v625 = vshrl.u32 %v624, 7
        %v626 = vsub.s32 1, %v625
        %v627 = vrot.slane %v618, %v626
        %v638 = vunpack.c.l.b16 %v610
        %v639 = vunpack.c.h.b16 %v610
        %v640 = vunpack.c.l.b16 %v611
        %v641 = vunpack.c.h.b16 %v611
        %v642 = vunpack.c.l.b16 %v612
        %v643 = vunpack.c.h.b16 %v612
        %v644 = vunpack.c.l.b16 %v613
        %v645 = vunpack.c.h.b16 %v613
        %v646 = vunpack.c.l.b16 %v614
        %v647 = vunpack.c.h.b16 %v614
        %v648 = vunpack.c.l.b16 %v615
        %v649 = vunpack.c.h.b16 %v615
        %v650 = vunpack.c.l.b16 %v616
        %v651 = vunpack.c.h.b16 %v616
        %v652 = vunpack.c.l.b16 %v617
        %v653 = vunpack.c.h.b16 %v617
        %v654 = vpack.c.b16 %v640, %v638
        %v655 = vpack.c.b16 %v641, %v639
        %v656 = vpack.c.b16 %v644, %v642
        %v657 = vpack.c.b16 %v645, %v643
        %v658 = vpack.c.b16 %v648, %v646
        %v659 = vpack.c.b16 %v649, %v647
        %v660 = vpack.c.b16 %v652, %v650
        %v661 = vpack.c.b16 %v653, %v651
        %vm670 = vcmask 523264
        %v672 = vsel %vm670, %v606, 0
        %v675 = vsel %vm670, %v607, 0
        %v678 = vsel %vm670, %v608, 0
        %v681 = vsel %vm670, %v609, 0
        %683 = vmatprep.subr.bf16.mxu0 %v655
        %684 = vmatpush1.bf16.msra.mxu0 %v654
        %685 = vmatprep.subr.bf16.mxu0 %v657
        %686 = vmatpush1.bf16.msra.mxu0 %v656
        %687 = vmatprep.subr.bf16.mxu0 %v659
        %688 = vmatpush1.bf16.msra.mxu0 %v658
        %689 = vmatprep.subr.bf16.mxu0 %v661
        %690 = vmatpush1.bf16.msra.mxu0 %v660
        %691 = vmatprep.subr.bf16.mxu0 0
        %692 = vmatpush1.bf16.msra.mxu0 0
        %693 = vmatprep.subr.bf16.mxu0 0
        %694 = vmatpush1.bf16.msra.mxu0 0
        %695 = vmatprep.subr.bf16.mxu0 0
        %696 = vmatpush1.bf16.msra.mxu0 0
        %697 = vmatprep.subr.bf16.mxu0 0
        %698 = vmatpush1.bf16.msra.mxu0 0
        %699 = vmatprep.subr.bf16.mxu0 0
        %700 = vmatpush1.bf16.msra.mxu0 0
        %701 = vmatprep.subr.bf16.mxu0 0
        %702 = vmatpush1.bf16.msra.mxu0 0
        %703 = vmatprep.subr.bf16.mxu0 0
        %704 = vmatpush1.bf16.msra.mxu0 0
        %705 = vmatprep.subr.bf16.mxu0 0
        %706 = vmatpush1.bf16.msra.mxu0 0
        %707 = vmatprep.subr.bf16.mxu0 0
        %708 = vmatpush1.bf16.msra.mxu0 0
        %709 = vmatprep.subr.bf16.mxu0 0
        %710 = vmatpush1.bf16.msra.mxu0 0
        %711 = vmatprep.subr.bf16.mxu0 0
        %712 = vmatpush1.bf16.msra.mxu0 0
        %713 = vmatprep.subr.bf16.mxu0 0
        %714 = vmatpush1.bf16.msra.mxu0 0
        %715 = vmatprep.mubr.bf16.mxu0 0
        %716 = vmatmul.mubr.bf16.gmra.mrb[0].mxu0 %v672
        %v717 = vpop.f32.mrb[0].mxu0
        %v718 = vadd.f32 %v623, %v717
        %v719 = vpop.f32.mrb[0].mxu0
        %v720 = vadd.f32 %v627, %v719
        %v721 = vpop.f32.mrb[0].mxu0
        %v722 = vadd.f32 %v623, %v721
        %v723 = vpop.f32.mrb[0].mxu0
        %v724 = vadd.f32 %v627, %v723
        %725 = vmatprep.mubr.bf16.mxu0 0
        %726 = vmatmul.mubr.bf16.gmra.mrb[0].mxu0 %v675
        %v727 = vpop.f32.mrb[0].mxu0
        %v728 = vadd.f32 %v623, %v727
        %v729 = vpop.f32.mrb[0].mxu0
        %v730 = vadd.f32 %v627, %v729
        %v731 = vpop.f32.mrb[0].mxu0
        %v732 = vadd.f32 %v623, %v731
        %v733 = vpop.f32.mrb[0].mxu0
        %v734 = vadd.f32 %v627, %v733
        %735 = vmatprep.mubr.bf16.mxu0 0
        %736 = vmatmul.mubr.bf16.gmra.mrb[0].mxu0 %v678
        %v737 = vpop.f32.mrb[0].mxu0
        %v738 = vadd.f32 %v623, %v737
        %v739 = vpop.f32.mrb[0].mxu0
        %v740 = vadd.f32 %v627, %v739
        %v741 = vpop.f32.mrb[0].mxu0
        %v742 = vadd.f32 %v623, %v741
        %v743 = vpop.f32.mrb[0].mxu0
        %v744 = vadd.f32 %v627, %v743
        %745 = vmatprep.mubr.bf16.mxu0 0
        %746 = vmatmul.mubr.bf16.gmra.mrb[0].mxu0 %v681
        %v747 = vpop.f32.mrb[0].mxu0
        %v748 = vadd.f32 %v623, %v747
        %v749 = vpop.f32.mrb[0].mxu0
        %v750 = vadd.f32 %v627, %v749
        %v751 = vpop.f32.mrb[0].mxu0
        %v752 = vadd.f32 %v623, %v751
        %v753 = vpop.f32.mrb[0].mxu0
        %v754 = vadd.f32 %v627, %v753
        %755 = vdwg.mxu0
        %v756 = vpack.c.bf16 %v722, %v718
        %v757 = vpack.c.bf16 %v724, %v720
        %v758 = vpack.c.bf16 %v732, %v728
        %v759 = vpack.c.bf16 %v734, %v730
        %v760 = vpack.c.bf16 %v742, %v738
        %v761 = vpack.c.bf16 %v744, %v740
        %v762 = vpack.c.bf16 %v752, %v748
        %v763 = vpack.c.bf16 %v754, %v750
        %765 = vrot.lane.b32.xlu0 %v756, 64
        %v766 = vpop.permute.xlu0 %765
        %vm767 = vcmask 130048
        %v769 = vsel %vm767, %v756, 0
        %v772 = vsel %vm767, %v766, 0
        %774 = vmatprep.subr.bf16.mxu0 0
        %775 = vmatpush1.bf16.xpose.msra.mxu0 %v772
        %776 = vmatprep.subr.bf16.mxu0 0
        %777 = vmatpush1.bf16.xpose.msra.mxu0 0
        %778 = vmatprep.subr.bf16.mxu0 0
        %779 = vmatpush1.bf16.xpose.msra.mxu0 0
        %780 = vmatprep.subr.bf16.mxu0 0
        %781 = vmatpush1.bf16.xpose.msra.mxu0 0
        %782 = vmatprep.subr.bf16.mxu0 0
        %783 = vmatpush1.bf16.xpose.msra.mxu0 0
        %784 = vmatprep.subr.bf16.mxu0 0
        %785 = vmatpush1.bf16.xpose.msra.mxu0 0
        %786 = vmatprep.subr.bf16.mxu0 0
        %787 = vmatpush1.bf16.xpose.msra.mxu0 0
        %788 = vmatprep.subr.bf16.mxu0 0
        %789 = vmatpush1.bf16.xpose.msra.mxu0 0
        %790 = vmatprep.subr.bf16.mxu0 0
        %791 = vmatpush1.bf16.xpose.msra.mxu0 0
        %792 = vmatprep.subr.bf16.mxu0 0
        %793 = vmatpush1.bf16.xpose.msra.mxu0 0
        %794 = vmatprep.subr.bf16.mxu0 0
        %795 = vmatpush1.bf16.xpose.msra.mxu0 0
        %796 = vmatprep.subr.bf16.mxu0 0
        %797 = vmatpush1.bf16.xpose.msra.mxu0 0
        %798 = vmatprep.subr.bf16.mxu0 0
        %799 = vmatpush1.bf16.xpose.msra.mxu0 0
        %800 = vmatprep.subr.bf16.mxu0 0
        %801 = vmatpush1.bf16.xpose.msra.mxu0 0
        %802 = vmatprep.subr.bf16.mxu0 0
        %803 = vmatpush1.bf16.xpose.msra.mxu0 0
        %804 = vmatprep.subr.bf16.mxu0 0
        %805 = vmatpush1.bf16.xpose.msra.mxu0 0
        %806 = vmatprep.mubr.bf16.mxu0 0
        %807 = vmatmul.mubr.bf16.gmra.mrb[0].mxu0 %v769
        %v808 = vpop.f32.mrb[0].mxu0
        %v809 = vadd.f32 0.0, %v808
        %v810 = vpop.f32.mrb[0].mxu0
        %v811 = vpop.f32.mrb[0].mxu0
        %v812 = vadd.f32 0.0, %v811
        %v813 = vpop.f32.mrb[0].mxu0
        %814 = vdwg.mxu0
        %816 = vrot.lane.b32.xlu0 %v758, 64
        %v817 = vpop.permute.xlu0 %816
        %v819 = vsel %vm767, %v758, 0
        %v822 = vsel %vm767, %v817, 0
        %824 = vmatprep.subr.bf16.mxu0 0
        %825 = vmatpush1.bf16.xpose.msra.mxu0 %v822
        %826 = vmatprep.subr.bf16.mxu0 0
        %827 = vmatpush1.bf16.xpose.msra.mxu0 0
        %828 = vmatprep.subr.bf16.mxu0 0
        %829 = vmatpush1.bf16.xpose.msra.mxu0 0
        %830 = vmatprep.subr.bf16.mxu0 0
        %831 = vmatpush1.bf16.xpose.msra.mxu0 0
        %832 = vmatprep.subr.bf16.mxu0 0
        %833 = vmatpush1.bf16.xpose.msra.mxu0 0
        %834 = vmatprep.subr.bf16.mxu0 0
        %835 = vmatpush1.bf16.xpose.msra.mxu0 0
        %836 = vmatprep.subr.bf16.mxu0 0
        %837 = vmatpush1.bf16.xpose.msra.mxu0 0
        %838 = vmatprep.subr.bf16.mxu0 0
        %839 = vmatpush1.bf16.xpose.msra.mxu0 0
        %840 = vmatprep.subr.bf16.mxu0 0
        %841 = vmatpush1.bf16.xpose.msra.mxu0 0
        %842 = vmatprep.subr.bf16.mxu0 0
        %843 = vmatpush1.bf16.xpose.msra.mxu0 0
        %844 = vmatprep.subr.bf16.mxu0 0
        %845 = vmatpush1.bf16.xpose.msra.mxu0 0
        %846 = vmatprep.subr.bf16.mxu0 0
        %847 = vmatpush1.bf16.xpose.msra.mxu0 0
        %848 = vmatprep.subr.bf16.mxu0 0
        %849 = vmatpush1.bf16.xpose.msra.mxu0 0
        %850 = vmatprep.subr.bf16.mxu0 0
        %851 = vmatpush1.bf16.xpose.msra.mxu0 0
        %852 = vmatprep.subr.bf16.mxu0 0
        %853 = vmatpush1.bf16.xpose.msra.mxu0 0
        %854 = vmatprep.subr.bf16.mxu0 0
        %855 = vmatpush1.bf16.xpose.msra.mxu0 0
        %856 = vmatprep.mubr.bf16.mxu0 0
        %857 = vmatmul.mubr.bf16.gmra.mrb[0].mxu0 %v819
        %v858 = vpop.f32.mrb[0].mxu0
        %v859 = vadd.f32 0.0, %v858
        %v860 = vpop.f32.mrb[0].mxu0
        %v861 = vpop.f32.mrb[0].mxu0
        %v862 = vadd.f32 0.0, %v861
        %v863 = vpop.f32.mrb[0].mxu0
        %864 = vdwg.mxu0
        %866 = vrot.lane.b32.xlu0 %v760, 64
        %v867 = vpop.permute.xlu0 %866
        %v869 = vsel %vm767, %v760, 0
        %v872 = vsel %vm767, %v867, 0
        %874 = vmatprep.subr.bf16.mxu0 0
        %875 = vmatpush1.bf16.xpose.msra.mxu0 %v872
        %876 = vmatprep.subr.bf16.mxu0 0
        %877 = vmatpush1.bf16.xpose.msra.mxu0 0
        %878 = vmatprep.subr.bf16.mxu0 0
        %879 = vmatpush1.bf16.xpose.msra.mxu0 0
        %880 = vmatprep.subr.bf16.mxu0 0
        %881 = vmatpush1.bf16.xpose.msra.mxu0 0
        %882 = vmatprep.subr.bf16.mxu0 0
        %883 = vmatpush1.bf16.xpose.msra.mxu0 0
        %884 = vmatprep.subr.bf16.mxu0 0
        %885 = vmatpush1.bf16.xpose.msra.mxu0 0
        %886 = vmatprep.subr.bf16.mxu0 0
        %887 = vmatpush1.bf16.xpose.msra.mxu0 0
        %888 = vmatprep.subr.bf16.mxu0 0
        %889 = vmatpush1.bf16.xpose.msra.mxu0 0
        %890 = vmatprep.subr.bf16.mxu0 0
        %891 = vmatpush1.bf16.xpose.msra.mxu0 0
        %892 = vmatprep.subr.bf16.mxu0 0
        %893 = vmatpush1.bf16.xpose.msra.mxu0 0
        %894 = vmatprep.subr.bf16.mxu0 0
        %895 = vmatpush1.bf16.xpose.msra.mxu0 0
        %896 = vmatprep.subr.bf16.mxu0 0
        %897 = vmatpush1.bf16.xpose.msra.mxu0 0
        %898 = vmatprep.subr.bf16.mxu0 0
        %899 = vmatpush1.bf16.xpose.msra.mxu0 0
        %900 = vmatprep.subr.bf16.mxu0 0
        %901 = vmatpush1.bf16.xpose.msra.mxu0 0
        %902 = vmatprep.subr.bf16.mxu0 0
        %903 = vmatpush1.bf16.xpose.msra.mxu0 0
        %904 = vmatprep.subr.bf16.mxu0 0
        %905 = vmatpush1.bf16.xpose.msra.mxu0 0
        %906 = vmatprep.mubr.bf16.mxu0 0
        %907 = vmatmul.mubr.bf16.gmra.mrb[0].mxu0 %v869
        %v908 = vpop.f32.mrb[0].mxu0
        %v909 = vadd.f32 0.0, %v908
        %v910 = vpop.f32.mrb[0].mxu0
        %v911 = vpop.f32.mrb[0].mxu0
        %v912 = vadd.f32 0.0, %v911
        %v913 = vpop.f32.mrb[0].mxu0
        %914 = vdwg.mxu0
        %916 = vrot.lane.b32.xlu0 %v762, 64
        %v917 = vpop.permute.xlu0 %916
        %v919 = vsel %vm767, %v762, 0
        %v922 = vsel %vm767, %v917, 0
        %924 = vmatprep.subr.bf16.mxu0 0
        %925 = vmatpush1.bf16.xpose.msra.mxu0 %v922
        %926 = vmatprep.subr.bf16.mxu0 0
        %927 = vmatpush1.bf16.xpose.msra.mxu0 0
        %928 = vmatprep.subr.bf16.mxu0 0
        %929 = vmatpush1.bf16.xpose.msra.mxu0 0
        %930 = vmatprep.subr.bf16.mxu0 0
        %931 = vmatpush1.bf16.xpose.msra.mxu0 0
        %932 = vmatprep.subr.bf16.mxu0 0
        %933 = vmatpush1.bf16.xpose.msra.mxu0 0
        %934 = vmatprep.subr.bf16.mxu0 0
        %935 = vmatpush1.bf16.xpose.msra.mxu0 0
        %936 = vmatprep.subr.bf16.mxu0 0
        %937 = vmatpush1.bf16.xpose.msra.mxu0 0
        %938 = vmatprep.subr.bf16.mxu0 0
        %939 = vmatpush1.bf16.xpose.msra.mxu0 0
        %940 = vmatprep.subr.bf16.mxu0 0
        %941 = vmatpush1.bf16.xpose.msra.mxu0 0
        %942 = vmatprep.subr.bf16.mxu0 0
        %943 = vmatpush1.bf16.xpose.msra.mxu0 0
        %944 = vmatprep.subr.bf16.mxu0 0
        %945 = vmatpush1.bf16.xpose.msra.mxu0 0
        %946 = vmatprep.subr.bf16.mxu0 0
        %947 = vmatpush1.bf16.xpose.msra.mxu0 0
        %948 = vmatprep.subr.bf16.mxu0 0
        %949 = vmatpush1.bf16.xpose.msra.mxu0 0
        %950 = vmatprep.subr.bf16.mxu0 0
        %951 = vmatpush1.bf16.xpose.msra.mxu0 0
        %952 = vmatprep.subr.bf16.mxu0 0
        %953 = vmatpush1.bf16.xpose.msra.mxu0 0
        %954 = vmatprep.subr.bf16.mxu0 0
        %955 = vmatpush1.bf16.xpose.msra.mxu0 0
        %956 = vmatprep.mubr.bf16.mxu0 0
        %957 = vmatmul.mubr.bf16.gmra.mrb[0].mxu0 %v919
        %v958 = vpop.f32.mrb[0].mxu0
        %v959 = vadd.f32 0.0, %v958
        %v960 = vpop.f32.mrb[0].mxu0
        %v961 = vpop.f32.mrb[0].mxu0
        %v962 = vadd.f32 0.0, %v961
        %v963 = vpop.f32.mrb[0].mxu0
        %964 = vdwg.mxu0
        %v965 = vsel %vm767, %v809, -inf
        %966 = vmax.xlane.f32.xlu0 %v965
        %v967 = vpop.xlane.xlu0 %966
        %v968 = vsel %vm767, %v812, -inf
        %969 = vmax.xlane.f32.xlu0 %v968
        %v970 = vpop.xlane.xlu0 %969
        %v971 = vsel %vm767, %v859, -inf
        %972 = vmax.xlane.f32.xlu0 %v971
        %v973 = vpop.xlane.xlu0 %972
        %v974 = vsel %vm767, %v862, -inf
        %975 = vmax.xlane.f32.xlu0 %v974
        %v976 = vpop.xlane.xlu0 %975
        %v977 = vsel %vm767, %v909, -inf
        %978 = vmax.xlane.f32.xlu0 %v977
        %v979 = vpop.xlane.xlu0 %978
        %v980 = vsel %vm767, %v912, -inf
        %981 = vmax.xlane.f32.xlu0 %v980
        %v982 = vpop.xlane.xlu0 %981
        %v983 = vsel %vm767, %v959, -inf
        %984 = vmax.xlane.f32.xlu0 %v983
        %v985 = vpop.xlane.xlu0 %984
        %v986 = vsel %vm767, %v962, -inf
        %987 = vmax.xlane.f32.xlu0 %v986
        %v988 = vpop.xlane.xlu0 %987
        %v989 = vsub.f32 %v809, %v967
        %v990 = vsub.f32 %v812, %v970
        %v991 = vsub.f32 %v859, %v973
        %v992 = vsub.f32 %v862, %v976
        %v993 = vsub.f32 %v909, %v979
        %v994 = vsub.f32 %v912, %v982
        %v995 = vsub.f32 %v959, %v985
        %v996 = vsub.f32 %v962, %v988
        %v997 = vmul.f32 %v989, 1.442695
        %v998 = vpow.pop %v997
        %v999 = vmul.f32 %v990, 1.442695
        %v1000 = vpow.pop %v999
        %v1001 = vmul.f32 %v991, 1.442695
        %v1002 = vpow.pop %v1001
        %v1003 = vmul.f32 %v992, 1.442695
        %v1004 = vpow.pop %v1003
        %v1005 = vmul.f32 %v993, 1.442695
        %v1006 = vpow.pop %v1005
        %v1007 = vmul.f32 %v994, 1.442695
        %v1008 = vpow.pop %v1007
        %v1009 = vmul.f32 %v995, 1.442695
        %v1010 = vpow.pop %v1009
        %v1011 = vmul.f32 %v996, 1.442695
        %v1012 = vpow.pop %v1011
        %v1013 = vsel %vm767, %v998, 0.0
        %1014 = vadd.xlane.f32.xlu0 %v1013
        %v1015 = vpop.xlane.xlu0 %1014
        %v1016 = vsel %vm767, %v1000, 0.0
        %1017 = vadd.xlane.f32.xlu0 %v1016
        %v1018 = vpop.xlane.xlu0 %1017
        %v1019 = vsel %vm767, %v1002, 0.0
        %1020 = vadd.xlane.f32.xlu0 %v1019
        %v1021 = vpop.xlane.xlu0 %1020
        %v1022 = vsel %vm767, %v1004, 0.0
        %1023 = vadd.xlane.f32.xlu0 %v1022
        %v1024 = vpop.xlane.xlu0 %1023
        %v1025 = vsel %vm767, %v1006, 0.0
        %1026 = vadd.xlane.f32.xlu0 %v1025
        %v1027 = vpop.xlane.xlu0 %1026
        %v1028 = vsel %vm767, %v1008, 0.0
        %1029 = vadd.xlane.f32.xlu0 %v1028
        %v1030 = vpop.xlane.xlu0 %1029
        %v1031 = vsel %vm767, %v1010, 0.0
        %1032 = vadd.xlane.f32.xlu0 %v1031
        %v1033 = vpop.xlane.xlu0 %1032
        %v1034 = vsel %vm767, %v1012, 0.0
        %1035 = vadd.xlane.f32.xlu0 %v1034
        %v1036 = vpop.xlane.xlu0 %1035
        %v1037 = vrcp.pop %v1015
        %v1038 = vrcp.pop %v1018
        %v1039 = vrcp.pop %v1021
        %v1040 = vrcp.pop %v1024
        %v1041 = vrcp.pop %v1027
        %v1042 = vrcp.pop %v1030
        %v1043 = vrcp.pop %v1033
        %v1044 = vrcp.pop %v1036
        %v1045 = vmul.f32 %v998, %v1037
        %v1046 = vmul.f32 %v1000, %v1038
        %v1047 = vmul.f32 %v1002, %v1039
        %v1048 = vmul.f32 %v1004, %v1040
        %v1049 = vmul.f32 %v1006, %v1041
        %v1050 = vmul.f32 %v1008, %v1042
        %v1051 = vmul.f32 %v1010, %v1043
        %v1052 = vmul.f32 %v1012, %v1044
        %v1053 = vpack.c.bf16 %v1046, %v1045
        %v1054 = vpack.c.bf16 %v1048, %v1047
        %v1055 = vpack.c.bf16 %v1050, %v1049
        %v1056 = vpack.c.bf16 %v1052, %v1051
        %v1058 = vsel %vm767, %v1053, 0
        %1060 = vmatprep.subr.bf16.mxu0 0
        %1061 = vmatpush1.bf16.msra.mxu0 %v757
        %1062 = vmatprep.subr.bf16.mxu0 0
        %1063 = vmatpush1.bf16.msra.mxu0 0
        %1064 = vmatprep.subr.bf16.mxu0 0
        %1065 = vmatpush1.bf16.msra.mxu0 0
        %1066 = vmatprep.subr.bf16.mxu0 0
        %1067 = vmatpush1.bf16.msra.mxu0 0
        %1068 = vmatprep.subr.bf16.mxu0 0
        %1069 = vmatpush1.bf16.msra.mxu0 0
        %1070 = vmatprep.subr.bf16.mxu0 0
        %1071 = vmatpush1.bf16.msra.mxu0 0
        %1072 = vmatprep.subr.bf16.mxu0 0
        %1073 = vmatpush1.bf16.msra.mxu0 0
        %1074 = vmatprep.subr.bf16.mxu0 0
        %1075 = vmatpush1.bf16.msra.mxu0 0
        %1076 = vmatprep.subr.bf16.mxu0 0
        %1077 = vmatpush1.bf16.msra.mxu0 0
        %1078 = vmatprep.subr.bf16.mxu0 0
        %1079 = vmatpush1.bf16.msra.mxu0 0
        %1080 = vmatprep.subr.bf16.mxu0 0
        %1081 = vmatpush1.bf16.msra.mxu0 0
        %1082 = vmatprep.subr.bf16.mxu0 0
        %1083 = vmatpush1.bf16.msra.mxu0 0
        %1084 = vmatprep.subr.bf16.mxu0 0
        %1085 = vmatpush1.bf16.msra.mxu0 0
        %1086 = vmatprep.subr.bf16.mxu0 0
        %1087 = vmatpush1.bf16.msra.mxu0 0
        %1088 = vmatprep.subr.bf16.mxu0 0
        %1089 = vmatpush1.bf16.msra.mxu0 0
        %1090 = vmatprep.subr.bf16.mxu0 0
        %1091 = vmatpush1.bf16.msra.mxu0 0
        %1092 = vmatprep.mubr.bf16.mxu0 0
        %1093 = vmatmul.mubr.bf16.gmra.mrb[0].mxu0 %v1058
        %v1094 = vpop.f32.mrb[0].mxu0
        %v1095 = vadd.f32 0.0, %v1094
        %v1096 = vpop.f32.mrb[0].mxu0
        %v1097 = vpop.f32.mrb[0].mxu0
        %v1098 = vadd.f32 0.0, %v1097
        %v1099 = vpop.f32.mrb[0].mxu0
        %1100 = vdwg.mxu0
        %v1102 = vsel %vm767, %v1054, 0
        %1104 = vmatprep.subr.bf16.mxu0 0
        %1105 = vmatpush1.bf16.msra.mxu0 %v759
        %1106 = vmatprep.subr.bf16.mxu0 0
        %1107 = vmatpush1.bf16.msra.mxu0 0
        %1108 = vmatprep.subr.bf16.mxu0 0
        %1109 = vmatpush1.bf16.msra.mxu0 0
        %1110 = vmatprep.subr.bf16.mxu0 0
        %1111 = vmatpush1.bf16.msra.mxu0 0
        %1112 = vmatprep.subr.bf16.mxu0 0
        %1113 = vmatpush1.bf16.msra.mxu0 0
        %1114 = vmatprep.subr.bf16.mxu0 0
        %1115 = vmatpush1.bf16.msra.mxu0 0
        %1116 = vmatprep.subr.bf16.mxu0 0
        %1117 = vmatpush1.bf16.msra.mxu0 0
        %1118 = vmatprep.subr.bf16.mxu0 0
        %1119 = vmatpush1.bf16.msra.mxu0 0
        %1120 = vmatprep.subr.bf16.mxu0 0
        %1121 = vmatpush1.bf16.msra.mxu0 0
        %1122 = vmatprep.subr.bf16.mxu0 0
        %1123 = vmatpush1.bf16.msra.mxu0 0
        %1124 = vmatprep.subr.bf16.mxu0 0
        %1125 = vmatpush1.bf16.msra.mxu0 0
        %1126 = vmatprep.subr.bf16.mxu0 0
        %1127 = vmatpush1.bf16.msra.mxu0 0
        %1128 = vmatprep.subr.bf16.mxu0 0
        %1129 = vmatpush1.bf16.msra.mxu0 0
        %1130 = vmatprep.subr.bf16.mxu0 0
        %1131 = vmatpush1.bf16.msra.mxu0 0
        %1132 = vmatprep.subr.bf16.mxu0 0
        %1133 = vmatpush1.bf16.msra.mxu0 0
        %1134 = vmatprep.subr.bf16.mxu0 0
        %1135 = vmatpush1.bf16.msra.mxu0 0
        %1136 = vmatprep.mubr.bf16.mxu0 0
        %1137 = vmatmul.mubr.bf16.gmra.mrb[0].mxu0 %v1102
        %v1138 = vpop.f32.mrb[0].mxu0
        %v1139 = vadd.f32 0.0, %v1138
        %v1140 = vpop.f32.mrb[0].mxu0
        %v1141 = vpop.f32.mrb[0].mxu0
        %v1142 = vadd.f32 0.0, %v1141
        %v1143 = vpop.f32.mrb[0].mxu0
        %1144 = vdwg.mxu0
        %v1146 = vsel %vm767, %v1055, 0
        %1148 = vmatprep.subr.bf16.mxu0 0
        %1149 = vmatpush1.bf16.msra.mxu0 %v761
        %1150 = vmatprep.subr.bf16.mxu0 0
        %1151 = vmatpush1.bf16.msra.mxu0 0
        %1152 = vmatprep.subr.bf16.mxu0 0
        %1153 = vmatpush1.bf16.msra.mxu0 0
        %1154 = vmatprep.subr.bf16.mxu0 0
        %1155 = vmatpush1.bf16.msra.mxu0 0
        %1156 = vmatprep.subr.bf16.mxu0 0
        %1157 = vmatpush1.bf16.msra.mxu0 0
        %1158 = vmatprep.subr.bf16.mxu0 0
        %1159 = vmatpush1.bf16.msra.mxu0 0
        %1160 = vmatprep.subr.bf16.mxu0 0
        %1161 = vmatpush1.bf16.msra.mxu0 0
        %1162 = vmatprep.subr.bf16.mxu0 0
        %1163 = vmatpush1.bf16.msra.mxu0 0
        %1164 = vmatprep.subr.bf16.mxu0 0
        %1165 = vmatpush1.bf16.msra.mxu0 0
        %1166 = vmatprep.subr.bf16.mxu0 0
        %1167 = vmatpush1.bf16.msra.mxu0 0
        %1168 = vmatprep.subr.bf16.mxu0 0
        %1169 = vmatpush1.bf16.msra.mxu0 0
        %1170 = vmatprep.subr.bf16.mxu0 0
        %1171 = vmatpush1.bf16.msra.mxu0 0
        %1172 = vmatprep.subr.bf16.mxu0 0
        %1173 = vmatpush1.bf16.msra.mxu0 0
        %1174 = vmatprep.subr.bf16.mxu0 0
        %1175 = vmatpush1.bf16.msra.mxu0 0
        %1176 = vmatprep.subr.bf16.mxu0 0
        %1177 = vmatpush1.bf16.msra.mxu0 0
        %1178 = vmatprep.subr.bf16.mxu0 0
        %1179 = vmatpush1.bf16.msra.mxu0 0
        %1180 = vmatprep.mubr.bf16.mxu0 0
        %1181 = vmatmul.mubr.bf16.gmra.mrb[0].mxu0 %v1146
        %v1182 = vpop.f32.mrb[0].mxu0
        %v1183 = vadd.f32 0.0, %v1182
        %v1184 = vpop.f32.mrb[0].mxu0
        %v1185 = vpop.f32.mrb[0].mxu0
        %v1186 = vadd.f32 0.0, %v1185
        %v1187 = vpop.f32.mrb[0].mxu0
        %1188 = vdwg.mxu0
        %v1190 = vsel %vm767, %v1056, 0
        %1192 = vmatprep.subr.bf16.mxu0 0
        %1193 = vmatpush1.bf16.msra.mxu0 %v763
        %1194 = vmatprep.subr.bf16.mxu0 0
        %1195 = vmatpush1.bf16.msra.mxu0 0
        %1196 = vmatprep.subr.bf16.mxu0 0
        %1197 = vmatpush1.bf16.msra.mxu0 0
        %1198 = vmatprep.subr.bf16.mxu0 0
        %1199 = vmatpush1.bf16.msra.mxu0 0
        %1200 = vmatprep.subr.bf16.mxu0 0
        %1201 = vmatpush1.bf16.msra.mxu0 0
        %1202 = vmatprep.subr.bf16.mxu0 0
        %1203 = vmatpush1.bf16.msra.mxu0 0
        %1204 = vmatprep.subr.bf16.mxu0 0
        %1205 = vmatpush1.bf16.msra.mxu0 0
        %1206 = vmatprep.subr.bf16.mxu0 0
        %1207 = vmatpush1.bf16.msra.mxu0 0
        %1208 = vmatprep.subr.bf16.mxu0 0
        %1209 = vmatpush1.bf16.msra.mxu0 0
        %1210 = vmatprep.subr.bf16.mxu0 0
        %1211 = vmatpush1.bf16.msra.mxu0 0
        %1212 = vmatprep.subr.bf16.mxu0 0
        %1213 = vmatpush1.bf16.msra.mxu0 0
        %1214 = vmatprep.subr.bf16.mxu0 0
        %1215 = vmatpush1.bf16.msra.mxu0 0
        %1216 = vmatprep.subr.bf16.mxu0 0
        %1217 = vmatpush1.bf16.msra.mxu0 0
        %1218 = vmatprep.subr.bf16.mxu0 0
        %1219 = vmatpush1.bf16.msra.mxu0 0
        %1220 = vmatprep.subr.bf16.mxu0 0
        %1221 = vmatpush1.bf16.msra.mxu0 0
        %1222 = vmatprep.subr.bf16.mxu0 0
        %1223 = vmatpush1.bf16.msra.mxu0 0
        %1224 = vmatprep.mubr.bf16.mxu0 0
        %1225 = vmatmul.mubr.bf16.gmra.mrb[0].mxu0 %v1190
        %v1226 = vpop.f32.mrb[0].mxu0
        %v1227 = vadd.f32 0.0, %v1226
        %v1228 = vpop.f32.mrb[0].mxu0
        %v1229 = vpop.f32.mrb[0].mxu0
        %v1230 = vadd.f32 0.0, %v1229
        %v1231 = vpop.f32.mrb[0].mxu0
        %1232 = vdwg.mxu0
        %1233 = vst.msk [vmem:[#allocation3] sm:$0xff] %vm767, %v1095
        %1234 = vst.msk [vmem:[#allocation3 + $0x8] sm:$0xff] %vm767, %v1098
        %1235 = vst.msk [vmem:[#allocation3 + $0x10] sm:$0xff] %vm767, %v1139
        %1236 = vst.msk [vmem:[#allocation3 + $0x18] sm:$0xff] %vm767, %v1142
        %1237 = vst.msk [vmem:[#allocation3 + $0x20] sm:$0xff] %vm767, %v1183
        %1238 = vst.msk [vmem:[#allocation3 + $0x28] sm:$0xff] %vm767, %v1186
        %1239 = vst.msk [vmem:[#allocation3 + $0x30] sm:$0xff] %vm767, %v1227
        %1240 = vst.msk [vmem:[#allocation3 + $0x38] sm:$0xff] %vm767, %v1230
        %1241 = vrot.lane.b32.xlu0 %v756, 112
        %v1242 = vpop.permute.xlu0 %1241
        %1243 = vrot.lane.b32.xlu0 %v756, 48
        %v1244 = vpop.permute.xlu0 %1243
        %v1246 = vsel %vm767, %v1242, 0
        %v1249 = vsel %vm767, %v1244, 0
        %1251 = vmatprep.subr.bf16.mxu0 0
        %1252 = vmatpush1.bf16.xpose.msra.mxu0 %v1249
        %1253 = vmatprep.subr.bf16.mxu0 0
        %1254 = vmatpush1.bf16.xpose.msra.mxu0 0
        %1255 = vmatprep.subr.bf16.mxu0 0
        %1256 = vmatpush1.bf16.xpose.msra.mxu0 0
        %1257 = vmatprep.subr.bf16.mxu0 0
        %1258 = vmatpush1.bf16.xpose.msra.mxu0 0
        %1259 = vmatprep.subr.bf16.mxu0 0
        %1260 = vmatpush1.bf16.xpose.msra.mxu0 0
        %1261 = vmatprep.subr.bf16.mxu0 0
        %1262 = vmatpush1.bf16.xpose.msra.mxu0 0
        %1263 = vmatprep.subr.bf16.mxu0 0
        %1264 = vmatpush1.bf16.xpose.msra.mxu0 0
        %1265 = vmatprep.subr.bf16.mxu0 0
        %1266 = vmatpush1.bf16.xpose.msra.mxu0 0
        %1267 = vmatprep.subr.bf16.mxu0 0
        %1268 = vmatpush1.bf16.xpose.msra.mxu0 0
        %1269 = vmatprep.subr.bf16.mxu0 0
        %1270 = vmatpush1.bf16.xpose.msra.mxu0 0
        %1271 = vmatprep.subr.bf16.mxu0 0
        %1272 = vmatpush1.bf16.xpose.msra.mxu0 0
        %1273 = vmatprep.subr.bf16.mxu0 0
        %1274 = vmatpush1.bf16.xpose.msra.mxu0 0
        %1275 = vmatprep.subr.bf16.mxu0 0
        %1276 = vmatpush1.bf16.xpose.msra.mxu0 0
        %1277 = vmatprep.subr.bf16.mxu0 0
        %1278 = vmatpush1.bf16.xpose.msra.mxu0 0
        %1279 = vmatprep.subr.bf16.mxu0 0
        %1280 = vmatpush1.bf16.xpose.msra.mxu0 0
        %1281 = vmatprep.subr.bf16.mxu0 0
        %1282 = vmatpush1.bf16.xpose.msra.mxu0 0
        %1283 = vmatprep.mubr.bf16.mxu0 0
        %1284 = vmatmul.mubr.bf16.gmra.mrb[0].mxu0 %v1246
        %v1285 = vpop.f32.mrb[0].mxu0
        %v1286 = vadd.f32 0.0, %v1285
        %v1287 = vpop.f32.mrb[0].mxu0
        %v1288 = vpop.f32.mrb[0].mxu0
        %v1289 = vadd.f32 0.0, %v1288
        %v1290 = vpop.f32.mrb[0].mxu0
        %1291 = vdwg.mxu0
        %1292 = vrot.lane.b32.xlu0 %v758, 112
        %v1293 = vpop.permute.xlu0 %1292
        %1294 = vrot.lane.b32.xlu0 %v758, 48
        %v1295 = vpop.permute.xlu0 %1294
        %v1297 = vsel %vm767, %v1293, 0
        %v1300 = vsel %vm767, %v1295, 0
        %1302 = vmatprep.subr.bf16.mxu0 0
        %1303 = vmatpush1.bf16.xpose.msra.mxu0 %v1300
        %1304 = vmatprep.subr.bf16.mxu0 0
        %1305 = vmatpush1.bf16.xpose.msra.mxu0 0
        %1306 = vmatprep.subr.bf16.mxu0 0
        %1307 = vmatpush1.bf16.xpose.msra.mxu0 0
        %1308 = vmatprep.subr.bf16.mxu0 0
        %1309 = vmatpush1.bf16.xpose.msra.mxu0 0
        %1310 = vmatprep.subr.bf16.mxu0 0
        %1311 = vmatpush1.bf16.xpose.msra.mxu0 0
        %1312 = vmatprep.subr.bf16.mxu0 0
        %1313 = vmatpush1.bf16.xpose.msra.mxu0 0
        %1314 = vmatprep.subr.bf16.mxu0 0
        %1315 = vmatpush1.bf16.xpose.msra.mxu0 0
        %1316 = vmatprep.subr.bf16.mxu0 0
        %1317 = vmatpush1.bf16.xpose.msra.mxu0 0
        %1318 = vmatprep.subr.bf16.mxu0 0
        %1319 = vmatpush1.bf16.xpose.msra.mxu0 0
        %1320 = vmatprep.subr.bf16.mxu0 0
        %1321 = vmatpush1.bf16.xpose.msra.mxu0 0
        %1322 = vmatprep.subr.bf16.mxu0 0
        %1323 = vmatpush1.bf16.xpose.msra.mxu0 0
        %1324 = vmatprep.subr.bf16.mxu0 0
        %1325 = vmatpush1.bf16.xpose.msra.mxu0 0
        %1326 = vmatprep.subr.bf16.mxu0 0
        %1327 = vmatpush1.bf16.xpose.msra.mxu0 0
        %1328 = vmatprep.subr.bf16.mxu0 0
        %1329 = vmatpush1.bf16.xpose.msra.mxu0 0
        %1330 = vmatprep.subr.bf16.mxu0 0
        %1331 = vmatpush1.bf16.xpose.msra.mxu0 0
        %1332 = vmatprep.subr.bf16.mxu0 0
        %1333 = vmatpush1.bf16.xpose.msra.mxu0 0
        %1334 = vmatprep.mubr.bf16.mxu0 0
        %1335 = vmatmul.mubr.bf16.gmra.mrb[0].mxu0 %v1297
        %v1336 = vpop.f32.mrb[0].mxu0
        %v1337 = vadd.f32 0.0, %v1336
        %v1338 = vpop.f32.mrb[0].mxu0
        %v1339 = vpop.f32.mrb[0].mxu0
        %v1340 = vadd.f32 0.0, %v1339
        %v1341 = vpop.f32.mrb[0].mxu0
        %1342 = vdwg.mxu0
        %1343 = vrot.lane.b32.xlu0 %v760, 112
        %v1344 = vpop.permute.xlu0 %1343
        %1345 = vrot.lane.b32.xlu0 %v760, 48
        %v1346 = vpop.permute.xlu0 %1345
        %v1348 = vsel %vm767, %v1344, 0
        %v1351 = vsel %vm767, %v1346, 0
        %1353 = vmatprep.subr.bf16.mxu0 0
        %1354 = vmatpush1.bf16.xpose.msra.mxu0 %v1351
        %1355 = vmatprep.subr.bf16.mxu0 0
        %1356 = vmatpush1.bf16.xpose.msra.mxu0 0
        %1357 = vmatprep.subr.bf16.mxu0 0
        %1358 = vmatpush1.bf16.xpose.msra.mxu0 0
        %1359 = vmatprep.subr.bf16.mxu0 0
        %1360 = vmatpush1.bf16.xpose.msra.mxu0 0
        %1361 = vmatprep.subr.bf16.mxu0 0
        %1362 = vmatpush1.bf16.xpose.msra.mxu0 0
        %1363 = vmatprep.subr.bf16.mxu0 0
        %1364 = vmatpush1.bf16.xpose.msra.mxu0 0
        %1365 = vmatprep.subr.bf16.mxu0 0
        %1366 = vmatpush1.bf16.xpose.msra.mxu0 0
        %1367 = vmatprep.subr.bf16.mxu0 0
        %1368 = vmatpush1.bf16.xpose.msra.mxu0 0
        %1369 = vmatprep.subr.bf16.mxu0 0
        %1370 = vmatpush1.bf16.xpose.msra.mxu0 0
        %1371 = vmatprep.subr.bf16.mxu0 0
        %1372 = vmatpush1.bf16.xpose.msra.mxu0 0
        %1373 = vmatprep.subr.bf16.mxu0 0
        %1374 = vmatpush1.bf16.xpose.msra.mxu0 0
        %1375 = vmatprep.subr.bf16.mxu0 0
        %1376 = vmatpush1.bf16.xpose.msra.mxu0 0
        %1377 = vmatprep.subr.bf16.mxu0 0
        %1378 = vmatpush1.bf16.xpose.msra.mxu0 0
        %1379 = vmatprep.subr.bf16.mxu0 0
        %1380 = vmatpush1.bf16.xpose.msra.mxu0 0
        %1381 = vmatprep.subr.bf16.mxu0 0
        %1382 = vmatpush1.bf16.xpose.msra.mxu0 0
        %1383 = vmatprep.subr.bf16.mxu0 0
        %1384 = vmatpush1.bf16.xpose.msra.mxu0 0
        %1385 = vmatprep.mubr.bf16.mxu0 0
        %1386 = vmatmul.mubr.bf16.gmra.mrb[0].mxu0 %v1348
        %v1387 = vpop.f32.mrb[0].mxu0
        %v1388 = vadd.f32 0.0, %v1387
        %v1389 = vpop.f32.mrb[0].mxu0
        %v1390 = vpop.f32.mrb[0].mxu0
        %v1391 = vadd.f32 0.0, %v1390
        %v1392 = vpop.f32.mrb[0].mxu0
        %1393 = vdwg.mxu0
        %1394 = vrot.lane.b32.xlu0 %v762, 112
        %v1395 = vpop.permute.xlu0 %1394
        %1396 = vrot.lane.b32.xlu0 %v762, 48
        %v1397 = vpop.permute.xlu0 %1396
        %v1399 = vsel %vm767, %v1395, 0
        %v1402 = vsel %vm767, %v1397, 0
        %1404 = vmatprep.subr.bf16.mxu0 0
        %1405 = vmatpush1.bf16.xpose.msra.mxu0 %v1402
        %1406 = vmatprep.subr.bf16.mxu0 0
        %1407 = vmatpush1.bf16.xpose.msra.mxu0 0
        %1408 = vmatprep.subr.bf16.mxu0 0
        %1409 = vmatpush1.bf16.xpose.msra.mxu0 0
        %1410 = vmatprep.subr.bf16.mxu0 0
        %1411 = vmatpush1.bf16.xpose.msra.mxu0 0
        %1412 = vmatprep.subr.bf16.mxu0 0
        %1413 = vmatpush1.bf16.xpose.msra.mxu0 0
        %1414 = vmatprep.subr.bf16.mxu0 0
        %1415 = vmatpush1.bf16.xpose.msra.mxu0 0
        %1416 = vmatprep.subr.bf16.mxu0 0
        %1417 = vmatpush1.bf16.xpose.msra.mxu0 0
        %1418 = vmatprep.subr.bf16.mxu0 0
        %1419 = vmatpush1.bf16.xpose.msra.mxu0 0
        %1420 = vmatprep.subr.bf16.mxu0 0
        %1421 = vmatpush1.bf16.xpose.msra.mxu0 0
        %1422 = vmatprep.subr.bf16.mxu0 0
        %1423 = vmatpush1.bf16.xpose.msra.mxu0 0
        %1424 = vmatprep.subr.bf16.mxu0 0
        %1425 = vmatpush1.bf16.xpose.msra.mxu0 0
        %1426 = vmatprep.subr.bf16.mxu0 0
        %1427 = vmatpush1.bf16.xpose.msra.mxu0 0
        %1428 = vmatprep.subr.bf16.mxu0 0
        %1429 = vmatpush1.bf16.xpose.msra.mxu0 0
        %1430 = vmatprep.subr.bf16.mxu0 0
        %1431 = vmatpush1.bf16.xpose.msra.mxu0 0
        %1432 = vmatprep.subr.bf16.mxu0 0
        %1433 = vmatpush1.bf16.xpose.msra.mxu0 0
        %1434 = vmatprep.subr.bf16.mxu0 0
        %1435 = vmatpush1.bf16.xpose.msra.mxu0 0
        %1436 = vmatprep.mubr.bf16.mxu0 0
        %1437 = vmatmul.mubr.bf16.gmra.mrb[0].mxu0 %v1399
        %v1438 = vpop.f32.mrb[0].mxu0
        %v1439 = vadd.f32 0.0, %v1438
        %v1440 = vpop.f32.mrb[0].mxu0
        %v1441 = vpop.f32.mrb[0].mxu0
        %v1442 = vadd.f32 0.0, %v1441
        %v1443 = vpop.f32.mrb[0].mxu0
        %1444 = vdwg.mxu0
        %v1445 = vsel %vm767, %v1286, -inf
        %1446 = vmax.xlane.f32.xlu0 %v1445
        %v1447 = vpop.xlane.xlu0 %1446
        %v1448 = vsel %vm767, %v1289, -inf
        %1449 = vmax.xlane.f32.xlu0 %v1448
        %v1450 = vpop.xlane.xlu0 %1449
        %v1451 = vsel %vm767, %v1337, -inf
        %1452 = vmax.xlane.f32.xlu0 %v1451
        %v1453 = vpop.xlane.xlu0 %1452
        %v1454 = vsel %vm767, %v1340, -inf
        %1455 = vmax.xlane.f32.xlu0 %v1454
        %v1456 = vpop.xlane.xlu0 %1455
        %v1457 = vsel %vm767, %v1388, -inf
        %1458 = vmax.xlane.f32.xlu0 %v1457
        %v1459 = vpop.xlane.xlu0 %1458
        %v1460 = vsel %vm767, %v1391, -inf
        %1461 = vmax.xlane.f32.xlu0 %v1460
        %v1462 = vpop.xlane.xlu0 %1461
        %v1463 = vsel %vm767, %v1439, -inf
        %1464 = vmax.xlane.f32.xlu0 %v1463
        %v1465 = vpop.xlane.xlu0 %1464
        %v1466 = vsel %vm767, %v1442, -inf
        %1467 = vmax.xlane.f32.xlu0 %v1466
        %v1468 = vpop.xlane.xlu0 %1467
        %v1469 = vsub.f32 %v1286, %v1447
        %v1470 = vsub.f32 %v1289, %v1450
        %v1471 = vsub.f32 %v1337, %v1453
        %v1472 = vsub.f32 %v1340, %v1456
        %v1473 = vsub.f32 %v1388, %v1459
        %v1474 = vsub.f32 %v1391, %v1462
        %v1475 = vsub.f32 %v1439, %v1465
        %v1476 = vsub.f32 %v1442, %v1468
        %v1477 = vmul.f32 %v1469, 1.442695
        %v1478 = vpow.pop %v1477
        %v1479 = vmul.f32 %v1470, 1.442695
        %v1480 = vpow.pop %v1479
        %v1481 = vmul.f32 %v1471, 1.442695
        %v1482 = vpow.pop %v1481
        %v1483 = vmul.f32 %v1472, 1.442695
        %v1484 = vpow.pop %v1483
        %v1485 = vmul.f32 %v1473, 1.442695
        %v1486 = vpow.pop %v1485
        %v1487 = vmul.f32 %v1474, 1.442695
        %v1488 = vpow.pop %v1487
        %v1489 = vmul.f32 %v1475, 1.442695
        %v1490 = vpow.pop %v1489
        %v1491 = vmul.f32 %v1476, 1.442695
        %v1492 = vpow.pop %v1491
        %v1493 = vsel %vm767, %v1478, 0.0
        %1494 = vadd.xlane.f32.xlu0 %v1493
        %v1495 = vpop.xlane.xlu0 %1494
        %v1496 = vsel %vm767, %v1480, 0.0
        %1497 = vadd.xlane.f32.xlu0 %v1496
        %v1498 = vpop.xlane.xlu0 %1497
        %v1499 = vsel %vm767, %v1482, 0.0
        %1500 = vadd.xlane.f32.xlu0 %v1499
        %v1501 = vpop.xlane.xlu0 %1500
        %v1502 = vsel %vm767, %v1484, 0.0
        %1503 = vadd.xlane.f32.xlu0 %v1502
        %v1504 = vpop.xlane.xlu0 %1503
        %v1505 = vsel %vm767, %v1486, 0.0
        %1506 = vadd.xlane.f32.xlu0 %v1505
        %v1507 = vpop.xlane.xlu0 %1506
        %v1508 = vsel %vm767, %v1488, 0.0
        %1509 = vadd.xlane.f32.xlu0 %v1508
        %v1510 = vpop.xlane.xlu0 %1509
        %v1511 = vsel %vm767, %v1490, 0.0
        %1512 = vadd.xlane.f32.xlu0 %v1511
        %v1513 = vpop.xlane.xlu0 %1512
        %v1514 = vsel %vm767, %v1492, 0.0
        %1515 = vadd.xlane.f32.xlu0 %v1514
        %v1516 = vpop.xlane.xlu0 %1515
        %v1517 = vrcp.pop %v1495
        %v1518 = vrcp.pop %v1498
        %v1519 = vrcp.pop %v1501
        %v1520 = vrcp.pop %v1504
        %v1521 = vrcp.pop %v1507
        %v1522 = vrcp.pop %v1510
        %v1523 = vrcp.pop %v1513
        %v1524 = vrcp.pop %v1516
        %v1525 = vmul.f32 %v1478, %v1517
        %v1526 = vmul.f32 %v1480, %v1518
        %v1527 = vmul.f32 %v1482, %v1519
        %v1528 = vmul.f32 %v1484, %v1520
        %v1529 = vmul.f32 %v1486, %v1521
        %v1530 = vmul.f32 %v1488, %v1522
        %v1531 = vmul.f32 %v1490, %v1523
        %v1532 = vmul.f32 %v1492, %v1524
        %v1533 = vpack.c.bf16 %v1526, %v1525
        %v1534 = vpack.c.bf16 %v1528, %v1527
        %v1535 = vpack.c.bf16 %v1530, %v1529
        %v1536 = vpack.c.bf16 %v1532, %v1531
        %1538 = vrot.lane.b32.xlu0 %v757, 112
        %v1539 = vpop.permute.xlu0 %1538
        %v1542 = vsel %vm767, %v1533, 0
        %1544 = vmatprep.subr.bf16.mxu0 0
        %1545 = vmatpush1.bf16.msra.mxu0 %v1539
        %1546 = vmatprep.subr.bf16.mxu0 0
        %1547 = vmatpush1.bf16.msra.mxu0 0
        %1548 = vmatprep.subr.bf16.mxu0 0
        %1549 = vmatpush1.bf16.msra.mxu0 0
        %1550 = vmatprep.subr.bf16.mxu0 0
        %1551 = vmatpush1.bf16.msra.mxu0 0
        %1552 = vmatprep.subr.bf16.mxu0 0
        %1553 = vmatpush1.bf16.msra.mxu0 0
        %1554 = vmatprep.subr.bf16.mxu0 0
        %1555 = vmatpush1.bf16.msra.mxu0 0
        %1556 = vmatprep.subr.bf16.mxu0 0
        %1557 = vmatpush1.bf16.msra.mxu0 0
        %1558 = vmatprep.subr.bf16.mxu0 0
        %1559 = vmatpush1.bf16.msra.mxu0 0
        %1560 = vmatprep.subr.bf16.mxu0 0
        %1561 = vmatpush1.bf16.msra.mxu0 0
        %1562 = vmatprep.subr.bf16.mxu0 0
        %1563 = vmatpush1.bf16.msra.mxu0 0
        %1564 = vmatprep.subr.bf16.mxu0 0
        %1565 = vmatpush1.bf16.msra.mxu0 0
        %1566 = vmatprep.subr.bf16.mxu0 0
        %1567 = vmatpush1.bf16.msra.mxu0 0
        %1568 = vmatprep.subr.bf16.mxu0 0
        %1569 = vmatpush1.bf16.msra.mxu0 0
        %1570 = vmatprep.subr.bf16.mxu0 0
        %1571 = vmatpush1.bf16.msra.mxu0 0
        %1572 = vmatprep.subr.bf16.mxu0 0
        %1573 = vmatpush1.bf16.msra.mxu0 0
        %1574 = vmatprep.subr.bf16.mxu0 0
        %1575 = vmatpush1.bf16.msra.mxu0 0
        %1576 = vmatprep.mubr.bf16.mxu0 0
        %1577 = vmatmul.mubr.bf16.gmra.mrb[0].mxu0 %v1542
        %v1578 = vpop.f32.mrb[0].mxu0
        %v1579 = vadd.f32 0.0, %v1578
        %v1580 = vpop.f32.mrb[0].mxu0
        %v1581 = vpop.f32.mrb[0].mxu0
        %v1582 = vadd.f32 0.0, %v1581
        %v1583 = vpop.f32.mrb[0].mxu0
        %1584 = vdwg.mxu0
        %1586 = vrot.lane.b32.xlu0 %v759, 112
        %v1587 = vpop.permute.xlu0 %1586
        %v1590 = vsel %vm767, %v1534, 0
        %1592 = vmatprep.subr.bf16.mxu0 0
        %1593 = vmatpush1.bf16.msra.mxu0 %v1587
        %1594 = vmatprep.subr.bf16.mxu0 0
        %1595 = vmatpush1.bf16.msra.mxu0 0
        %1596 = vmatprep.subr.bf16.mxu0 0
        %1597 = vmatpush1.bf16.msra.mxu0 0
        %1598 = vmatprep.subr.bf16.mxu0 0
        %1599 = vmatpush1.bf16.msra.mxu0 0
        %1600 = vmatprep.subr.bf16.mxu0 0
        %1601 = vmatpush1.bf16.msra.mxu0 0
        %1602 = vmatprep.subr.bf16.mxu0 0
        %1603 = vmatpush1.bf16.msra.mxu0 0
        %1604 = vmatprep.subr.bf16.mxu0 0
        %1605 = vmatpush1.bf16.msra.mxu0 0
        %1606 = vmatprep.subr.bf16.mxu0 0
        %1607 = vmatpush1.bf16.msra.mxu0 0
        %1608 = vmatprep.subr.bf16.mxu0 0
        %1609 = vmatpush1.bf16.msra.mxu0 0
        %1610 = vmatprep.subr.bf16.mxu0 0
        %1611 = vmatpush1.bf16.msra.mxu0 0
        %1612 = vmatprep.subr.bf16.mxu0 0
        %1613 = vmatpush1.bf16.msra.mxu0 0
        %1614 = vmatprep.subr.bf16.mxu0 0
        %1615 = vmatpush1.bf16.msra.mxu0 0
        %1616 = vmatprep.subr.bf16.mxu0 0
        %1617 = vmatpush1.bf16.msra.mxu0 0
        %1618 = vmatprep.subr.bf16.mxu0 0
        %1619 = vmatpush1.bf16.msra.mxu0 0
        %1620 = vmatprep.subr.bf16.mxu0 0
        %1621 = vmatpush1.bf16.msra.mxu0 0
        %1622 = vmatprep.subr.bf16.mxu0 0
        %1623 = vmatpush1.bf16.msra.mxu0 0
        %1624 = vmatprep.mubr.bf16.mxu0 0
        %1625 = vmatmul.mubr.bf16.gmra.mrb[0].mxu0 %v1590
        %v1626 = vpop.f32.mrb[0].mxu0
        %v1627 = vadd.f32 0.0, %v1626
        %v1628 = vpop.f32.mrb[0].mxu0
        %v1629 = vpop.f32.mrb[0].mxu0
        %v1630 = vadd.f32 0.0, %v1629
        %v1631 = vpop.f32.mrb[0].mxu0
        %1632 = vdwg.mxu0
        %1634 = vrot.lane.b32.xlu0 %v761, 112
        %v1635 = vpop.permute.xlu0 %1634
        %v1638 = vsel %vm767, %v1535, 0
        %1640 = vmatprep.subr.bf16.mxu0 0
        %1641 = vmatpush1.bf16.msra.mxu0 %v1635
        %1642 = vmatprep.subr.bf16.mxu0 0
        %1643 = vmatpush1.bf16.msra.mxu0 0
        %1644 = vmatprep.subr.bf16.mxu0 0
        %1645 = vmatpush1.bf16.msra.mxu0 0
        %1646 = vmatprep.subr.bf16.mxu0 0
        %1647 = vmatpush1.bf16.msra.mxu0 0
        %1648 = vmatprep.subr.bf16.mxu0 0
        %1649 = vmatpush1.bf16.msra.mxu0 0
        %1650 = vmatprep.subr.bf16.mxu0 0
        %1651 = vmatpush1.bf16.msra.mxu0 0
        %1652 = vmatprep.subr.bf16.mxu0 0
        %1653 = vmatpush1.bf16.msra.mxu0 0
        %1654 = vmatprep.subr.bf16.mxu0 0
        %1655 = vmatpush1.bf16.msra.mxu0 0
        %1656 = vmatprep.subr.bf16.mxu0 0
        %1657 = vmatpush1.bf16.msra.mxu0 0
        %1658 = vmatprep.subr.bf16.mxu0 0
        %1659 = vmatpush1.bf16.msra.mxu0 0
        %1660 = vmatprep.subr.bf16.mxu0 0
        %1661 = vmatpush1.bf16.msra.mxu0 0
        %1662 = vmatprep.subr.bf16.mxu0 0
        %1663 = vmatpush1.bf16.msra.mxu0 0
        %1664 = vmatprep.subr.bf16.mxu0 0
        %1665 = vmatpush1.bf16.msra.mxu0 0
        %1666 = vmatprep.subr.bf16.mxu0 0
        %1667 = vmatpush1.bf16.msra.mxu0 0
        %1668 = vmatprep.subr.bf16.mxu0 0
        %1669 = vmatpush1.bf16.msra.mxu0 0
        %1670 = vmatprep.subr.bf16.mxu0 0
        %1671 = vmatpush1.bf16.msra.mxu0 0
        %1672 = vmatprep.mubr.bf16.mxu0 0
        %1673 = vmatmul.mubr.bf16.gmra.mrb[0].mxu0 %v1638
        %v1674 = vpop.f32.mrb[0].mxu0
        %v1675 = vadd.f32 0.0, %v1674
        %v1676 = vpop.f32.mrb[0].mxu0
        %v1677 = vpop.f32.mrb[0].mxu0
        %v1678 = vadd.f32 0.0, %v1677
        %v1679 = vpop.f32.mrb[0].mxu0
        %1680 = vdwg.mxu0
        %1682 = vrot.lane.b32.xlu0 %v763, 112
        %v1683 = vpop.permute.xlu0 %1682
        %v1686 = vsel %vm767, %v1536, 0
        %1688 = vmatprep.subr.bf16.mxu0 0
        %1689 = vmatpush1.bf16.msra.mxu0 %v1683
        %1690 = vmatprep.subr.bf16.mxu0 0
        %1691 = vmatpush1.bf16.msra.mxu0 0
        %1692 = vmatprep.subr.bf16.mxu0 0
        %1693 = vmatpush1.bf16.msra.mxu0 0
        %1694 = vmatprep.subr.bf16.mxu0 0
        %1695 = vmatpush1.bf16.msra.mxu0 0
        %1696 = vmatprep.subr.bf16.mxu0 0
        %1697 = vmatpush1.bf16.msra.mxu0 0
        %1698 = vmatprep.subr.bf16.mxu0 0
        %1699 = vmatpush1.bf16.msra.mxu0 0
        %1700 = vmatprep.subr.bf16.mxu0 0
        %1701 = vmatpush1.bf16.msra.mxu0 0
        %1702 = vmatprep.subr.bf16.mxu0 0
        %1703 = vmatpush1.bf16.msra.mxu0 0
        %1704 = vmatprep.subr.bf16.mxu0 0
        %1705 = vmatpush1.bf16.msra.mxu0 0
        %1706 = vmatprep.subr.bf16.mxu0 0
        %1707 = vmatpush1.bf16.msra.mxu0 0
        %1708 = vmatprep.subr.bf16.mxu0 0
        %1709 = vmatpush1.bf16.msra.mxu0 0
        %1710 = vmatprep.subr.bf16.mxu0 0
        %1711 = vmatpush1.bf16.msra.mxu0 0
        %1712 = vmatprep.subr.bf16.mxu0 0
        %1713 = vmatpush1.bf16.msra.mxu0 0
        %1714 = vmatprep.subr.bf16.mxu0 0
        %1715 = vmatpush1.bf16.msra.mxu0 0
        %1716 = vmatprep.subr.bf16.mxu0 0
        %1717 = vmatpush1.bf16.msra.mxu0 0
        %1718 = vmatprep.subr.bf16.mxu0 0
        %1719 = vmatpush1.bf16.msra.mxu0 0
        %1720 = vmatprep.mubr.bf16.mxu0 0
        %1721 = vmatmul.mubr.bf16.gmra.mrb[0].mxu0 %v1686
        %v1722 = vpop.f32.mrb[0].mxu0
        %v1723 = vadd.f32 0.0, %v1722
        %v1724 = vpop.f32.mrb[0].mxu0
        %v1725 = vpop.f32.mrb[0].mxu0
        %v1726 = vadd.f32 0.0, %v1725
        %v1727 = vpop.f32.mrb[0].mxu0
        %1728 = vdwg.mxu0
        %1737 = vrot.lane.b32.xlu0 %v1579, 16
        %v1738 = vpop.permute.xlu0 %1737
        %1739 = vrot.lane.b32.xlu0 %v1582, 16
        %v1740 = vpop.permute.xlu0 %1739
        %1741 = vrot.lane.b32.xlu0 %v1627, 16
        %v1742 = vpop.permute.xlu0 %1741
        %1743 = vrot.lane.b32.xlu0 %v1630, 16
        %v1744 = vpop.permute.xlu0 %1743
        %1745 = vrot.lane.b32.xlu0 %v1675, 16
        %v1746 = vpop.permute.xlu0 %1745
        %1747 = vrot.lane.b32.xlu0 %v1678, 16
        %v1748 = vpop.permute.xlu0 %1747
        %1749 = vrot.lane.b32.xlu0 %v1723, 16
        %v1750 = vpop.permute.xlu0 %1749
        %1751 = vrot.lane.b32.xlu0 %v1726, 16
        %v1752 = vpop.permute.xlu0 %1751
        %vm1761 = vcmask 261248
        %1762 = vst.msk [vmem:[#allocation3] sm:$0xff] %vm1761, %v1738
        %1763 = vst.msk [vmem:[#allocation3 + $0x8] sm:$0xff] %vm1761, %v1740
        %1764 = vst.msk [vmem:[#allocation3 + $0x10] sm:$0xff] %vm1761, %v1742
        %1765 = vst.msk [vmem:[#allocation3 + $0x18] sm:$0xff] %vm1761, %v1744
        %1766 = vst.msk [vmem:[#allocation3 + $0x20] sm:$0xff] %vm1761, %v1746
        %1767 = vst.msk [vmem:[#allocation3 + $0x28] sm:$0xff] %vm1761, %v1748
        %1768 = vst.msk [vmem:[#allocation3 + $0x30] sm:$0xff] %vm1761, %v1750
        %1769 = vst.msk [vmem:[#allocation3 + $0x38] sm:$0xff] %vm1761, %v1752
        %1770 = vrot.lane.b32.xlu0 %v756, 96
        %v1771 = vpop.permute.xlu0 %1770
        %1772 = vrot.lane.b32.xlu0 %v756, 32
        %v1773 = vpop.permute.xlu0 %1772
        %v1775 = vsel %vm767, %v1771, 0
        %v1778 = vsel %vm767, %v1773, 0
        %1780 = vmatprep.subr.bf16.mxu0 0
        %1781 = vmatpush1.bf16.xpose.msra.mxu0 %v1778
        %1782 = vmatprep.subr.bf16.mxu0 0
        %1783 = vmatpush1.bf16.xpose.msra.mxu0 0
        %1784 = vmatprep.subr.bf16.mxu0 0
        %1785 = vmatpush1.bf16.xpose.msra.mxu0 0
        %1786 = vmatprep.subr.bf16.mxu0 0
        %1787 = vmatpush1.bf16.xpose.msra.mxu0 0
        %1788 = vmatprep.subr.bf16.mxu0 0
        %1789 = vmatpush1.bf16.xpose.msra.mxu0 0
        %1790 = vmatprep.subr.bf16.mxu0 0
        %1791 = vmatpush1.bf16.xpose.msra.mxu0 0
        %1792 = vmatprep.subr.bf16.mxu0 0
        %1793 = vmatpush1.bf16.xpose.msra.mxu0 0
        %1794 = vmatprep.subr.bf16.mxu0 0
        %1795 = vmatpush1.bf16.xpose.msra.mxu0 0
        %1796 = vmatprep.subr.bf16.mxu0 0
        %1797 = vmatpush1.bf16.xpose.msra.mxu0 0
        %1798 = vmatprep.subr.bf16.mxu0 0
        %1799 = vmatpush1.bf16.xpose.msra.mxu0 0
        %1800 = vmatprep.subr.bf16.mxu0 0
        %1801 = vmatpush1.bf16.xpose.msra.mxu0 0
        %1802 = vmatprep.subr.bf16.mxu0 0
        %1803 = vmatpush1.bf16.xpose.msra.mxu0 0
        %1804 = vmatprep.subr.bf16.mxu0 0
        %1805 = vmatpush1.bf16.xpose.msra.mxu0 0
        %1806 = vmatprep.subr.bf16.mxu0 0
        %1807 = vmatpush1.bf16.xpose.msra.mxu0 0
        %1808 = vmatprep.subr.bf16.mxu0 0
        %1809 = vmatpush1.bf16.xpose.msra.mxu0 0
        %1810 = vmatprep.subr.bf16.mxu0 0
        %1811 = vmatpush1.bf16.xpose.msra.mxu0 0
        %1812 = vmatprep.mubr.bf16.mxu0 0
        %1813 = vmatmul.mubr.bf16.gmra.mrb[0].mxu0 %v1775
        %v1814 = vpop.f32.mrb[0].mxu0
        %v1815 = vadd.f32 0.0, %v1814
        %v1816 = vpop.f32.mrb[0].mxu0
        %v1817 = vpop.f32.mrb[0].mxu0
        %v1818 = vadd.f32 0.0, %v1817
        %v1819 = vpop.f32.mrb[0].mxu0
        %1820 = vdwg.mxu0
        %1821 = vrot.lane.b32.xlu0 %v758, 96
        %v1822 = vpop.permute.xlu0 %1821
        %1823 = vrot.lane.b32.xlu0 %v758, 32
        %v1824 = vpop.permute.xlu0 %1823
        %v1826 = vsel %vm767, %v1822, 0
        %v1829 = vsel %vm767, %v1824, 0
        %1831 = vmatprep.subr.bf16.mxu0 0
        %1832 = vmatpush1.bf16.xpose.msra.mxu0 %v1829
        %1833 = vmatprep.subr.bf16.mxu0 0
        %1834 = vmatpush1.bf16.xpose.msra.mxu0 0
        %1835 = vmatprep.subr.bf16.mxu0 0
        %1836 = vmatpush1.bf16.xpose.msra.mxu0 0
        %1837 = vmatprep.subr.bf16.mxu0 0
        %1838 = vmatpush1.bf16.xpose.msra.mxu0 0
        %1839 = vmatprep.subr.bf16.mxu0 0
        %1840 = vmatpush1.bf16.xpose.msra.mxu0 0
        %1841 = vmatprep.subr.bf16.mxu0 0
        %1842 = vmatpush1.bf16.xpose.msra.mxu0 0
        %1843 = vmatprep.subr.bf16.mxu0 0
        %1844 = vmatpush1.bf16.xpose.msra.mxu0 0
        %1845 = vmatprep.subr.bf16.mxu0 0
        %1846 = vmatpush1.bf16.xpose.msra.mxu0 0
        %1847 = vmatprep.subr.bf16.mxu0 0
        %1848 = vmatpush1.bf16.xpose.msra.mxu0 0
        %1849 = vmatprep.subr.bf16.mxu0 0
        %1850 = vmatpush1.bf16.xpose.msra.mxu0 0
        %1851 = vmatprep.subr.bf16.mxu0 0
        %1852 = vmatpush1.bf16.xpose.msra.mxu0 0
        %1853 = vmatprep.subr.bf16.mxu0 0
        %1854 = vmatpush1.bf16.xpose.msra.mxu0 0
        %1855 = vmatprep.subr.bf16.mxu0 0
        %1856 = vmatpush1.bf16.xpose.msra.mxu0 0
        %1857 = vmatprep.subr.bf16.mxu0 0
        %1858 = vmatpush1.bf16.xpose.msra.mxu0 0
        %1859 = vmatprep.subr.bf16.mxu0 0
        %1860 = vmatpush1.bf16.xpose.msra.mxu0 0
        %1861 = vmatprep.subr.bf16.mxu0 0
        %1862 = vmatpush1.bf16.xpose.msra.mxu0 0
        %1863 = vmatprep.mubr.bf16.mxu0 0
        %1864 = vmatmul.mubr.bf16.gmra.mrb[0].mxu0 %v1826
        %v1865 = vpop.f32.mrb[0].mxu0
        %v1866 = vadd.f32 0.0, %v1865
        %v1867 = vpop.f32.mrb[0].mxu0
        %v1868 = vpop.f32.mrb[0].mxu0
        %v1869 = vadd.f32 0.0, %v1868
        %v1870 = vpop.f32.mrb[0].mxu0
        %1871 = vdwg.mxu0
        %1872 = vrot.lane.b32.xlu0 %v760, 96
        %v1873 = vpop.permute.xlu0 %1872
        %1874 = vrot.lane.b32.xlu0 %v760, 32
        %v1875 = vpop.permute.xlu0 %1874
        %v1877 = vsel %vm767, %v1873, 0
        %v1880 = vsel %vm767, %v1875, 0
        %1882 = vmatprep.subr.bf16.mxu0 0
        %1883 = vmatpush1.bf16.xpose.msra.mxu0 %v1880
        %1884 = vmatprep.subr.bf16.mxu0 0
        %1885 = vmatpush1.bf16.xpose.msra.mxu0 0
        %1886 = vmatprep.subr.bf16.mxu0 0
        %1887 = vmatpush1.bf16.xpose.msra.mxu0 0
        %1888 = vmatprep.subr.bf16.mxu0 0
        %1889 = vmatpush1.bf16.xpose.msra.mxu0 0
        %1890 = vmatprep.subr.bf16.mxu0 0
        %1891 = vmatpush1.bf16.xpose.msra.mxu0 0
        %1892 = vmatprep.subr.bf16.mxu0 0
        %1893 = vmatpush1.bf16.xpose.msra.mxu0 0
        %1894 = vmatprep.subr.bf16.mxu0 0
        %1895 = vmatpush1.bf16.xpose.msra.mxu0 0
        %1896 = vmatprep.subr.bf16.mxu0 0
        %1897 = vmatpush1.bf16.xpose.msra.mxu0 0
        %1898 = vmatprep.subr.bf16.mxu0 0
        %1899 = vmatpush1.bf16.xpose.msra.mxu0 0
        %1900 = vmatprep.subr.bf16.mxu0 0
        %1901 = vmatpush1.bf16.xpose.msra.mxu0 0
        %1902 = vmatprep.subr.bf16.mxu0 0
        %1903 = vmatpush1.bf16.xpose.msra.mxu0 0
        %1904 = vmatprep.subr.bf16.mxu0 0
        %1905 = vmatpush1.bf16.xpose.msra.mxu0 0
        %1906 = vmatprep.subr.bf16.mxu0 0
        %1907 = vmatpush1.bf16.xpose.msra.mxu0 0
        %1908 = vmatprep.subr.bf16.mxu0 0
        %1909 = vmatpush1.bf16.xpose.msra.mxu0 0
        %1910 = vmatprep.subr.bf16.mxu0 0
        %1911 = vmatpush1.bf16.xpose.msra.mxu0 0
        %1912 = vmatprep.subr.bf16.mxu0 0
        %1913 = vmatpush1.bf16.xpose.msra.mxu0 0
        %1914 = vmatprep.mubr.bf16.mxu0 0
        %1915 = vmatmul.mubr.bf16.gmra.mrb[0].mxu0 %v1877
        %v1916 = vpop.f32.mrb[0].mxu0
        %v1917 = vadd.f32 0.0, %v1916
        %v1918 = vpop.f32.mrb[0].mxu0
        %v1919 = vpop.f32.mrb[0].mxu0
        %v1920 = vadd.f32 0.0, %v1919
        %v1921 = vpop.f32.mrb[0].mxu0
        %1922 = vdwg.mxu0
        %1923 = vrot.lane.b32.xlu0 %v762, 96
        %v1924 = vpop.permute.xlu0 %1923
        %1925 = vrot.lane.b32.xlu0 %v762, 32
        %v1926 = vpop.permute.xlu0 %1925
        %v1928 = vsel %vm767, %v1924, 0
        %v1931 = vsel %vm767, %v1926, 0
        %1933 = vmatprep.subr.bf16.mxu0 0
        %1934 = vmatpush1.bf16.xpose.msra.mxu0 %v1931
        %1935 = vmatprep.subr.bf16.mxu0 0
        %1936 = vmatpush1.bf16.xpose.msra.mxu0 0
        %1937 = vmatprep.subr.bf16.mxu0 0
        %1938 = vmatpush1.bf16.xpose.msra.mxu0 0
        %1939 = vmatprep.subr.bf16.mxu0 0
        %1940 = vmatpush1.bf16.xpose.msra.mxu0 0
        %1941 = vmatprep.subr.bf16.mxu0 0
        %1942 = vmatpush1.bf16.xpose.msra.mxu0 0
        %1943 = vmatprep.subr.bf16.mxu0 0
        %1944 = vmatpush1.bf16.xpose.msra.mxu0 0
        %1945 = vmatprep.subr.bf16.mxu0 0
        %1946 = vmatpush1.bf16.xpose.msra.mxu0 0
        %1947 = vmatprep.subr.bf16.mxu0 0
        %1948 = vmatpush1.bf16.xpose.msra.mxu0 0
        %1949 = vmatprep.subr.bf16.mxu0 0
        %1950 = vmatpush1.bf16.xpose.msra.mxu0 0
        %1951 = vmatprep.subr.bf16.mxu0 0
        %1952 = vmatpush1.bf16.xpose.msra.mxu0 0
        %1953 = vmatprep.subr.bf16.mxu0 0
        %1954 = vmatpush1.bf16.xpose.msra.mxu0 0
        %1955 = vmatprep.subr.bf16.mxu0 0
        %1956 = vmatpush1.bf16.xpose.msra.mxu0 0
        %1957 = vmatprep.subr.bf16.mxu0 0
        %1958 = vmatpush1.bf16.xpose.msra.mxu0 0
        %1959 = vmatprep.subr.bf16.mxu0 0
        %1960 = vmatpush1.bf16.xpose.msra.mxu0 0
        %1961 = vmatprep.subr.bf16.mxu0 0
        %1962 = vmatpush1.bf16.xpose.msra.mxu0 0
        %1963 = vmatprep.subr.bf16.mxu0 0
        %1964 = vmatpush1.bf16.xpose.msra.mxu0 0
        %1965 = vmatprep.mubr.bf16.mxu0 0
        %1966 = vmatmul.mubr.bf16.gmra.mrb[0].mxu0 %v1928
        %v1967 = vpop.f32.mrb[0].mxu0
        %v1968 = vadd.f32 0.0, %v1967
        %v1969 = vpop.f32.mrb[0].mxu0
        %v1970 = vpop.f32.mrb[0].mxu0
        %v1971 = vadd.f32 0.0, %v1970
        %v1972 = vpop.f32.mrb[0].mxu0
        %1973 = vdwg.mxu0
        %v1974 = vsel %vm767, %v1815, -inf
        %1975 = vmax.xlane.f32.xlu0 %v1974
        %v1976 = vpop.xlane.xlu0 %1975
        %v1977 = vsel %vm767, %v1818, -inf
        %1978 = vmax.xlane.f32.xlu0 %v1977
        %v1979 = vpop.xlane.xlu0 %1978
        %v1980 = vsel %vm767, %v1866, -inf
        %1981 = vmax.xlane.f32.xlu0 %v1980
        %v1982 = vpop.xlane.xlu0 %1981
        %v1983 = vsel %vm767, %v1869, -inf
        %1984 = vmax.xlane.f32.xlu0 %v1983
        %v1985 = vpop.xlane.xlu0 %1984
        %v1986 = vsel %vm767, %v1917, -inf
        %1987 = vmax.xlane.f32.xlu0 %v1986
        %v1988 = vpop.xlane.xlu0 %1987
        %v1989 = vsel %vm767, %v1920, -inf
        %1990 = vmax.xlane.f32.xlu0 %v1989
        %v1991 = vpop.xlane.xlu0 %1990
        %v1992 = vsel %vm767, %v1968, -inf
        %1993 = vmax.xlane.f32.xlu0 %v1992
        %v1994 = vpop.xlane.xlu0 %1993
        %v1995 = vsel %vm767, %v1971, -inf
        %1996 = vmax.xlane.f32.xlu0 %v1995
        %v1997 = vpop.xlane.xlu0 %1996
        %v1998 = vsub.f32 %v1815, %v1976
        %v1999 = vsub.f32 %v1818, %v1979
        %v2000 = vsub.f32 %v1866, %v1982
        %v2001 = vsub.f32 %v1869, %v1985
        %v2002 = vsub.f32 %v1917, %v1988
        %v2003 = vsub.f32 %v1920, %v1991
        %v2004 = vsub.f32 %v1968, %v1994
        %v2005 = vsub.f32 %v1971, %v1997
        %v2006 = vmul.f32 %v1998, 1.442695
        %v2007 = vpow.pop %v2006
        %v2008 = vmul.f32 %v1999, 1.442695
        %v2009 = vpow.pop %v2008
        %v2010 = vmul.f32 %v2000, 1.442695
        %v2011 = vpow.pop %v2010
        %v2012 = vmul.f32 %v2001, 1.442695
        %v2013 = vpow.pop %v2012
        %v2014 = vmul.f32 %v2002, 1.442695
        %v2015 = vpow.pop %v2014
        %v2016 = vmul.f32 %v2003, 1.442695
        %v2017 = vpow.pop %v2016
        %v2018 = vmul.f32 %v2004, 1.442695
        %v2019 = vpow.pop %v2018
        %v2020 = vmul.f32 %v2005, 1.442695
        %v2021 = vpow.pop %v2020
        %v2022 = vsel %vm767, %v2007, 0.0
        %2023 = vadd.xlane.f32.xlu0 %v2022
        %v2024 = vpop.xlane.xlu0 %2023
        %v2025 = vsel %vm767, %v2009, 0.0
        %2026 = vadd.xlane.f32.xlu0 %v2025
        %v2027 = vpop.xlane.xlu0 %2026
        %v2028 = vsel %vm767, %v2011, 0.0
        %2029 = vadd.xlane.f32.xlu0 %v2028
        %v2030 = vpop.xlane.xlu0 %2029
        %v2031 = vsel %vm767, %v2013, 0.0
        %2032 = vadd.xlane.f32.xlu0 %v2031
        %v2033 = vpop.xlane.xlu0 %2032
        %v2034 = vsel %vm767, %v2015, 0.0
        %2035 = vadd.xlane.f32.xlu0 %v2034
        %v2036 = vpop.xlane.xlu0 %2035
        %v2037 = vsel %vm767, %v2017, 0.0
        %2038 = vadd.xlane.f32.xlu0 %v2037
        %v2039 = vpop.xlane.xlu0 %2038
        %v2040 = vsel %vm767, %v2019, 0.0
        %2041 = vadd.xlane.f32.xlu0 %v2040
        %v2042 = vpop.xlane.xlu0 %2041
        %v2043 = vsel %vm767, %v2021, 0.0
        %2044 = vadd.xlane.f32.xlu0 %v2043
        %v2045 = vpop.xlane.xlu0 %2044
        %v2046 = vrcp.pop %v2024
        %v2047 = vrcp.pop %v2027
        %v2048 = vrcp.pop %v2030
        %v2049 = vrcp.pop %v2033
        %v2050 = vrcp.pop %v2036
        %v2051 = vrcp.pop %v2039
        %v2052 = vrcp.pop %v2042
        %v2053 = vrcp.pop %v2045
        %v2054 = vmul.f32 %v2007, %v2046
        %v2055 = vmul.f32 %v2009, %v2047
        %v2056 = vmul.f32 %v2011, %v2048
        %v2057 = vmul.f32 %v2013, %v2049
        %v2058 = vmul.f32 %v2015, %v2050
        %v2059 = vmul.f32 %v2017, %v2051
        %v2060 = vmul.f32 %v2019, %v2052
        %v2061 = vmul.f32 %v2021, %v2053
        %v2062 = vpack.c.bf16 %v2055, %v2054
        %v2063 = vpack.c.bf16 %v2057, %v2056
        %v2064 = vpack.c.bf16 %v2059, %v2058
        %v2065 = vpack.c.bf16 %v2061, %v2060
        %2066 = vrot.lane.b32.xlu0 %v757, 96
        %v2067 = vpop.permute.xlu0 %2066
        %v2070 = vsel %vm767, %v2062, 0
        %2072 = vmatprep.subr.bf16.mxu0 0
        %2073 = vmatpush1.bf16.msra.mxu0 %v2067
        %2074 = vmatprep.subr.bf16.mxu0 0
        %2075 = vmatpush1.bf16.msra.mxu0 0
        %2076 = vmatprep.subr.bf16.mxu0 0
        %2077 = vmatpush1.bf16.msra.mxu0 0
        %2078 = vmatprep.subr.bf16.mxu0 0
        %2079 = vmatpush1.bf16.msra.mxu0 0
        %2080 = vmatprep.subr.bf16.mxu0 0
        %2081 = vmatpush1.bf16.msra.mxu0 0
        %2082 = vmatprep.subr.bf16.mxu0 0
        %2083 = vmatpush1.bf16.msra.mxu0 0
        %2084 = vmatprep.subr.bf16.mxu0 0
        %2085 = vmatpush1.bf16.msra.mxu0 0
        %2086 = vmatprep.subr.bf16.mxu0 0
        %2087 = vmatpush1.bf16.msra.mxu0 0
        %2088 = vmatprep.subr.bf16.mxu0 0
        %2089 = vmatpush1.bf16.msra.mxu0 0
        %2090 = vmatprep.subr.bf16.mxu0 0
        %2091 = vmatpush1.bf16.msra.mxu0 0
        %2092 = vmatprep.subr.bf16.mxu0 0
        %2093 = vmatpush1.bf16.msra.mxu0 0
        %2094 = vmatprep.subr.bf16.mxu0 0
        %2095 = vmatpush1.bf16.msra.mxu0 0
        %2096 = vmatprep.subr.bf16.mxu0 0
        %2097 = vmatpush1.bf16.msra.mxu0 0
        %2098 = vmatprep.subr.bf16.mxu0 0
        %2099 = vmatpush1.bf16.msra.mxu0 0
        %2100 = vmatprep.subr.bf16.mxu0 0
        %2101 = vmatpush1.bf16.msra.mxu0 0
        %2102 = vmatprep.subr.bf16.mxu0 0
        %2103 = vmatpush1.bf16.msra.mxu0 0
        %2104 = vmatprep.mubr.bf16.mxu0 0
        %2105 = vmatmul.mubr.bf16.gmra.mrb[0].mxu0 %v2070
        %v2106 = vpop.f32.mrb[0].mxu0
        %v2107 = vadd.f32 0.0, %v2106
        %v2108 = vpop.f32.mrb[0].mxu0
        %v2109 = vpop.f32.mrb[0].mxu0
        %v2110 = vadd.f32 0.0, %v2109
        %v2111 = vpop.f32.mrb[0].mxu0
        %2112 = vdwg.mxu0
        %2113 = vrot.lane.b32.xlu0 %v759, 96
        %v2114 = vpop.permute.xlu0 %2113
        %v2117 = vsel %vm767, %v2063, 0
        %2119 = vmatprep.subr.bf16.mxu0 0
        %2120 = vmatpush1.bf16.msra.mxu0 %v2114
        %2121 = vmatprep.subr.bf16.mxu0 0
        %2122 = vmatpush1.bf16.msra.mxu0 0
        %2123 = vmatprep.subr.bf16.mxu0 0
        %2124 = vmatpush1.bf16.msra.mxu0 0
        %2125 = vmatprep.subr.bf16.mxu0 0
        %2126 = vmatpush1.bf16.msra.mxu0 0
        %2127 = vmatprep.subr.bf16.mxu0 0
        %2128 = vmatpush1.bf16.msra.mxu0 0
        %2129 = vmatprep.subr.bf16.mxu0 0
        %2130 = vmatpush1.bf16.msra.mxu0 0
        %2131 = vmatprep.subr.bf16.mxu0 0
        %2132 = vmatpush1.bf16.msra.mxu0 0
        %2133 = vmatprep.subr.bf16.mxu0 0
        %2134 = vmatpush1.bf16.msra.mxu0 0
        %2135 = vmatprep.subr.bf16.mxu0 0
        %2136 = vmatpush1.bf16.msra.mxu0 0
        %2137 = vmatprep.subr.bf16.mxu0 0
        %2138 = vmatpush1.bf16.msra.mxu0 0
        %2139 = vmatprep.subr.bf16.mxu0 0
        %2140 = vmatpush1.bf16.msra.mxu0 0
        %2141 = vmatprep.subr.bf16.mxu0 0
        %2142 = vmatpush1.bf16.msra.mxu0 0
        %2143 = vmatprep.subr.bf16.mxu0 0
        %2144 = vmatpush1.bf16.msra.mxu0 0
        %2145 = vmatprep.subr.bf16.mxu0 0
        %2146 = vmatpush1.bf16.msra.mxu0 0
        %2147 = vmatprep.subr.bf16.mxu0 0
        %2148 = vmatpush1.bf16.msra.mxu0 0
        %2149 = vmatprep.subr.bf16.mxu0 0
        %2150 = vmatpush1.bf16.msra.mxu0 0
        %2151 = vmatprep.mubr.bf16.mxu0 0
        %2152 = vmatmul.mubr.bf16.gmra.mrb[0].mxu0 %v2117
        %v2153 = vpop.f32.mrb[0].mxu0
        %v2154 = vadd.f32 0.0, %v2153
        %v2155 = vpop.f32.mrb[0].mxu0
        %v2156 = vpop.f32.mrb[0].mxu0
        %v2157 = vadd.f32 0.0, %v2156
        %v2158 = vpop.f32.mrb[0].mxu0
        %2159 = vdwg.mxu0
        %2160 = vrot.lane.b32.xlu0 %v761, 96
        %v2161 = vpop.permute.xlu0 %2160
        %v2164 = vsel %vm767, %v2064, 0
        %2166 = vmatprep.subr.bf16.mxu0 0
        %2167 = vmatpush1.bf16.msra.mxu0 %v2161
        %2168 = vmatprep.subr.bf16.mxu0 0
        %2169 = vmatpush1.bf16.msra.mxu0 0
        %2170 = vmatprep.subr.bf16.mxu0 0
        %2171 = vmatpush1.bf16.msra.mxu0 0
        %2172 = vmatprep.subr.bf16.mxu0 0
        %2173 = vmatpush1.bf16.msra.mxu0 0
        %2174 = vmatprep.subr.bf16.mxu0 0
        %2175 = vmatpush1.bf16.msra.mxu0 0
        %2176 = vmatprep.subr.bf16.mxu0 0
        %2177 = vmatpush1.bf16.msra.mxu0 0
        %2178 = vmatprep.subr.bf16.mxu0 0
        %2179 = vmatpush1.bf16.msra.mxu0 0
        %2180 = vmatprep.subr.bf16.mxu0 0
        %2181 = vmatpush1.bf16.msra.mxu0 0
        %2182 = vmatprep.subr.bf16.mxu0 0
        %2183 = vmatpush1.bf16.msra.mxu0 0
        %2184 = vmatprep.subr.bf16.mxu0 0
        %2185 = vmatpush1.bf16.msra.mxu0 0
        %2186 = vmatprep.subr.bf16.mxu0 0
        %2187 = vmatpush1.bf16.msra.mxu0 0
        %2188 = vmatprep.subr.bf16.mxu0 0
        %2189 = vmatpush1.bf16.msra.mxu0 0
        %2190 = vmatprep.subr.bf16.mxu0 0
        %2191 = vmatpush1.bf16.msra.mxu0 0
        %2192 = vmatprep.subr.bf16.mxu0 0
        %2193 = vmatpush1.bf16.msra.mxu0 0
        %2194 = vmatprep.subr.bf16.mxu0 0
        %2195 = vmatpush1.bf16.msra.mxu0 0
        %2196 = vmatprep.subr.bf16.mxu0 0
        %2197 = vmatpush1.bf16.msra.mxu0 0
        %2198 = vmatprep.mubr.bf16.mxu0 0
        %2199 = vmatmul.mubr.bf16.gmra.mrb[0].mxu0 %v2164
        %v2200 = vpop.f32.mrb[0].mxu0
        %v2201 = vadd.f32 0.0, %v2200
        %v2202 = vpop.f32.mrb[0].mxu0
        %v2203 = vpop.f32.mrb[0].mxu0
        %v2204 = vadd.f32 0.0, %v2203
        %v2205 = vpop.f32.mrb[0].mxu0
        %2206 = vdwg.mxu0
        %2207 = vrot.lane.b32.xlu0 %v763, 96
        %v2208 = vpop.permute.xlu0 %2207
        %v2211 = vsel %vm767, %v2065, 0
        %2213 = vmatprep.subr.bf16.mxu0 0
        %2214 = vmatpush1.bf16.msra.mxu0 %v2208
        %2215 = vmatprep.subr.bf16.mxu0 0
        %2216 = vmatpush1.bf16.msra.mxu0 0
        %2217 = vmatprep.subr.bf16.mxu0 0
        %2218 = vmatpush1.bf16.msra.mxu0 0
        %2219 = vmatprep.subr.bf16.mxu0 0
        %2220 = vmatpush1.bf16.msra.mxu0 0
        %2221 = vmatprep.subr.bf16.mxu0 0
        %2222 = vmatpush1.bf16.msra.mxu0 0
        %2223 = vmatprep.subr.bf16.mxu0 0
        %2224 = vmatpush1.bf16.msra.mxu0 0
        %2225 = vmatprep.subr.bf16.mxu0 0
        %2226 = vmatpush1.bf16.msra.mxu0 0
        %2227 = vmatprep.subr.bf16.mxu0 0
        %2228 = vmatpush1.bf16.msra.mxu0 0
        %2229 = vmatprep.subr.bf16.mxu0 0
        %2230 = vmatpush1.bf16.msra.mxu0 0
        %2231 = vmatprep.subr.bf16.mxu0 0
        %2232 = vmatpush1.bf16.msra.mxu0 0
        %2233 = vmatprep.subr.bf16.mxu0 0
        %2234 = vmatpush1.bf16.msra.mxu0 0
        %2235 = vmatprep.subr.bf16.mxu0 0
        %2236 = vmatpush1.bf16.msra.mxu0 0
        %2237 = vmatprep.subr.bf16.mxu0 0
        %2238 = vmatpush1.bf16.msra.mxu0 0
        %2239 = vmatprep.subr.bf16.mxu0 0
        %2240 = vmatpush1.bf16.msra.mxu0 0
        %2241 = vmatprep.subr.bf16.mxu0 0
        %2242 = vmatpush1.bf16.msra.mxu0 0
        %2243 = vmatprep.subr.bf16.mxu0 0
        %2244 = vmatpush1.bf16.msra.mxu0 0
        %2245 = vmatprep.mubr.bf16.mxu0 0
        %2246 = vmatmul.mubr.bf16.gmra.mrb[0].mxu0 %v2211
        %v2247 = vpop.f32.mrb[0].mxu0
        %v2248 = vadd.f32 0.0, %v2247
        %v2249 = vpop.f32.mrb[0].mxu0
        %v2250 = vpop.f32.mrb[0].mxu0
        %v2251 = vadd.f32 0.0, %v2250
        %v2252 = vpop.f32.mrb[0].mxu0
        %2253 = vdwg.mxu0
        %2262 = vrot.lane.b32.xlu0 %v2107, 32
        %v2263 = vpop.permute.xlu0 %2262
        %2264 = vrot.lane.b32.xlu0 %v2110, 32
        %v2265 = vpop.permute.xlu0 %2264
        %2266 = vrot.lane.b32.xlu0 %v2154, 32
        %v2267 = vpop.permute.xlu0 %2266
        %2268 = vrot.lane.b32.xlu0 %v2157, 32
        %v2269 = vpop.permute.xlu0 %2268
        %2270 = vrot.lane.b32.xlu0 %v2201, 32
        %v2271 = vpop.permute.xlu0 %2270
        %2272 = vrot.lane.b32.xlu0 %v2204, 32
        %v2273 = vpop.permute.xlu0 %2272
        %2274 = vrot.lane.b32.xlu0 %v2248, 32
        %v2275 = vpop.permute.xlu0 %2274
        %2276 = vrot.lane.b32.xlu0 %v2251, 32
        %v2277 = vpop.permute.xlu0 %2276
        %vm2286 = vcmask 392448
        %2287 = vst.msk [vmem:[#allocation3] sm:$0xff] %vm2286, %v2263
        %2288 = vst.msk [vmem:[#allocation3 + $0x8] sm:$0xff] %vm2286, %v2265
        %2289 = vst.msk [vmem:[#allocation3 + $0x10] sm:$0xff] %vm2286, %v2267
        %2290 = vst.msk [vmem:[#allocation3 + $0x18] sm:$0xff] %vm2286, %v2269
        %2291 = vst.msk [vmem:[#allocation3 + $0x20] sm:$0xff] %vm2286, %v2271
        %2292 = vst.msk [vmem:[#allocation3 + $0x28] sm:$0xff] %vm2286, %v2273
        %2293 = vst.msk [vmem:[#allocation3 + $0x30] sm:$0xff] %vm2286, %v2275
        %2294 = vst.msk [vmem:[#allocation3 + $0x38] sm:$0xff] %vm2286, %v2277
        %2295 = vrot.lane.b32.xlu0 %v756, 80
        %v2296 = vpop.permute.xlu0 %2295
        %2297 = vrot.lane.b32.xlu0 %v756, 16
        %v2298 = vpop.permute.xlu0 %2297
        %v2300 = vsel %vm767, %v2296, 0
        %v2303 = vsel %vm767, %v2298, 0
        %2305 = vmatprep.subr.bf16.mxu0 0
        %2306 = vmatpush1.bf16.xpose.msra.mxu0 %v2303
        %2307 = vmatprep.subr.bf16.mxu0 0
        %2308 = vmatpush1.bf16.xpose.msra.mxu0 0
        %2309 = vmatprep.subr.bf16.mxu0 0
        %2310 = vmatpush1.bf16.xpose.msra.mxu0 0
        %2311 = vmatprep.subr.bf16.mxu0 0
        %2312 = vmatpush1.bf16.xpose.msra.mxu0 0
        %2313 = vmatprep.subr.bf16.mxu0 0
        %2314 = vmatpush1.bf16.xpose.msra.mxu0 0
        %2315 = vmatprep.subr.bf16.mxu0 0
        %2316 = vmatpush1.bf16.xpose.msra.mxu0 0
        %2317 = vmatprep.subr.bf16.mxu0 0
        %2318 = vmatpush1.bf16.xpose.msra.mxu0 0
        %2319 = vmatprep.subr.bf16.mxu0 0
        %2320 = vmatpush1.bf16.xpose.msra.mxu0 0
        %2321 = vmatprep.subr.bf16.mxu0 0
        %2322 = vmatpush1.bf16.xpose.msra.mxu0 0
        %2323 = vmatprep.subr.bf16.mxu0 0
        %2324 = vmatpush1.bf16.xpose.msra.mxu0 0
        %2325 = vmatprep.subr.bf16.mxu0 0
        %2326 = vmatpush1.bf16.xpose.msra.mxu0 0
        %2327 = vmatprep.subr.bf16.mxu0 0
        %2328 = vmatpush1.bf16.xpose.msra.mxu0 0
        %2329 = vmatprep.subr.bf16.mxu0 0
        %2330 = vmatpush1.bf16.xpose.msra.mxu0 0
        %2331 = vmatprep.subr.bf16.mxu0 0
        %2332 = vmatpush1.bf16.xpose.msra.mxu0 0
        %2333 = vmatprep.subr.bf16.mxu0 0
        %2334 = vmatpush1.bf16.xpose.msra.mxu0 0
        %2335 = vmatprep.subr.bf16.mxu0 0
        %2336 = vmatpush1.bf16.xpose.msra.mxu0 0
        %2337 = vmatprep.mubr.bf16.mxu0 0
        %2338 = vmatmul.mubr.bf16.gmra.mrb[0].mxu0 %v2300
        %v2339 = vpop.f32.mrb[0].mxu0
        %v2340 = vadd.f32 0.0, %v2339
        %v2341 = vpop.f32.mrb[0].mxu0
        %v2342 = vpop.f32.mrb[0].mxu0
        %v2343 = vadd.f32 0.0, %v2342
        %v2344 = vpop.f32.mrb[0].mxu0
        %2345 = vdwg.mxu0
        %2346 = vrot.lane.b32.xlu0 %v758, 80
        %v2347 = vpop.permute.xlu0 %2346
        %2348 = vrot.lane.b32.xlu0 %v758, 16
        %v2349 = vpop.permute.xlu0 %2348
        %v2351 = vsel %vm767, %v2347, 0
        %v2354 = vsel %vm767, %v2349, 0
        %2356 = vmatprep.subr.bf16.mxu0 0
        %2357 = vmatpush1.bf16.xpose.msra.mxu0 %v2354
        %2358 = vmatprep.subr.bf16.mxu0 0
        %2359 = vmatpush1.bf16.xpose.msra.mxu0 0
        %2360 = vmatprep.subr.bf16.mxu0 0
        %2361 = vmatpush1.bf16.xpose.msra.mxu0 0
        %2362 = vmatprep.subr.bf16.mxu0 0
        %2363 = vmatpush1.bf16.xpose.msra.mxu0 0
        %2364 = vmatprep.subr.bf16.mxu0 0
        %2365 = vmatpush1.bf16.xpose.msra.mxu0 0
        %2366 = vmatprep.subr.bf16.mxu0 0
        %2367 = vmatpush1.bf16.xpose.msra.mxu0 0
        %2368 = vmatprep.subr.bf16.mxu0 0
        %2369 = vmatpush1.bf16.xpose.msra.mxu0 0
        %2370 = vmatprep.subr.bf16.mxu0 0
        %2371 = vmatpush1.bf16.xpose.msra.mxu0 0
        %2372 = vmatprep.subr.bf16.mxu0 0
        %2373 = vmatpush1.bf16.xpose.msra.mxu0 0
        %2374 = vmatprep.subr.bf16.mxu0 0
        %2375 = vmatpush1.bf16.xpose.msra.mxu0 0
        %2376 = vmatprep.subr.bf16.mxu0 0
        %2377 = vmatpush1.bf16.xpose.msra.mxu0 0
        %2378 = vmatprep.subr.bf16.mxu0 0
        %2379 = vmatpush1.bf16.xpose.msra.mxu0 0
        %2380 = vmatprep.subr.bf16.mxu0 0
        %2381 = vmatpush1.bf16.xpose.msra.mxu0 0
        %2382 = vmatprep.subr.bf16.mxu0 0
        %2383 = vmatpush1.bf16.xpose.msra.mxu0 0
        %2384 = vmatprep.subr.bf16.mxu0 0
        %2385 = vmatpush1.bf16.xpose.msra.mxu0 0
        %2386 = vmatprep.subr.bf16.mxu0 0
        %2387 = vmatpush1.bf16.xpose.msra.mxu0 0
        %2388 = vmatprep.mubr.bf16.mxu0 0
        %2389 = vmatmul.mubr.bf16.gmra.mrb[0].mxu0 %v2351
        %v2390 = vpop.f32.mrb[0].mxu0
        %v2391 = vadd.f32 0.0, %v2390
        %v2392 = vpop.f32.mrb[0].mxu0
        %v2393 = vpop.f32.mrb[0].mxu0
        %v2394 = vadd.f32 0.0, %v2393
        %v2395 = vpop.f32.mrb[0].mxu0
        %2396 = vdwg.mxu0
        %2397 = vrot.lane.b32.xlu0 %v760, 80
        %v2398 = vpop.permute.xlu0 %2397
        %2399 = vrot.lane.b32.xlu0 %v760, 16
        %v2400 = vpop.permute.xlu0 %2399
        %v2402 = vsel %vm767, %v2398, 0
        %v2405 = vsel %vm767, %v2400, 0
        %2407 = vmatprep.subr.bf16.mxu0 0
        %2408 = vmatpush1.bf16.xpose.msra.mxu0 %v2405
        %2409 = vmatprep.subr.bf16.mxu0 0
        %2410 = vmatpush1.bf16.xpose.msra.mxu0 0
        %2411 = vmatprep.subr.bf16.mxu0 0
        %2412 = vmatpush1.bf16.xpose.msra.mxu0 0
        %2413 = vmatprep.subr.bf16.mxu0 0
        %2414 = vmatpush1.bf16.xpose.msra.mxu0 0
        %2415 = vmatprep.subr.bf16.mxu0 0
        %2416 = vmatpush1.bf16.xpose.msra.mxu0 0
        %2417 = vmatprep.subr.bf16.mxu0 0
        %2418 = vmatpush1.bf16.xpose.msra.mxu0 0
        %2419 = vmatprep.subr.bf16.mxu0 0
        %2420 = vmatpush1.bf16.xpose.msra.mxu0 0
        %2421 = vmatprep.subr.bf16.mxu0 0
        %2422 = vmatpush1.bf16.xpose.msra.mxu0 0
        %2423 = vmatprep.subr.bf16.mxu0 0
        %2424 = vmatpush1.bf16.xpose.msra.mxu0 0
        %2425 = vmatprep.subr.bf16.mxu0 0
        %2426 = vmatpush1.bf16.xpose.msra.mxu0 0
        %2427 = vmatprep.subr.bf16.mxu0 0
        %2428 = vmatpush1.bf16.xpose.msra.mxu0 0
        %2429 = vmatprep.subr.bf16.mxu0 0
        %2430 = vmatpush1.bf16.xpose.msra.mxu0 0
        %2431 = vmatprep.subr.bf16.mxu0 0
        %2432 = vmatpush1.bf16.xpose.msra.mxu0 0
        %2433 = vmatprep.subr.bf16.mxu0 0
        %2434 = vmatpush1.bf16.xpose.msra.mxu0 0
        %2435 = vmatprep.subr.bf16.mxu0 0
        %2436 = vmatpush1.bf16.xpose.msra.mxu0 0
        %2437 = vmatprep.subr.bf16.mxu0 0
        %2438 = vmatpush1.bf16.xpose.msra.mxu0 0
        %2439 = vmatprep.mubr.bf16.mxu0 0
        %2440 = vmatmul.mubr.bf16.gmra.mrb[0].mxu0 %v2402
        %v2441 = vpop.f32.mrb[0].mxu0
        %v2442 = vadd.f32 0.0, %v2441
        %v2443 = vpop.f32.mrb[0].mxu0
        %v2444 = vpop.f32.mrb[0].mxu0
        %v2445 = vadd.f32 0.0, %v2444
        %v2446 = vpop.f32.mrb[0].mxu0
        %2447 = vdwg.mxu0
        %2448 = vrot.lane.b32.xlu0 %v762, 80
        %v2449 = vpop.permute.xlu0 %2448
        %2450 = vrot.lane.b32.xlu0 %v762, 16
        %v2451 = vpop.permute.xlu0 %2450
        %v2453 = vsel %vm767, %v2449, 0
        %v2456 = vsel %vm767, %v2451, 0
        %2458 = vmatprep.subr.bf16.mxu0 0
        %2459 = vmatpush1.bf16.xpose.msra.mxu0 %v2456
        %2460 = vmatprep.subr.bf16.mxu0 0
        %2461 = vmatpush1.bf16.xpose.msra.mxu0 0
        %2462 = vmatprep.subr.bf16.mxu0 0
        %2463 = vmatpush1.bf16.xpose.msra.mxu0 0
        %2464 = vmatprep.subr.bf16.mxu0 0
        %2465 = vmatpush1.bf16.xpose.msra.mxu0 0
        %2466 = vmatprep.subr.bf16.mxu0 0
        %2467 = vmatpush1.bf16.xpose.msra.mxu0 0
        %2468 = vmatprep.subr.bf16.mxu0 0
        %2469 = vmatpush1.bf16.xpose.msra.mxu0 0
        %2470 = vmatprep.subr.bf16.mxu0 0
        %2471 = vmatpush1.bf16.xpose.msra.mxu0 0
        %2472 = vmatprep.subr.bf16.mxu0 0
        %2473 = vmatpush1.bf16.xpose.msra.mxu0 0
        %2474 = vmatprep.subr.bf16.mxu0 0
        %2475 = vmatpush1.bf16.xpose.msra.mxu0 0
        %2476 = vmatprep.subr.bf16.mxu0 0
        %2477 = vmatpush1.bf16.xpose.msra.mxu0 0
        %2478 = vmatprep.subr.bf16.mxu0 0
        %2479 = vmatpush1.bf16.xpose.msra.mxu0 0
        %2480 = vmatprep.subr.bf16.mxu0 0
        %2481 = vmatpush1.bf16.xpose.msra.mxu0 0
        %2482 = vmatprep.subr.bf16.mxu0 0
        %2483 = vmatpush1.bf16.xpose.msra.mxu0 0
        %2484 = vmatprep.subr.bf16.mxu0 0
        %2485 = vmatpush1.bf16.xpose.msra.mxu0 0
        %2486 = vmatprep.subr.bf16.mxu0 0
        %2487 = vmatpush1.bf16.xpose.msra.mxu0 0
        %2488 = vmatprep.subr.bf16.mxu0 0
        %2489 = vmatpush1.bf16.xpose.msra.mxu0 0
        %2490 = vmatprep.mubr.bf16.mxu0 0
        %2491 = vmatmul.mubr.bf16.gmra.mrb[0].mxu0 %v2453
        %v2492 = vpop.f32.mrb[0].mxu0
        %v2493 = vadd.f32 0.0, %v2492
        %v2494 = vpop.f32.mrb[0].mxu0
        %v2495 = vpop.f32.mrb[0].mxu0
        %v2496 = vadd.f32 0.0, %v2495
        %v2497 = vpop.f32.mrb[0].mxu0
        %2498 = vdwg.mxu0
        %v2499 = vsel %vm767, %v2340, -inf
        %2500 = vmax.xlane.f32.xlu0 %v2499
        %v2501 = vpop.xlane.xlu0 %2500
        %v2502 = vsel %vm767, %v2343, -inf
        %2503 = vmax.xlane.f32.xlu0 %v2502
        %v2504 = vpop.xlane.xlu0 %2503
        %v2505 = vsel %vm767, %v2391, -inf
        %2506 = vmax.xlane.f32.xlu0 %v2505
        %v2507 = vpop.xlane.xlu0 %2506
        %v2508 = vsel %vm767, %v2394, -inf
        %2509 = vmax.xlane.f32.xlu0 %v2508
        %v2510 = vpop.xlane.xlu0 %2509
        %v2511 = vsel %vm767, %v2442, -inf
        %2512 = vmax.xlane.f32.xlu0 %v2511
        %v2513 = vpop.xlane.xlu0 %2512
        %v2514 = vsel %vm767, %v2445, -inf
        %2515 = vmax.xlane.f32.xlu0 %v2514
        %v2516 = vpop.xlane.xlu0 %2515
        %v2517 = vsel %vm767, %v2493, -inf
        %2518 = vmax.xlane.f32.xlu0 %v2517
        %v2519 = vpop.xlane.xlu0 %2518
        %v2520 = vsel %vm767, %v2496, -inf
        %2521 = vmax.xlane.f32.xlu0 %v2520
        %v2522 = vpop.xlane.xlu0 %2521
        %v2523 = vsub.f32 %v2340, %v2501
        %v2524 = vsub.f32 %v2343, %v2504
        %v2525 = vsub.f32 %v2391, %v2507
        %v2526 = vsub.f32 %v2394, %v2510
        %v2527 = vsub.f32 %v2442, %v2513
        %v2528 = vsub.f32 %v2445, %v2516
        %v2529 = vsub.f32 %v2493, %v2519
        %v2530 = vsub.f32 %v2496, %v2522
        %v2531 = vmul.f32 %v2523, 1.442695
        %v2532 = vpow.pop %v2531
        %v2533 = vmul.f32 %v2524, 1.442695
        %v2534 = vpow.pop %v2533
        %v2535 = vmul.f32 %v2525, 1.442695
        %v2536 = vpow.pop %v2535
        %v2537 = vmul.f32 %v2526, 1.442695
        %v2538 = vpow.pop %v2537
        %v2539 = vmul.f32 %v2527, 1.442695
        %v2540 = vpow.pop %v2539
        %v2541 = vmul.f32 %v2528, 1.442695
        %v2542 = vpow.pop %v2541
        %v2543 = vmul.f32 %v2529, 1.442695
        %v2544 = vpow.pop %v2543
        %v2545 = vmul.f32 %v2530, 1.442695
        %v2546 = vpow.pop %v2545
        %v2547 = vsel %vm767, %v2532, 0.0
        %2548 = vadd.xlane.f32.xlu0 %v2547
        %v2549 = vpop.xlane.xlu0 %2548
        %v2550 = vsel %vm767, %v2534, 0.0
        %2551 = vadd.xlane.f32.xlu0 %v2550
        %v2552 = vpop.xlane.xlu0 %2551
        %v2553 = vsel %vm767, %v2536, 0.0
        %2554 = vadd.xlane.f32.xlu0 %v2553
        %v2555 = vpop.xlane.xlu0 %2554
        %v2556 = vsel %vm767, %v2538, 0.0
        %2557 = vadd.xlane.f32.xlu0 %v2556
        %v2558 = vpop.xlane.xlu0 %2557
        %v2559 = vsel %vm767, %v2540, 0.0
        %2560 = vadd.xlane.f32.xlu0 %v2559
        %v2561 = vpop.xlane.xlu0 %2560
        %v2562 = vsel %vm767, %v2542, 0.0
        %2563 = vadd.xlane.f32.xlu0 %v2562
        %v2564 = vpop.xlane.xlu0 %2563
        %v2565 = vsel %vm767, %v2544, 0.0
        %2566 = vadd.xlane.f32.xlu0 %v2565
        %v2567 = vpop.xlane.xlu0 %2566
        %v2568 = vsel %vm767, %v2546, 0.0
        %2569 = vadd.xlane.f32.xlu0 %v2568
        %v2570 = vpop.xlane.xlu0 %2569
        %v2571 = vrcp.pop %v2549
        %v2572 = vrcp.pop %v2552
        %v2573 = vrcp.pop %v2555
        %v2574 = vrcp.pop %v2558
        %v2575 = vrcp.pop %v2561
        %v2576 = vrcp.pop %v2564
        %v2577 = vrcp.pop %v2567
        %v2578 = vrcp.pop %v2570
        %v2579 = vmul.f32 %v2532, %v2571
        %v2580 = vmul.f32 %v2534, %v2572
        %v2581 = vmul.f32 %v2536, %v2573
        %v2582 = vmul.f32 %v2538, %v2574
        %v2583 = vmul.f32 %v2540, %v2575
        %v2584 = vmul.f32 %v2542, %v2576
        %v2585 = vmul.f32 %v2544, %v2577
        %v2586 = vmul.f32 %v2546, %v2578
        %v2587 = vpack.c.bf16 %v2580, %v2579
        %v2588 = vpack.c.bf16 %v2582, %v2581
        %v2589 = vpack.c.bf16 %v2584, %v2583
        %v2590 = vpack.c.bf16 %v2586, %v2585
        %2591 = vrot.lane.b32.xlu0 %v757, 80
        %v2592 = vpop.permute.xlu0 %2591
        %v2595 = vsel %vm767, %v2587, 0
        %2597 = vmatprep.subr.bf16.mxu0 0
        %2598 = vmatpush1.bf16.msra.mxu0 %v2592
        %2599 = vmatprep.subr.bf16.mxu0 0
        %2600 = vmatpush1.bf16.msra.mxu0 0
        %2601 = vmatprep.subr.bf16.mxu0 0
        %2602 = vmatpush1.bf16.msra.mxu0 0
        %2603 = vmatprep.subr.bf16.mxu0 0
        %2604 = vmatpush1.bf16.msra.mxu0 0
        %2605 = vmatprep.subr.bf16.mxu0 0
        %2606 = vmatpush1.bf16.msra.mxu0 0
        %2607 = vmatprep.subr.bf16.mxu0 0
        %2608 = vmatpush1.bf16.msra.mxu0 0
        %2609 = vmatprep.subr.bf16.mxu0 0
        %2610 = vmatpush1.bf16.msra.mxu0 0
        %2611 = vmatprep.subr.bf16.mxu0 0
        %2612 = vmatpush1.bf16.msra.mxu0 0
        %2613 = vmatprep.subr.bf16.mxu0 0
        %2614 = vmatpush1.bf16.msra.mxu0 0
        %2615 = vmatprep.subr.bf16.mxu0 0
        %2616 = vmatpush1.bf16.msra.mxu0 0
        %2617 = vmatprep.subr.bf16.mxu0 0
        %2618 = vmatpush1.bf16.msra.mxu0 0
        %2619 = vmatprep.subr.bf16.mxu0 0
        %2620 = vmatpush1.bf16.msra.mxu0 0
        %2621 = vmatprep.subr.bf16.mxu0 0
        %2622 = vmatpush1.bf16.msra.mxu0 0
        %2623 = vmatprep.subr.bf16.mxu0 0
        %2624 = vmatpush1.bf16.msra.mxu0 0
        %2625 = vmatprep.subr.bf16.mxu0 0
        %2626 = vmatpush1.bf16.msra.mxu0 0
        %2627 = vmatprep.subr.bf16.mxu0 0
        %2628 = vmatpush1.bf16.msra.mxu0 0
        %2629 = vmatprep.mubr.bf16.mxu0 0
        %2630 = vmatmul.mubr.bf16.gmra.mrb[0].mxu0 %v2595
        %v2631 = vpop.f32.mrb[0].mxu0
        %v2632 = vadd.f32 0.0, %v2631
        %v2633 = vpop.f32.mrb[0].mxu0
        %v2634 = vpop.f32.mrb[0].mxu0
        %v2635 = vadd.f32 0.0, %v2634
        %v2636 = vpop.f32.mrb[0].mxu0
        %2637 = vdwg.mxu0
        %2638 = vrot.lane.b32.xlu0 %v759, 80
        %v2639 = vpop.permute.xlu0 %2638
        %v2642 = vsel %vm767, %v2588, 0
        %2644 = vmatprep.subr.bf16.mxu0 0
        %2645 = vmatpush1.bf16.msra.mxu0 %v2639
        %2646 = vmatprep.subr.bf16.mxu0 0
        %2647 = vmatpush1.bf16.msra.mxu0 0
        %2648 = vmatprep.subr.bf16.mxu0 0
        %2649 = vmatpush1.bf16.msra.mxu0 0
        %2650 = vmatprep.subr.bf16.mxu0 0
        %2651 = vmatpush1.bf16.msra.mxu0 0
        %2652 = vmatprep.subr.bf16.mxu0 0
        %2653 = vmatpush1.bf16.msra.mxu0 0
        %2654 = vmatprep.subr.bf16.mxu0 0
        %2655 = vmatpush1.bf16.msra.mxu0 0
        %2656 = vmatprep.subr.bf16.mxu0 0
        %2657 = vmatpush1.bf16.msra.mxu0 0
        %2658 = vmatprep.subr.bf16.mxu0 0
        %2659 = vmatpush1.bf16.msra.mxu0 0
        %2660 = vmatprep.subr.bf16.mxu0 0
        %2661 = vmatpush1.bf16.msra.mxu0 0
        %2662 = vmatprep.subr.bf16.mxu0 0
        %2663 = vmatpush1.bf16.msra.mxu0 0
        %2664 = vmatprep.subr.bf16.mxu0 0
        %2665 = vmatpush1.bf16.msra.mxu0 0
        %2666 = vmatprep.subr.bf16.mxu0 0
        %2667 = vmatpush1.bf16.msra.mxu0 0
        %2668 = vmatprep.subr.bf16.mxu0 0
        %2669 = vmatpush1.bf16.msra.mxu0 0
        %2670 = vmatprep.subr.bf16.mxu0 0
        %2671 = vmatpush1.bf16.msra.mxu0 0
        %2672 = vmatprep.subr.bf16.mxu0 0
        %2673 = vmatpush1.bf16.msra.mxu0 0
        %2674 = vmatprep.subr.bf16.mxu0 0
        %2675 = vmatpush1.bf16.msra.mxu0 0
        %2676 = vmatprep.mubr.bf16.mxu0 0
        %2677 = vmatmul.mubr.bf16.gmra.mrb[0].mxu0 %v2642
        %v2678 = vpop.f32.mrb[0].mxu0
        %v2679 = vadd.f32 0.0, %v2678
        %v2680 = vpop.f32.mrb[0].mxu0
        %v2681 = vpop.f32.mrb[0].mxu0
        %v2682 = vadd.f32 0.0, %v2681
        %v2683 = vpop.f32.mrb[0].mxu0
        %2684 = vdwg.mxu0
        %2685 = vrot.lane.b32.xlu0 %v761, 80
        %v2686 = vpop.permute.xlu0 %2685
        %v2689 = vsel %vm767, %v2589, 0
        %2691 = vmatprep.subr.bf16.mxu0 0
        %2692 = vmatpush1.bf16.msra.mxu0 %v2686
        %2693 = vmatprep.subr.bf16.mxu0 0
        %2694 = vmatpush1.bf16.msra.mxu0 0
        %2695 = vmatprep.subr.bf16.mxu0 0
        %2696 = vmatpush1.bf16.msra.mxu0 0
        %2697 = vmatprep.subr.bf16.mxu0 0
        %2698 = vmatpush1.bf16.msra.mxu0 0
        %2699 = vmatprep.subr.bf16.mxu0 0
        %2700 = vmatpush1.bf16.msra.mxu0 0
        %2701 = vmatprep.subr.bf16.mxu0 0
        %2702 = vmatpush1.bf16.msra.mxu0 0
        %2703 = vmatprep.subr.bf16.mxu0 0
        %2704 = vmatpush1.bf16.msra.mxu0 0
        %2705 = vmatprep.subr.bf16.mxu0 0
        %2706 = vmatpush1.bf16.msra.mxu0 0
        %2707 = vmatprep.subr.bf16.mxu0 0
        %2708 = vmatpush1.bf16.msra.mxu0 0
        %2709 = vmatprep.subr.bf16.mxu0 0
        %2710 = vmatpush1.bf16.msra.mxu0 0
        %2711 = vmatprep.subr.bf16.mxu0 0
        %2712 = vmatpush1.bf16.msra.mxu0 0
        %2713 = vmatprep.subr.bf16.mxu0 0
        %2714 = vmatpush1.bf16.msra.mxu0 0
        %2715 = vmatprep.subr.bf16.mxu0 0
        %2716 = vmatpush1.bf16.msra.mxu0 0
        %2717 = vmatprep.subr.bf16.mxu0 0
        %2718 = vmatpush1.bf16.msra.mxu0 0
        %2719 = vmatprep.subr.bf16.mxu0 0
        %2720 = vmatpush1.bf16.msra.mxu0 0
        %2721 = vmatprep.subr.bf16.mxu0 0
        %2722 = vmatpush1.bf16.msra.mxu0 0
        %2723 = vmatprep.mubr.bf16.mxu0 0
        %2724 = vmatmul.mubr.bf16.gmra.mrb[0].mxu0 %v2689
        %v2725 = vpop.f32.mrb[0].mxu0
        %v2726 = vadd.f32 0.0, %v2725
        %v2727 = vpop.f32.mrb[0].mxu0
        %v2728 = vpop.f32.mrb[0].mxu0
        %v2729 = vadd.f32 0.0, %v2728
        %v2730 = vpop.f32.mrb[0].mxu0
        %2731 = vdwg.mxu0
        %2732 = vrot.lane.b32.xlu0 %v763, 80
        %v2733 = vpop.permute.xlu0 %2732
        %v2736 = vsel %vm767, %v2590, 0
        %2738 = vmatprep.subr.bf16.mxu0 0
        %2739 = vmatpush1.bf16.msra.mxu0 %v2733
        %2740 = vmatprep.subr.bf16.mxu0 0
        %2741 = vmatpush1.bf16.msra.mxu0 0
        %2742 = vmatprep.subr.bf16.mxu0 0
        %2743 = vmatpush1.bf16.msra.mxu0 0
        %2744 = vmatprep.subr.bf16.mxu0 0
        %2745 = vmatpush1.bf16.msra.mxu0 0
        %2746 = vmatprep.subr.bf16.mxu0 0
        %2747 = vmatpush1.bf16.msra.mxu0 0
        %2748 = vmatprep.subr.bf16.mxu0 0
        %2749 = vmatpush1.bf16.msra.mxu0 0
        %2750 = vmatprep.subr.bf16.mxu0 0
        %2751 = vmatpush1.bf16.msra.mxu0 0
        %2752 = vmatprep.subr.bf16.mxu0 0
        %2753 = vmatpush1.bf16.msra.mxu0 0
        %2754 = vmatprep.subr.bf16.mxu0 0
        %2755 = vmatpush1.bf16.msra.mxu0 0
        %2756 = vmatprep.subr.bf16.mxu0 0
        %2757 = vmatpush1.bf16.msra.mxu0 0
        %2758 = vmatprep.subr.bf16.mxu0 0
        %2759 = vmatpush1.bf16.msra.mxu0 0
        %2760 = vmatprep.subr.bf16.mxu0 0
        %2761 = vmatpush1.bf16.msra.mxu0 0
        %2762 = vmatprep.subr.bf16.mxu0 0
        %2763 = vmatpush1.bf16.msra.mxu0 0
        %2764 = vmatprep.subr.bf16.mxu0 0
        %2765 = vmatpush1.bf16.msra.mxu0 0
        %2766 = vmatprep.subr.bf16.mxu0 0
        %2767 = vmatpush1.bf16.msra.mxu0 0
        %2768 = vmatprep.subr.bf16.mxu0 0
        %2769 = vmatpush1.bf16.msra.mxu0 0
        %2770 = vmatprep.mubr.bf16.mxu0 0
        %2771 = vmatmul.mubr.bf16.gmra.mrb[0].mxu0 %v2736
        %v2772 = vpop.f32.mrb[0].mxu0
        %v2773 = vadd.f32 0.0, %v2772
        %v2774 = vpop.f32.mrb[0].mxu0
        %v2775 = vpop.f32.mrb[0].mxu0
        %v2776 = vadd.f32 0.0, %v2775
        %v2777 = vpop.f32.mrb[0].mxu0
        %2778 = vdwg.mxu0
        %2787 = vrot.lane.b32.xlu0 %v2632, 48
        %v2788 = vpop.permute.xlu0 %2787
        %2789 = vrot.lane.b32.xlu0 %v2635, 48
        %v2790 = vpop.permute.xlu0 %2789
        %2791 = vrot.lane.b32.xlu0 %v2679, 48
        %v2792 = vpop.permute.xlu0 %2791
        %2793 = vrot.lane.b32.xlu0 %v2682, 48
        %v2794 = vpop.permute.xlu0 %2793
        %2795 = vrot.lane.b32.xlu0 %v2726, 48
        %v2796 = vpop.permute.xlu0 %2795
        %2797 = vrot.lane.b32.xlu0 %v2729, 48
        %v2798 = vpop.permute.xlu0 %2797
        %2799 = vrot.lane.b32.xlu0 %v2773, 48
        %v2800 = vpop.permute.xlu0 %2799
        %2801 = vrot.lane.b32.xlu0 %v2776, 48
        %v2802 = vpop.permute.xlu0 %2801
        %vm2811 = vcmask 523648
        %2812 = vst.msk [vmem:[#allocation3] sm:$0xff] %vm2811, %v2788
        %2813 = vst.msk [vmem:[#allocation3 + $0x8] sm:$0xff] %vm2811, %v2790
        %2814 = vst.msk [vmem:[#allocation3 + $0x10] sm:$0xff] %vm2811, %v2792
        %2815 = vst.msk [vmem:[#allocation3 + $0x18] sm:$0xff] %vm2811, %v2794
        %2816 = vst.msk [vmem:[#allocation3 + $0x20] sm:$0xff] %vm2811, %v2796
        %2817 = vst.msk [vmem:[#allocation3 + $0x28] sm:$0xff] %vm2811, %v2798
        %2818 = vst.msk [vmem:[#allocation3 + $0x30] sm:$0xff] %vm2811, %v2800
        %2819 = vst.msk [vmem:[#allocation3 + $0x38] sm:$0xff] %vm2811, %v2802
        %v2820 = vld [vmem:[#allocation3] sm:$0xff]
        %v2821 = vld [vmem:[#allocation3 + $0x8] sm:$0xff]
        %v2822 = vld [vmem:[#allocation3 + $0x10] sm:$0xff]
        %v2823 = vld [vmem:[#allocation3 + $0x18] sm:$0xff]
        %v2824 = vld [vmem:[#allocation3 + $0x20] sm:$0xff]
        %v2825 = vld [vmem:[#allocation3 + $0x28] sm:$0xff]
        %v2826 = vld [vmem:[#allocation3 + $0x30] sm:$0xff]
        %v2827 = vld [vmem:[#allocation3 + $0x38] sm:$0xff]
        %v2828 = vpack.c.bf16 %v2821, %v2820
        %v2829 = vpack.c.bf16 %v2823, %v2822
        %v2830 = vpack.c.bf16 %v2825, %v2824
        %v2831 = vpack.c.bf16 %v2827, %v2826
        %v2832 = vld [vmem:[%s471] sm:$0xf]
        %v2833 = vld [vmem:[%s471 + $0x4] sm:$0xf]
        %v2834 = vld [vmem:[%s471 + $0x8] sm:$0xf]
        %v2835 = vld [vmem:[%s471 + $0xc] sm:$0xf]
        %v2836 = vld [vmem:[%s471 + $0x10] sm:$0xf]
        %v2837 = vld [vmem:[%s471 + $0x14] sm:$0xf]
        %v2838 = vld [vmem:[%s471 + $0x18] sm:$0xf]
        %v2839 = vld [vmem:[%s471 + $0x1c] sm:$0xf]
        %v2848 = vunpack.c.l.b16 %v2832
        %v2849 = vunpack.c.l.b16 %v2833
        %v2850 = vunpack.c.l.b16 %v2834
        %v2851 = vunpack.c.l.b16 %v2835
        %v2852 = vunpack.c.l.b16 %v2836
        %v2853 = vunpack.c.l.b16 %v2837
        %v2854 = vunpack.c.l.b16 %v2838
        %v2855 = vunpack.c.l.b16 %v2839
        %v2856 = vpack.c.b16 %v2849, %v2848
        %v2857 = vpack.c.b16 %v2851, %v2850
        %v2858 = vpack.c.b16 %v2853, %v2852
        %v2859 = vpack.c.b16 %v2855, %v2854
        %v2865 = vsel %vm670, %v2828, 0
        %v2868 = vsel %vm670, %v2829, 0
        %v2871 = vsel %vm670, %v2830, 0
        %v2874 = vsel %vm670, %v2831, 0
        %2876 = vmatprep.subr.bf16.mxu0 0
        %2877 = vmatpush1.bf16.msra.mxu0 %v2856
        %2878 = vmatprep.subr.bf16.mxu0 0
        %2879 = vmatpush1.bf16.msra.mxu0 %v2857
        %2880 = vmatprep.subr.bf16.mxu0 0
        %2881 = vmatpush1.bf16.msra.mxu0 %v2858
        %2882 = vmatprep.subr.bf16.mxu0 0
        %2883 = vmatpush1.bf16.msra.mxu0 %v2859
        %2884 = vmatprep.subr.bf16.mxu0 0
        %2885 = vmatpush1.bf16.msra.mxu0 0
        %2886 = vmatprep.subr.bf16.mxu0 0
        %2887 = vmatpush1.bf16.msra.mxu0 0
        %2888 = vmatprep.subr.bf16.mxu0 0
        %2889 = vmatpush1.bf16.msra.mxu0 0
        %2890 = vmatprep.subr.bf16.mxu0 0
        %2891 = vmatpush1.bf16.msra.mxu0 0
        %2892 = vmatprep.subr.bf16.mxu0 0
        %2893 = vmatpush1.bf16.msra.mxu0 0
        %2894 = vmatprep.subr.bf16.mxu0 0
        %2895 = vmatpush1.bf16.msra.mxu0 0
        %2896 = vmatprep.subr.bf16.mxu0 0
        %2897 = vmatpush1.bf16.msra.mxu0 0
        %2898 = vmatprep.subr.bf16.mxu0 0
        %2899 = vmatpush1.bf16.msra.mxu0 0
        %2900 = vmatprep.subr.bf16.mxu0 0
        %2901 = vmatpush1.bf16.msra.mxu0 0
        %2902 = vmatprep.subr.bf16.mxu0 0
        %2903 = vmatpush1.bf16.msra.mxu0 0
        %2904 = vmatprep.subr.bf16.mxu0 0
        %2905 = vmatpush1.bf16.msra.mxu0 0
        %2906 = vmatprep.subr.bf16.mxu0 0
        %2907 = vmatpush1.bf16.msra.mxu0 0
        %2908 = vmatprep.mubr.bf16.mxu0 0
        %2909 = vmatmul.mubr.bf16.gmra.mrb[0].mxu0 %v2865
        %v2910 = vpop.f32.mrb[0].mxu0
        %v2911 = vadd.f32 0.0, %v2910
        %v2912 = vpop.f32.mrb[0].mxu0
        %v2913 = vpop.f32.mrb[0].mxu0
        %v2914 = vadd.f32 0.0, %v2913
        %v2915 = vpop.f32.mrb[0].mxu0
        %2916 = vmatprep.mubr.bf16.mxu0 0
        %2917 = vmatmul.mubr.bf16.gmra.mrb[0].mxu0 %v2868
        %v2918 = vpop.f32.mrb[0].mxu0
        %v2919 = vadd.f32 0.0, %v2918
        %v2920 = vpop.f32.mrb[0].mxu0
        %v2921 = vpop.f32.mrb[0].mxu0
        %v2922 = vadd.f32 0.0, %v2921
        %v2923 = vpop.f32.mrb[0].mxu0
        %2924 = vmatprep.mubr.bf16.mxu0 0
        %2925 = vmatmul.mubr.bf16.gmra.mrb[0].mxu0 %v2871
        %v2926 = vpop.f32.mrb[0].mxu0
        %v2927 = vadd.f32 0.0, %v2926
        %v2928 = vpop.f32.mrb[0].mxu0
        %v2929 = vpop.f32.mrb[0].mxu0
        %v2930 = vadd.f32 0.0, %v2929
        %v2931 = vpop.f32.mrb[0].mxu0
        %2932 = vmatprep.mubr.bf16.mxu0 0
        %2933 = vmatmul.mubr.bf16.gmra.mrb[0].mxu0 %v2874
        %v2934 = vpop.f32.mrb[0].mxu0
        %v2935 = vadd.f32 0.0, %v2934
        %v2936 = vpop.f32.mrb[0].mxu0
        %v2937 = vpop.f32.mrb[0].mxu0
        %v2938 = vadd.f32 0.0, %v2937
        %v2939 = vpop.f32.mrb[0].mxu0
        %2940 = vdwg.mxu0
        %v2941 = vadd.f32 %v598, %v2911
        %v2942 = vadd.f32 %v599, %v2914
        %v2943 = vadd.f32 %v600, %v2919
        %v2944 = vadd.f32 %v601, %v2922
        %v2945 = vadd.f32 %v602, %v2927
        %v2946 = vadd.f32 %v603, %v2930
        %v2947 = vadd.f32 %v604, %v2935
        %v2948 = vadd.f32 %v605, %v2938
        %v2949 = vlaneseq
        %v2950 = vshrl.u32 %v2949, 7
        %v2951 = vsub.s32 0, %v2950
        %v2952 = vrot.slane %v597, %v2951
        %v2953 = vadd.f32 %v2941, %v2952
        %v2954 = vadd.f32 %v2942, %v2952
        %v2955 = vadd.f32 %v2943, %v2952
        %v2956 = vadd.f32 %v2944, %v2952
        %v2957 = vadd.f32 %v2945, %v2952
        %v2958 = vadd.f32 %v2946, %v2952
        %v2959 = vadd.f32 %v2947, %v2952
        %v2960 = vadd.f32 %v2948, %v2952
        %v2961 = vsel %vm670, %v2953, 0.0
        %2962 = vadd.xlane.f32.xlu0 %v2961
        %v2963 = vpop.xlane.xlu0 %2962
        %v2964 = vsel %vm670, %v2954, 0.0
        %2965 = vadd.xlane.f32.xlu0 %v2964
        %v2966 = vpop.xlane.xlu0 %2965
        %v2967 = vsel %vm670, %v2955, 0.0
        %2968 = vadd.xlane.f32.xlu0 %v2967
        %v2969 = vpop.xlane.xlu0 %2968
        %v2970 = vsel %vm670, %v2956, 0.0
        %2971 = vadd.xlane.f32.xlu0 %v2970
        %v2972 = vpop.xlane.xlu0 %2971
        %v2973 = vsel %vm670, %v2957, 0.0
        %2974 = vadd.xlane.f32.xlu0 %v2973
        %v2975 = vpop.xlane.xlu0 %2974
        %v2976 = vsel %vm670, %v2958, 0.0
        %2977 = vadd.xlane.f32.xlu0 %v2976
        %v2978 = vpop.xlane.xlu0 %2977
        %v2979 = vsel %vm670, %v2959, 0.0
        %2980 = vadd.xlane.f32.xlu0 %v2979
        %v2981 = vpop.xlane.xlu0 %2980
        %v2982 = vsel %vm670, %v2960, 0.0
        %2983 = vadd.xlane.f32.xlu0 %v2982
        %v2984 = vpop.xlane.xlu0 %2983
        %v2985 = vrcp.pop 64.0
        %v2986 = vmul.f32 %v2963, %v2985
        %v2987 = vmul.f32 %v2966, %v2985
        %v2988 = vmul.f32 %v2969, %v2985
        %v2989 = vmul.f32 %v2972, %v2985
        %v2990 = vmul.f32 %v2975, %v2985
        %v2991 = vmul.f32 %v2978, %v2985
        %v2992 = vmul.f32 %v2981, %v2985
        %v2993 = vmul.f32 %v2984, %v2985
        %v2994 = vsub.f32 %v2953, %v2986
        %v2995 = vsub.f32 %v2954, %v2987
        %v2996 = vsub.f32 %v2955, %v2988
        %v2997 = vsub.f32 %v2956, %v2989
        %v2998 = vsub.f32 %v2957, %v2990
        %v2999 = vsub.f32 %v2958, %v2991
        %v3000 = vsub.f32 %v2959, %v2992
        %v3001 = vsub.f32 %v2960, %v2993
        %v3002 = vmul.f32 %v2994, %v2994
        %v3003 = vmul.f32 %v2995, %v2995
        %v3004 = vmul.f32 %v2996, %v2996
        %v3005 = vmul.f32 %v2997, %v2997
        %v3006 = vmul.f32 %v2998, %v2998
        %v3007 = vmul.f32 %v2999, %v2999
        %v3008 = vmul.f32 %v3000, %v3000
        %v3009 = vmul.f32 %v3001, %v3001
        %v3010 = vsel %vm670, %v3002, 0.0
        %3011 = vadd.xlane.f32.xlu0 %v3010
        %v3012 = vpop.xlane.xlu0 %3011
        %v3013 = vsel %vm670, %v3003, 0.0
        %3014 = vadd.xlane.f32.xlu0 %v3013
        %v3015 = vpop.xlane.xlu0 %3014
        %v3016 = vsel %vm670, %v3004, 0.0
        %3017 = vadd.xlane.f32.xlu0 %v3016
        %v3018 = vpop.xlane.xlu0 %3017
        %v3019 = vsel %vm670, %v3005, 0.0
        %3020 = vadd.xlane.f32.xlu0 %v3019
        %v3021 = vpop.xlane.xlu0 %3020
        %v3022 = vsel %vm670, %v3006, 0.0
        %3023 = vadd.xlane.f32.xlu0 %v3022
        %v3024 = vpop.xlane.xlu0 %3023
        %v3025 = vsel %vm670, %v3007, 0.0
        %3026 = vadd.xlane.f32.xlu0 %v3025
        %v3027 = vpop.xlane.xlu0 %3026
        %v3028 = vsel %vm670, %v3008, 0.0
        %3029 = vadd.xlane.f32.xlu0 %v3028
        %v3030 = vpop.xlane.xlu0 %3029
        %v3031 = vsel %vm670, %v3009, 0.0
        %3032 = vadd.xlane.f32.xlu0 %v3031
        %v3033 = vpop.xlane.xlu0 %3032
        %v3034 = vmul.f32 %v3012, %v2985
        %v3035 = vmul.f32 %v3015, %v2985
        %v3036 = vmul.f32 %v3018, %v2985
        %v3037 = vmul.f32 %v3021, %v2985
        %v3038 = vmul.f32 %v3024, %v2985
        %v3039 = vmul.f32 %v3027, %v2985
        %v3040 = vmul.f32 %v3030, %v2985
        %v3041 = vmul.f32 %v3033, %v2985
        %v3042 = vadd.f32 %v3034, 1e-05
        %v3043 = vadd.f32 %v3035, 1e-05
        %v3044 = vadd.f32 %v3036, 1e-05
        %v3045 = vadd.f32 %v3037, 1e-05
        %v3046 = vadd.f32 %v3038, 1e-05
        %v3047 = vadd.f32 %v3039, 1e-05
        %v3048 = vadd.f32 %v3040, 1e-05
        %v3049 = vadd.f32 %v3041, 1e-05
        %v3050 = vrsqrt.pop %v3042
        %v3051 = vrsqrt.pop %v3043
        %v3052 = vrsqrt.pop %v3044
        %v3053 = vrsqrt.pop %v3045
        %v3054 = vrsqrt.pop %v3046
        %v3055 = vrsqrt.pop %v3047
        %v3056 = vrsqrt.pop %v3048
        %v3057 = vrsqrt.pop %v3049
        %v3058 = vmul.f32 %v2994, %v3050
        %v3059 = vmul.f32 %v2995, %v3051
        %v3060 = vmul.f32 %v2996, %v3052
        %v3061 = vmul.f32 %v2997, %v3053
        %v3062 = vmul.f32 %v2998, %v3054
        %v3063 = vmul.f32 %v2999, %v3055
        %v3064 = vmul.f32 %v3000, %v3056
        %v3065 = vmul.f32 %v3001, %v3057
        %v3066 = vlaneseq
        %v3067 = vshrl.u32 %v3066, 7
        %v3068 = vsub.s32 2, %v3067
        %v3069 = vrot.slane %v597, %v3068
        %v3070 = vmul.f32 %v3058, %v3069
        %v3071 = vmul.f32 %v3059, %v3069
        %v3072 = vmul.f32 %v3060, %v3069
        %v3073 = vmul.f32 %v3061, %v3069
        %v3074 = vmul.f32 %v3062, %v3069
        %v3075 = vmul.f32 %v3063, %v3069
        %v3076 = vmul.f32 %v3064, %v3069
        %v3077 = vmul.f32 %v3065, %v3069
        %v3078 = vlaneseq
        %v3079 = vshrl.u32 %v3078, 7
        %v3080 = vsub.s32 3, %v3079
        %v3081 = vrot.slane %v597, %v3080
        %v3082 = vadd.f32 %v3070, %v3081
        %v3083 = vadd.f32 %v3071, %v3081
        %v3084 = vadd.f32 %v3072, %v3081
        %v3085 = vadd.f32 %v3073, %v3081
        %v3086 = vadd.f32 %v3074, %v3081
        %v3087 = vadd.f32 %v3075, %v3081
        %v3088 = vadd.f32 %v3076, %v3081
        %v3089 = vadd.f32 %v3077, %v3081
        %v3090 = vpack.c.bf16 %v3083, %v3082
        %v3091 = vpack.c.bf16 %v3085, %v3084
        %v3092 = vpack.c.bf16 %v3087, %v3086
        %v3093 = vpack.c.bf16 %v3089, %v3088
        %v3094 = vld [vmem:[%s560] sm:$0xff]
        %v3095 = vld [vmem:[%s560 + $0x8] sm:$0xff]
        %v3096 = vld [vmem:[%s560 + $0x10] sm:$0xff]
        %v3097 = vld [vmem:[%s560 + $0x18] sm:$0xff]
        %v3098 = vld [vmem:[%s560 + $0x20] sm:$0xff]
        %v3099 = vld [vmem:[%s560 + $0x28] sm:$0xff]
        %v3100 = vld [vmem:[%s560 + $0x30] sm:$0xff]
        %v3101 = vld [vmem:[%s560 + $0x38] sm:$0xff]
        %v3102 = vld [vmem:[%s564] sm:$0x3]
        %v3104 = vlaneseq
        %v3105 = vshrl.u32 %v3104, 7
        %v3106 = vsub.s32 0, %v3105
        %v3107 = vrot.slane %v3102, %v3106
        %v3108 = vlaneseq
        %v3109 = vshrl.u32 %v3108, 7
        %v3110 = vsub.s32 1, %v3109
        %v3111 = vrot.slane %v3102, %v3110
        %v3122 = vunpack.c.l.b16 %v3094
        %v3123 = vunpack.c.h.b16 %v3094
        %v3124 = vunpack.c.l.b16 %v3095
        %v3125 = vunpack.c.h.b16 %v3095
        %v3126 = vunpack.c.l.b16 %v3096
        %v3127 = vunpack.c.h.b16 %v3096
        %v3128 = vunpack.c.l.b16 %v3097
        %v3129 = vunpack.c.h.b16 %v3097
        %v3130 = vunpack.c.l.b16 %v3098
        %v3131 = vunpack.c.h.b16 %v3098
        %v3132 = vunpack.c.l.b16 %v3099
        %v3133 = vunpack.c.h.b16 %v3099
        %v3134 = vunpack.c.l.b16 %v3100
        %v3135 = vunpack.c.h.b16 %v3100
        %v3136 = vunpack.c.l.b16 %v3101
        %v3137 = vunpack.c.h.b16 %v3101
        %v3138 = vpack.c.b16 %v3124, %v3122
        %v3139 = vpack.c.b16 %v3125, %v3123
        %v3140 = vpack.c.b16 %v3128, %v3126
        %v3141 = vpack.c.b16 %v3129, %v3127
        %v3142 = vpack.c.b16 %v3132, %v3130
        %v3143 = vpack.c.b16 %v3133, %v3131
        %v3144 = vpack.c.b16 %v3136, %v3134
        %v3145 = vpack.c.b16 %v3137, %v3135
        %v3155 = vsel %vm670, %v3090, 0
        %v3158 = vsel %vm670, %v3091, 0
        %v3161 = vsel %vm670, %v3092, 0
        %v3164 = vsel %vm670, %v3093, 0
        %3166 = vmatprep.subr.bf16.mxu0 %v3139
        %3167 = vmatpush1.bf16.msra.mxu0 %v3138
        %3168 = vmatprep.subr.bf16.mxu0 %v3141
        %3169 = vmatpush1.bf16.msra.mxu0 %v3140
        %3170 = vmatprep.subr.bf16.mxu0 %v3143
        %3171 = vmatpush1.bf16.msra.mxu0 %v3142
        %3172 = vmatprep.subr.bf16.mxu0 %v3145
        %3173 = vmatpush1.bf16.msra.mxu0 %v3144
        %3174 = vmatprep.subr.bf16.mxu0 0
        %3175 = vmatpush1.bf16.msra.mxu0 0
        %3176 = vmatprep.subr.bf16.mxu0 0
        %3177 = vmatpush1.bf16.msra.mxu0 0
        %3178 = vmatprep.subr.bf16.mxu0 0
        %3179 = vmatpush1.bf16.msra.mxu0 0
        %3180 = vmatprep.subr.bf16.mxu0 0
        %3181 = vmatpush1.bf16.msra.mxu0 0
        %3182 = vmatprep.subr.bf16.mxu0 0
        %3183 = vmatpush1.bf16.msra.mxu0 0
        %3184 = vmatprep.subr.bf16.mxu0 0
        %3185 = vmatpush1.bf16.msra.mxu0 0
        %3186 = vmatprep.subr.bf16.mxu0 0
        %3187 = vmatpush1.bf16.msra.mxu0 0
        %3188 = vmatprep.subr.bf16.mxu0 0
        %3189 = vmatpush1.bf16.msra.mxu0 0
        %3190 = vmatprep.subr.bf16.mxu0 0
        %3191 = vmatpush1.bf16.msra.mxu0 0
        %3192 = vmatprep.subr.bf16.mxu0 0
        %3193 = vmatpush1.bf16.msra.mxu0 0
        %3194 = vmatprep.subr.bf16.mxu0 0
        %3195 = vmatpush1.bf16.msra.mxu0 0
        %3196 = vmatprep.subr.bf16.mxu0 0
        %3197 = vmatpush1.bf16.msra.mxu0 0
        %3198 = vmatprep.mubr.bf16.mxu0 0
        %3199 = vmatmul.mubr.bf16.gmra.mrb[0].mxu0 %v3155
        %v3200 = vpop.f32.mrb[0].mxu0
        %v3201 = vadd.f32 %v3107, %v3200
        %v3202 = vpop.f32.mrb[0].mxu0
        %v3203 = vadd.f32 %v3111, %v3202
        %v3204 = vpop.f32.mrb[0].mxu0
        %v3205 = vadd.f32 %v3107, %v3204
        %v3206 = vpop.f32.mrb[0].mxu0
        %v3207 = vadd.f32 %v3111, %v3206
        %3208 = vmatprep.mubr.bf16.mxu0 0
        %3209 = vmatmul.mubr.bf16.gmra.mrb[0].mxu0 %v3158
        %v3210 = vpop.f32.mrb[0].mxu0
        %v3211 = vadd.f32 %v3107, %v3210
        %v3212 = vpop.f32.mrb[0].mxu0
        %v3213 = vadd.f32 %v3111, %v3212
        %v3214 = vpop.f32.mrb[0].mxu0
        %v3215 = vadd.f32 %v3107, %v3214
        %v3216 = vpop.f32.mrb[0].mxu0
        %v3217 = vadd.f32 %v3111, %v3216
        %3218 = vmatprep.mubr.bf16.mxu0 0
        %3219 = vmatmul.mubr.bf16.gmra.mrb[0].mxu0 %v3161
        %v3220 = vpop.f32.mrb[0].mxu0
        %v3221 = vadd.f32 %v3107, %v3220
        %v3222 = vpop.f32.mrb[0].mxu0
        %v3223 = vadd.f32 %v3111, %v3222
        %v3224 = vpop.f32.mrb[0].mxu0
        %v3225 = vadd.f32 %v3107, %v3224
        %v3226 = vpop.f32.mrb[0].mxu0
        %v3227 = vadd.f32 %v3111, %v3226
        %3228 = vmatprep.mubr.bf16.mxu0 0
        %3229 = vmatmul.mubr.bf16.gmra.mrb[0].mxu0 %v3164
        %v3230 = vpop.f32.mrb[0].mxu0
        %v3231 = vadd.f32 %v3107, %v3230
        %v3232 = vpop.f32.mrb[0].mxu0
        %v3233 = vadd.f32 %v3111, %v3232
        %v3234 = vpop.f32.mrb[0].mxu0
        %v3235 = vadd.f32 %v3107, %v3234
        %v3236 = vpop.f32.mrb[0].mxu0
        %v3237 = vadd.f32 %v3111, %v3236
        %3238 = vdwg.mxu0
        %v3239 = vmax.f32 %v3201, 0.0
        %v3240 = vmax.f32 %v3203, 0.0
        %v3241 = vmax.f32 %v3205, 0.0
        %v3242 = vmax.f32 %v3207, 0.0
        %v3243 = vmax.f32 %v3211, 0.0
        %v3244 = vmax.f32 %v3213, 0.0
        %v3245 = vmax.f32 %v3215, 0.0
        %v3246 = vmax.f32 %v3217, 0.0
        %v3247 = vmax.f32 %v3221, 0.0
        %v3248 = vmax.f32 %v3223, 0.0
        %v3249 = vmax.f32 %v3225, 0.0
        %v3250 = vmax.f32 %v3227, 0.0
        %v3251 = vmax.f32 %v3231, 0.0
        %v3252 = vmax.f32 %v3233, 0.0
        %v3253 = vmax.f32 %v3235, 0.0
        %v3254 = vmax.f32 %v3237, 0.0
        %v3255 = vpack.c.bf16 %v3241, %v3239
        %v3256 = vpack.c.bf16 %v3242, %v3240
        %v3257 = vpack.c.bf16 %v3245, %v3243
        %v3258 = vpack.c.bf16 %v3246, %v3244
        %v3259 = vpack.c.bf16 %v3249, %v3247
        %v3260 = vpack.c.bf16 %v3250, %v3248
        %v3261 = vpack.c.bf16 %v3253, %v3251
        %v3262 = vpack.c.bf16 %v3254, %v3252
        %v3263 = vld [vmem:[%s569] sm:$0xf]
        %v3264 = vld [vmem:[%s569 + $0x4] sm:$0xf]
        %v3265 = vld [vmem:[%s569 + $0x8] sm:$0xf]
        %v3266 = vld [vmem:[%s569 + $0xc] sm:$0xf]
        %v3267 = vld [vmem:[%s569 + $0x10] sm:$0xf]
        %v3268 = vld [vmem:[%s569 + $0x14] sm:$0xf]
        %v3269 = vld [vmem:[%s569 + $0x18] sm:$0xf]
        %v3270 = vld [vmem:[%s569 + $0x1c] sm:$0xf]
        %v3271 = vld [vmem:[%s569 + $0x20] sm:$0xf]
        %v3272 = vld [vmem:[%s569 + $0x24] sm:$0xf]
        %v3273 = vld [vmem:[%s569 + $0x28] sm:$0xf]
        %v3274 = vld [vmem:[%s569 + $0x2c] sm:$0xf]
        %v3275 = vld [vmem:[%s569 + $0x30] sm:$0xf]
        %v3276 = vld [vmem:[%s569 + $0x34] sm:$0xf]
        %v3277 = vld [vmem:[%s569 + $0x38] sm:$0xf]
        %v3278 = vld [vmem:[%s569 + $0x3c] sm:$0xf]
        %v3279 = vld [vmem:[%s569 + $0x40] sm:$0xf]
        %v3280 = vld [vmem:[%s569 + $0x44] sm:$0xf]
        %v3281 = vld [vmem:[%s569 + $0x48] sm:$0xf]
        %v3282 = vld [vmem:[%s569 + $0x4c] sm:$0xf]
        %v3283 = vld [vmem:[%s569 + $0x50] sm:$0xf]
        %v3284 = vld [vmem:[%s569 + $0x54] sm:$0xf]
        %v3285 = vld [vmem:[%s569 + $0x58] sm:$0xf]
        %v3286 = vld [vmem:[%s569 + $0x5c] sm:$0xf]
        %v3287 = vld [vmem:[%s569 + $0x60] sm:$0xf]
        %v3288 = vld [vmem:[%s569 + $0x64] sm:$0xf]
        %v3289 = vld [vmem:[%s569 + $0x68] sm:$0xf]
        %v3290 = vld [vmem:[%s569 + $0x6c] sm:$0xf]
        %v3291 = vld [vmem:[%s569 + $0x70] sm:$0xf]
        %v3292 = vld [vmem:[%s569 + $0x74] sm:$0xf]
        %v3293 = vld [vmem:[%s569 + $0x78] sm:$0xf]
        %v3294 = vld [vmem:[%s569 + $0x7c] sm:$0xf]
        %v3295 = vlaneseq
        %v3296 = vshrl.u32 %v3295, 7
        %v3297 = vsub.s32 1, %v3296
        %v3298 = vrot.slane %v597, %v3297
        %v3331 = vunpack.c.l.b16 %v3263
        %v3332 = vunpack.c.l.b16 %v3264
        %v3333 = vunpack.c.l.b16 %v3265
        %v3334 = vunpack.c.l.b16 %v3266
        %v3335 = vunpack.c.l.b16 %v3267
        %v3336 = vunpack.c.l.b16 %v3268
        %v3337 = vunpack.c.l.b16 %v3269
        %v3338 = vunpack.c.l.b16 %v3270
        %v3339 = vunpack.c.l.b16 %v3271
        %v3340 = vunpack.c.l.b16 %v3272
        %v3341 = vunpack.c.l.b16 %v3273
        %v3342 = vunpack.c.l.b16 %v3274
        %v3343 = vunpack.c.l.b16 %v3275
        %v3344 = vunpack.c.l.b16 %v3276
        %v3345 = vunpack.c.l.b16 %v3277
        %v3346 = vunpack.c.l.b16 %v3278
        %v3347 = vunpack.c.l.b16 %v3279
        %v3348 = vunpack.c.l.b16 %v3280
        %v3349 = vunpack.c.l.b16 %v3281
        %v3350 = vunpack.c.l.b16 %v3282
        %v3351 = vunpack.c.l.b16 %v3283
        %v3352 = vunpack.c.l.b16 %v3284
        %v3353 = vunpack.c.l.b16 %v3285
        %v3354 = vunpack.c.l.b16 %v3286
        %v3355 = vunpack.c.l.b16 %v3287
        %v3356 = vunpack.c.l.b16 %v3288
        %v3357 = vunpack.c.l.b16 %v3289
        %v3358 = vunpack.c.l.b16 %v3290
        %v3359 = vunpack.c.l.b16 %v3291
        %v3360 = vunpack.c.l.b16 %v3292
        %v3361 = vunpack.c.l.b16 %v3293
        %v3362 = vunpack.c.l.b16 %v3294
        %v3363 = vpack.c.b16 %v3332, %v3331
        %v3364 = vpack.c.b16 %v3334, %v3333
        %v3365 = vpack.c.b16 %v3336, %v3335
        %v3366 = vpack.c.b16 %v3338, %v3337
        %v3367 = vpack.c.b16 %v3340, %v3339
        %v3368 = vpack.c.b16 %v3342, %v3341
        %v3369 = vpack.c.b16 %v3344, %v3343
        %v3370 = vpack.c.b16 %v3346, %v3345
        %v3371 = vpack.c.b16 %v3348, %v3347
        %v3372 = vpack.c.b16 %v3350, %v3349
        %v3373 = vpack.c.b16 %v3352, %v3351
        %v3374 = vpack.c.b16 %v3354, %v3353
        %v3375 = vpack.c.b16 %v3356, %v3355
        %v3376 = vpack.c.b16 %v3358, %v3357
        %v3377 = vpack.c.b16 %v3360, %v3359
        %v3378 = vpack.c.b16 %v3362, %v3361
        %3395 = vmatprep.subr.bf16.mxu0 0
        %3396 = vmatpush1.bf16.msra.mxu0 %v3363
        %3397 = vmatprep.subr.bf16.mxu0 0
        %3398 = vmatpush1.bf16.msra.mxu0 %v3364
        %3399 = vmatprep.subr.bf16.mxu0 0
        %3400 = vmatpush1.bf16.msra.mxu0 %v3365
        %3401 = vmatprep.subr.bf16.mxu0 0
        %3402 = vmatpush1.bf16.msra.mxu0 %v3366
        %3403 = vmatprep.subr.bf16.mxu0 0
        %3404 = vmatpush1.bf16.msra.mxu0 %v3367
        %3405 = vmatprep.subr.bf16.mxu0 0
        %3406 = vmatpush1.bf16.msra.mxu0 %v3368
        %3407 = vmatprep.subr.bf16.mxu0 0
        %3408 = vmatpush1.bf16.msra.mxu0 %v3369
        %3409 = vmatprep.subr.bf16.mxu0 0
        %3410 = vmatpush1.bf16.msra.mxu0 %v3370
        %3411 = vmatprep.subr.bf16.mxu0 0
        %3412 = vmatpush1.bf16.msra.mxu0 %v3371
        %3413 = vmatprep.subr.bf16.mxu0 0
        %3414 = vmatpush1.bf16.msra.mxu0 %v3372
        %3415 = vmatprep.subr.bf16.mxu0 0
        %3416 = vmatpush1.bf16.msra.mxu0 %v3373
        %3417 = vmatprep.subr.bf16.mxu0 0
        %3418 = vmatpush1.bf16.msra.mxu0 %v3374
        %3419 = vmatprep.subr.bf16.mxu0 0
        %3420 = vmatpush1.bf16.msra.mxu0 %v3375
        %3421 = vmatprep.subr.bf16.mxu0 0
        %3422 = vmatpush1.bf16.msra.mxu0 %v3376
        %3423 = vmatprep.subr.bf16.mxu0 0
        %3424 = vmatpush1.bf16.msra.mxu0 %v3377
        %3425 = vmatprep.subr.bf16.mxu0 0
        %3426 = vmatpush1.bf16.msra.mxu0 %v3378
        %3427 = vmatprep.mubr.bf16.mxu0 %v3256
        %3428 = vmatmul.mubr.bf16.gmra.mrb[0].mxu0 %v3255
        %v3429 = vpop.f32.mrb[0].mxu0
        %v3430 = vadd.f32 %v3298, %v3429
        %v3431 = vpop.f32.mrb[0].mxu0
        %v3432 = vpop.f32.mrb[0].mxu0
        %v3433 = vadd.f32 %v3298, %v3432
        %v3434 = vpop.f32.mrb[0].mxu0
        %3435 = vmatprep.mubr.bf16.mxu0 %v3258
        %3436 = vmatmul.mubr.bf16.gmra.mrb[0].mxu0 %v3257
        %v3437 = vpop.f32.mrb[0].mxu0
        %v3438 = vadd.f32 %v3298, %v3437
        %v3439 = vpop.f32.mrb[0].mxu0
        %v3440 = vpop.f32.mrb[0].mxu0
        %v3441 = vadd.f32 %v3298, %v3440
        %v3442 = vpop.f32.mrb[0].mxu0
        %3443 = vmatprep.mubr.bf16.mxu0 %v3260
        %3444 = vmatmul.mubr.bf16.gmra.mrb[0].mxu0 %v3259
        %v3445 = vpop.f32.mrb[0].mxu0
        %v3446 = vadd.f32 %v3298, %v3445
        %v3447 = vpop.f32.mrb[0].mxu0
        %v3448 = vpop.f32.mrb[0].mxu0
        %v3449 = vadd.f32 %v3298, %v3448
        %v3450 = vpop.f32.mrb[0].mxu0
        %3451 = vmatprep.mubr.bf16.mxu0 %v3262
        %3452 = vmatmul.mubr.bf16.gmra.mrb[0].mxu0 %v3261
        %v3453 = vpop.f32.mrb[0].mxu0
        %v3454 = vadd.f32 %v3298, %v3453
        %v3455 = vpop.f32.mrb[0].mxu0
        %v3456 = vpop.f32.mrb[0].mxu0
        %v3457 = vadd.f32 %v3298, %v3456
        %v3458 = vpop.f32.mrb[0].mxu0
        %3459 = vdwg.mxu0
        %v3460 = vadd.f32 %v3082, %v3430
        %v3461 = vadd.f32 %v3083, %v3433
        %v3462 = vadd.f32 %v3084, %v3438
        %v3463 = vadd.f32 %v3085, %v3441
        %v3464 = vadd.f32 %v3086, %v3446
        %v3465 = vadd.f32 %v3087, %v3449
        %v3466 = vadd.f32 %v3088, %v3454
        %v3467 = vadd.f32 %v3089, %v3457
        %v3468 = vsel %vm670, %v3460, 0.0
        %3469 = vadd.xlane.f32.xlu0 %v3468
        %v3470 = vpop.xlane.xlu0 %3469
        %v3471 = vsel %vm670, %v3461, 0.0
        %3472 = vadd.xlane.f32.xlu0 %v3471
        %v3473 = vpop.xlane.xlu0 %3472
        %v3474 = vsel %vm670, %v3462, 0.0
        %3475 = vadd.xlane.f32.xlu0 %v3474
        %v3476 = vpop.xlane.xlu0 %3475
        %v3477 = vsel %vm670, %v3463, 0.0
        %3478 = vadd.xlane.f32.xlu0 %v3477
        %v3479 = vpop.xlane.xlu0 %3478
        %v3480 = vsel %vm670, %v3464, 0.0
        %3481 = vadd.xlane.f32.xlu0 %v3480
        %v3482 = vpop.xlane.xlu0 %3481
        %v3483 = vsel %vm670, %v3465, 0.0
        %3484 = vadd.xlane.f32.xlu0 %v3483
        %v3485 = vpop.xlane.xlu0 %3484
        %v3486 = vsel %vm670, %v3466, 0.0
        %3487 = vadd.xlane.f32.xlu0 %v3486
        %v3488 = vpop.xlane.xlu0 %3487
        %v3489 = vsel %vm670, %v3467, 0.0
        %3490 = vadd.xlane.f32.xlu0 %v3489
        %v3491 = vpop.xlane.xlu0 %3490
        %v3492 = vmul.f32 %v3470, %v2985
        %v3493 = vmul.f32 %v3473, %v2985
        %v3494 = vmul.f32 %v3476, %v2985
        %v3495 = vmul.f32 %v3479, %v2985
        %v3496 = vmul.f32 %v3482, %v2985
        %v3497 = vmul.f32 %v3485, %v2985
        %v3498 = vmul.f32 %v3488, %v2985
        %v3499 = vmul.f32 %v3491, %v2985
        %v3500 = vsub.f32 %v3460, %v3492
        %v3501 = vsub.f32 %v3461, %v3493
        %v3502 = vsub.f32 %v3462, %v3494
        %v3503 = vsub.f32 %v3463, %v3495
        %v3504 = vsub.f32 %v3464, %v3496
        %v3505 = vsub.f32 %v3465, %v3497
        %v3506 = vsub.f32 %v3466, %v3498
        %v3507 = vsub.f32 %v3467, %v3499
        %v3508 = vmul.f32 %v3500, %v3500
        %v3509 = vmul.f32 %v3501, %v3501
        %v3510 = vmul.f32 %v3502, %v3502
        %v3511 = vmul.f32 %v3503, %v3503
        %v3512 = vmul.f32 %v3504, %v3504
        %v3513 = vmul.f32 %v3505, %v3505
        %v3514 = vmul.f32 %v3506, %v3506
        %v3515 = vmul.f32 %v3507, %v3507
        %v3516 = vsel %vm670, %v3508, 0.0
        %3517 = vadd.xlane.f32.xlu0 %v3516
        %v3518 = vpop.xlane.xlu0 %3517
        %v3519 = vsel %vm670, %v3509, 0.0
        %3520 = vadd.xlane.f32.xlu0 %v3519
        %v3521 = vpop.xlane.xlu0 %3520
        %v3522 = vsel %vm670, %v3510, 0.0
        %3523 = vadd.xlane.f32.xlu0 %v3522
        %v3524 = vpop.xlane.xlu0 %3523
        %v3525 = vsel %vm670, %v3511, 0.0
        %3526 = vadd.xlane.f32.xlu0 %v3525
        %v3527 = vpop.xlane.xlu0 %3526
        %v3528 = vsel %vm670, %v3512, 0.0
        %3529 = vadd.xlane.f32.xlu0 %v3528
        %v3530 = vpop.xlane.xlu0 %3529
        %v3531 = vsel %vm670, %v3513, 0.0
        %3532 = vadd.xlane.f32.xlu0 %v3531
        %v3533 = vpop.xlane.xlu0 %3532
        %v3534 = vsel %vm670, %v3514, 0.0
        %3535 = vadd.xlane.f32.xlu0 %v3534
        %v3536 = vpop.xlane.xlu0 %3535
        %v3537 = vsel %vm670, %v3515, 0.0
        %3538 = vadd.xlane.f32.xlu0 %v3537
        %v3539 = vpop.xlane.xlu0 %3538
        %v3540 = vmul.f32 %v3518, %v2985
        %v3541 = vmul.f32 %v3521, %v2985
        %v3542 = vmul.f32 %v3524, %v2985
        %v3543 = vmul.f32 %v3527, %v2985
        %v3544 = vmul.f32 %v3530, %v2985
        %v3545 = vmul.f32 %v3533, %v2985
        %v3546 = vmul.f32 %v3536, %v2985
        %v3547 = vmul.f32 %v3539, %v2985
        %v3548 = vadd.f32 %v3540, 1e-05
        %v3549 = vadd.f32 %v3541, 1e-05
        %v3550 = vadd.f32 %v3542, 1e-05
        %v3551 = vadd.f32 %v3543, 1e-05
        %v3552 = vadd.f32 %v3544, 1e-05
        %v3553 = vadd.f32 %v3545, 1e-05
        %v3554 = vadd.f32 %v3546, 1e-05
        %v3555 = vadd.f32 %v3547, 1e-05
        %v3556 = vrsqrt.pop %v3548
        %v3557 = vrsqrt.pop %v3549
        %v3558 = vrsqrt.pop %v3550
        %v3559 = vrsqrt.pop %v3551
        %v3560 = vrsqrt.pop %v3552
        %v3561 = vrsqrt.pop %v3553
        %v3562 = vrsqrt.pop %v3554
        %v3563 = vrsqrt.pop %v3555
        %v3564 = vmul.f32 %v3500, %v3556
        %v3565 = vmul.f32 %v3501, %v3557
        %v3566 = vmul.f32 %v3502, %v3558
        %v3567 = vmul.f32 %v3503, %v3559
        %v3568 = vmul.f32 %v3504, %v3560
        %v3569 = vmul.f32 %v3505, %v3561
        %v3570 = vmul.f32 %v3506, %v3562
        %v3571 = vmul.f32 %v3507, %v3563
        %v3572 = vlaneseq
        %v3573 = vshrl.u32 %v3572, 7
        %v3574 = vsub.s32 4, %v3573
        %v3575 = vrot.slane %v597, %v3574
        %v3576 = vmul.f32 %v3564, %v3575
        %v3577 = vmul.f32 %v3565, %v3575
        %v3578 = vmul.f32 %v3566, %v3575
        %v3579 = vmul.f32 %v3567, %v3575
        %v3580 = vmul.f32 %v3568, %v3575
        %v3581 = vmul.f32 %v3569, %v3575
        %v3582 = vmul.f32 %v3570, %v3575
        %v3583 = vmul.f32 %v3571, %v3575
        %v3584 = vlaneseq
        %v3585 = vshrl.u32 %v3584, 7
        %v3586 = vsub.s32 5, %v3585
        %v3587 = vrot.slane %v597, %v3586
        %v3588 = vadd.f32 %v3576, %v3587
        %v3589 = vadd.f32 %v3577, %v3587
        %v3590 = vadd.f32 %v3578, %v3587
        %v3591 = vadd.f32 %v3579, %v3587
        %v3592 = vadd.f32 %v3580, %v3587
        %v3593 = vadd.f32 %v3581, %v3587
        %v3594 = vadd.f32 %v3582, %v3587
        %v3595 = vadd.f32 %v3583, %v3587
        %3596 = vst.msk [vmem:[#allocation2] sm:$0xff] %vm670, %v3588
        %3597 = vst.msk [vmem:[#allocation2 + $0x8] sm:$0xff] %vm670, %v3589
        %3598 = vst.msk [vmem:[#allocation2 + $0x10] sm:$0xff] %vm670, %v3590
        %3599 = vst.msk [vmem:[#allocation2 + $0x18] sm:$0xff] %vm670, %v3591
        %3600 = vst.msk [vmem:[#allocation2 + $0x20] sm:$0xff] %vm670, %v3592
        %3601 = vst.msk [vmem:[#allocation2 + $0x28] sm:$0xff] %vm670, %v3593
        %3602 = vst.msk [vmem:[#allocation2 + $0x30] sm:$0xff] %vm670, %v3594
        %3603 = vst.msk [vmem:[#allocation2 + $0x38] sm:$0xff] %vm670, %v3595
        %p3604 = scmp.eq.s32.totalorder %s36, 1
        // Predicated region
        $region77: #{tpu_custom_call.1} parent=63 // pred_check
          %p3605 = pneg %p3604
        $region78: #{tpu_custom_call.1} parent=63 // pred_check_branch
          %3607 = sbr.rel (%p3605) target = $region80
        $region79: #{tpu_custom_call.1} parent=63 // pred_region
          %v3608 = vld [vmem:[%s8] sm:$0x3]
          %v3609 = vsel %vm670, %v3588, 0.0
          %3610 = vadd.xlane.f32.xlu0 %v3609
          %v3611 = vpop.xlane.xlu0 %3610
          %v3612 = vsel %vm670, %v3589, 0.0
          %3613 = vadd.xlane.f32.xlu0 %v3612
          %v3614 = vpop.xlane.xlu0 %3613
          %v3615 = vsel %vm670, %v3590, 0.0
          %3616 = vadd.xlane.f32.xlu0 %v3615
          %v3617 = vpop.xlane.xlu0 %3616
          %v3618 = vsel %vm670, %v3591, 0.0
          %3619 = vadd.xlane.f32.xlu0 %v3618
          %v3620 = vpop.xlane.xlu0 %3619
          %v3621 = vsel %vm670, %v3592, 0.0
          %3622 = vadd.xlane.f32.xlu0 %v3621
          %v3623 = vpop.xlane.xlu0 %3622
          %v3624 = vsel %vm670, %v3593, 0.0
          %3625 = vadd.xlane.f32.xlu0 %v3624
          %v3626 = vpop.xlane.xlu0 %3625
          %v3627 = vsel %vm670, %v3594, 0.0
          %3628 = vadd.xlane.f32.xlu0 %v3627
          %v3629 = vpop.xlane.xlu0 %3628
          %v3630 = vsel %vm670, %v3595, 0.0
          %3631 = vadd.xlane.f32.xlu0 %v3630
          %v3632 = vpop.xlane.xlu0 %3631
          %v3633 = vmul.f32 %v3611, %v2985
          %v3634 = vmul.f32 %v3614, %v2985
          %v3635 = vmul.f32 %v3617, %v2985
          %v3636 = vmul.f32 %v3620, %v2985
          %v3637 = vmul.f32 %v3623, %v2985
          %v3638 = vmul.f32 %v3626, %v2985
          %v3639 = vmul.f32 %v3629, %v2985
          %v3640 = vmul.f32 %v3632, %v2985
          %v3641 = vsub.f32 %v3588, %v3633
          %v3642 = vsub.f32 %v3589, %v3634
          %v3643 = vsub.f32 %v3590, %v3635
          %v3644 = vsub.f32 %v3591, %v3636
          %v3645 = vsub.f32 %v3592, %v3637
          %v3646 = vsub.f32 %v3593, %v3638
          %v3647 = vsub.f32 %v3594, %v3639
          %v3648 = vsub.f32 %v3595, %v3640
          %v3649 = vmul.f32 %v3641, %v3641
          %v3650 = vmul.f32 %v3642, %v3642
          %v3651 = vmul.f32 %v3643, %v3643
          %v3652 = vmul.f32 %v3644, %v3644
          %v3653 = vmul.f32 %v3645, %v3645
          %v3654 = vmul.f32 %v3646, %v3646
          %v3655 = vmul.f32 %v3647, %v3647
          %v3656 = vmul.f32 %v3648, %v3648
          %v3657 = vsel %vm670, %v3649, 0.0
          %3658 = vadd.xlane.f32.xlu0 %v3657
          %v3659 = vpop.xlane.xlu0 %3658
          %v3660 = vsel %vm670, %v3650, 0.0
          %3661 = vadd.xlane.f32.xlu0 %v3660
          %v3662 = vpop.xlane.xlu0 %3661
          %v3663 = vsel %vm670, %v3651, 0.0
          %3664 = vadd.xlane.f32.xlu0 %v3663
          %v3665 = vpop.xlane.xlu0 %3664
          %v3666 = vsel %vm670, %v3652, 0.0
          %3667 = vadd.xlane.f32.xlu0 %v3666
          %v3668 = vpop.xlane.xlu0 %3667
          %v3669 = vsel %vm670, %v3653, 0.0
          %3670 = vadd.xlane.f32.xlu0 %v3669
          %v3671 = vpop.xlane.xlu0 %3670
          %v3672 = vsel %vm670, %v3654, 0.0
          %3673 = vadd.xlane.f32.xlu0 %v3672
          %v3674 = vpop.xlane.xlu0 %3673
          %v3675 = vsel %vm670, %v3655, 0.0
          %3676 = vadd.xlane.f32.xlu0 %v3675
          %v3677 = vpop.xlane.xlu0 %3676
          %v3678 = vsel %vm670, %v3656, 0.0
          %3679 = vadd.xlane.f32.xlu0 %v3678
          %v3680 = vpop.xlane.xlu0 %3679
          %v3681 = vmul.f32 %v3659, %v2985
          %v3682 = vmul.f32 %v3662, %v2985
          %v3683 = vmul.f32 %v3665, %v2985
          %v3684 = vmul.f32 %v3668, %v2985
          %v3685 = vmul.f32 %v3671, %v2985
          %v3686 = vmul.f32 %v3674, %v2985
          %v3687 = vmul.f32 %v3677, %v2985
          %v3688 = vmul.f32 %v3680, %v2985
          %v3689 = vadd.f32 %v3681, 1e-05
          %v3690 = vadd.f32 %v3682, 1e-05
          %v3691 = vadd.f32 %v3683, 1e-05
          %v3692 = vadd.f32 %v3684, 1e-05
          %v3693 = vadd.f32 %v3685, 1e-05
          %v3694 = vadd.f32 %v3686, 1e-05
          %v3695 = vadd.f32 %v3687, 1e-05
          %v3696 = vadd.f32 %v3688, 1e-05
          %v3697 = vrsqrt.pop %v3689
          %v3698 = vrsqrt.pop %v3690
          %v3699 = vrsqrt.pop %v3691
          %v3700 = vrsqrt.pop %v3692
          %v3701 = vrsqrt.pop %v3693
          %v3702 = vrsqrt.pop %v3694
          %v3703 = vrsqrt.pop %v3695
          %v3704 = vrsqrt.pop %v3696
          %v3705 = vmul.f32 %v3641, %v3697
          %v3706 = vmul.f32 %v3642, %v3698
          %v3707 = vmul.f32 %v3643, %v3699
          %v3708 = vmul.f32 %v3644, %v3700
          %v3709 = vmul.f32 %v3645, %v3701
          %v3710 = vmul.f32 %v3646, %v3702
          %v3711 = vmul.f32 %v3647, %v3703
          %v3712 = vmul.f32 %v3648, %v3704
          %v3713 = vlaneseq
          %v3714 = vshrl.u32 %v3713, 7
          %v3715 = vsub.s32 0, %v3714
          %v3716 = vrot.slane %v3608, %v3715
          %v3717 = vmul.f32 %v3705, %v3716
          %v3718 = vmul.f32 %v3706, %v3716
          %v3719 = vmul.f32 %v3707, %v3716
          %v3720 = vmul.f32 %v3708, %v3716
          %v3721 = vmul.f32 %v3709, %v3716
          %v3722 = vmul.f32 %v3710, %v3716
          %v3723 = vmul.f32 %v3711, %v3716
          %v3724 = vmul.f32 %v3712, %v3716
          %v3725 = vlaneseq
          %v3726 = vshrl.u32 %v3725, 7
          %v3727 = vsub.s32 1, %v3726
          %v3728 = vrot.slane %v3608, %v3727
          %v3729 = vadd.f32 %v3717, %v3728
          %v3730 = vadd.f32 %v3718, %v3728
          %v3731 = vadd.f32 %v3719, %v3728
          %v3732 = vadd.f32 %v3720, %v3728
          %v3733 = vadd.f32 %v3721, %v3728
          %v3734 = vadd.f32 %v3722, %v3728
          %v3735 = vadd.f32 %v3723, %v3728
          %v3736 = vadd.f32 %v3724, %v3728
          %v3737 = vpack.c.bf16 %v3730, %v3729
          %v3738 = vpack.c.bf16 %v3732, %v3731
          %v3739 = vpack.c.bf16 %v3734, %v3733
          %v3740 = vpack.c.bf16 %v3736, %v3735
          %v3741 = vld [vmem:[%s9] sm:$0xf]
          %v3742 = vld [vmem:[%s9 + $0x4] sm:$0xf]
          %v3743 = vld [vmem:[%s9 + $0x8] sm:$0xf]
          %v3744 = vld [vmem:[%s9 + $0xc] sm:$0xf]
          %v3745 = vld [vmem:[%s9 + $0x10] sm:$0xf]
          %v3746 = vld [vmem:[%s9 + $0x14] sm:$0xf]
          %v3747 = vld [vmem:[%s9 + $0x18] sm:$0xf]
          %v3748 = vld [vmem:[%s9 + $0x1c] sm:$0xf]
          %v3749 = vld [vmem:[%s10] sm:$0x1]
          %v3751 = vlaneseq
          %v3752 = vshrl.u32 %v3751, 7
          %v3753 = vsub.s32 0, %v3752
          %v3754 = vrot.slane %v3749, %v3753
          %v3764 = vunpack.c.l.b16 %v3741
          %v3765 = vunpack.c.l.b16 %v3742
          %v3766 = vunpack.c.l.b16 %v3743
          %v3767 = vunpack.c.l.b16 %v3744
          %v3768 = vunpack.c.l.b16 %v3745
          %v3769 = vunpack.c.l.b16 %v3746
          %v3770 = vunpack.c.l.b16 %v3747
          %v3771 = vunpack.c.l.b16 %v3748
          %v3772 = vpack.c.b16 %v3765, %v3764
          %v3773 = vpack.c.b16 %v3767, %v3766
          %v3774 = vpack.c.b16 %v3769, %v3768
          %v3775 = vpack.c.b16 %v3771, %v3770
          %v3781 = vsel %vm670, %v3737, 0
          %v3784 = vsel %vm670, %v3738, 0
          %v3787 = vsel %vm670, %v3739, 0
          %v3790 = vsel %vm670, %v3740, 0
          %3792 = vmatprep.subr.bf16.mxu0 0
          %3793 = vmatpush1.bf16.msra.mxu0 %v3772
          %3794 = vmatprep.subr.bf16.mxu0 0
          %3795 = vmatpush1.bf16.msra.mxu0 %v3773
          %3796 = vmatprep.subr.bf16.mxu0 0
          %3797 = vmatpush1.bf16.msra.mxu0 %v3774
          %3798 = vmatprep.subr.bf16.mxu0 0
          %3799 = vmatpush1.bf16.msra.mxu0 %v3775
          %3800 = vmatprep.subr.bf16.mxu0 0
          %3801 = vmatpush1.bf16.msra.mxu0 0
          %3802 = vmatprep.subr.bf16.mxu0 0
          %3803 = vmatpush1.bf16.msra.mxu0 0
          %3804 = vmatprep.subr.bf16.mxu0 0
          %3805 = vmatpush1.bf16.msra.mxu0 0
          %3806 = vmatprep.subr.bf16.mxu0 0
          %3807 = vmatpush1.bf16.msra.mxu0 0
          %3808 = vmatprep.subr.bf16.mxu0 0
          %3809 = vmatpush1.bf16.msra.mxu0 0
          %3810 = vmatprep.subr.bf16.mxu0 0
          %3811 = vmatpush1.bf16.msra.mxu0 0
          %3812 = vmatprep.subr.bf16.mxu0 0
          %3813 = vmatpush1.bf16.msra.mxu0 0
          %3814 = vmatprep.subr.bf16.mxu0 0
          %3815 = vmatpush1.bf16.msra.mxu0 0
          %3816 = vmatprep.subr.bf16.mxu0 0
          %3817 = vmatpush1.bf16.msra.mxu0 0
          %3818 = vmatprep.subr.bf16.mxu0 0
          %3819 = vmatpush1.bf16.msra.mxu0 0
          %3820 = vmatprep.subr.bf16.mxu0 0
          %3821 = vmatpush1.bf16.msra.mxu0 0
          %3822 = vmatprep.subr.bf16.mxu0 0
          %3823 = vmatpush1.bf16.msra.mxu0 0
          %3824 = vmatprep.mubr.bf16.mxu0 0
          %3825 = vmatmul.mubr.bf16.gmra.mrb[0].mxu0 %v3781
          %v3826 = vpop.f32.mrb[0].mxu0
          %v3827 = vadd.f32 %v3754, %v3826
          %v3828 = vpop.f32.mrb[0].mxu0
          %v3829 = vpop.f32.mrb[0].mxu0
          %v3830 = vadd.f32 %v3754, %v3829
          %v3831 = vpop.f32.mrb[0].mxu0
          %3832 = vmatprep.mubr.bf16.mxu0 0
          %3833 = vmatmul.mubr.bf16.gmra.mrb[0].mxu0 %v3784
          %v3834 = vpop.f32.mrb[0].mxu0
          %v3835 = vadd.f32 %v3754, %v3834
          %v3836 = vpop.f32.mrb[0].mxu0
          %v3837 = vpop.f32.mrb[0].mxu0
          %v3838 = vadd.f32 %v3754, %v3837
          %v3839 = vpop.f32.mrb[0].mxu0
          %3840 = vmatprep.mubr.bf16.mxu0 0
          %3841 = vmatmul.mubr.bf16.gmra.mrb[0].mxu0 %v3787
          %v3842 = vpop.f32.mrb[0].mxu0
          %v3843 = vadd.f32 %v3754, %v3842
          %v3844 = vpop.f32.mrb[0].mxu0
          %v3845 = vpop.f32.mrb[0].mxu0
          %v3846 = vadd.f32 %v3754, %v3845
          %v3847 = vpop.f32.mrb[0].mxu0
          %3848 = vmatprep.mubr.bf16.mxu0 0
          %3849 = vmatmul.mubr.bf16.gmra.mrb[0].mxu0 %v3790
          %v3850 = vpop.f32.mrb[0].mxu0
          %v3851 = vadd.f32 %v3754, %v3850
          %v3852 = vpop.f32.mrb[0].mxu0
          %v3853 = vpop.f32.mrb[0].mxu0
          %v3854 = vadd.f32 %v3754, %v3853
          %v3855 = vpop.f32.mrb[0].mxu0
          %3856 = vdwg.mxu0
          %3857 = vst [vmem:[%s543] sm:$0xff] %v3827
          %3858 = vst [vmem:[%s543 + $0x8] sm:$0xff] %v3830
          %3859 = vst [vmem:[%s543 + $0x10] sm:$0xff] %v3835
          %3860 = vst [vmem:[%s543 + $0x18] sm:$0xff] %v3838
          %3861 = vst [vmem:[%s543 + $0x20] sm:$0xff] %v3843
          %3862 = vst [vmem:[%s543 + $0x28] sm:$0xff] %v3846
          %3863 = vst [vmem:[%s543 + $0x30] sm:$0xff] %v3851
          %3864 = vst [vmem:[%s543 + $0x38] sm:$0xff] %v3854
        $region80: #{tpu_custom_call.1} parent=63 // pred_fallthru
          _
        %s3865 = sand.u32 %s322, 1
        %s3866 = scalar_lea.sflag [#allocation6], %s3865
        %s3867 = sand.u32 %s322, 1
        %s3868 = smul.addr %s3867, 64
        %s3869 = scalar_lea.vmem [#allocation9], %s3868
        // Predicated region
        $region81: #{tpu_custom_call.1} parent=63 // pred_check
          %p3870 = pneg %p332
        $region82: #{tpu_custom_call.1} parent=63 // pred_check_branch
          %3872 = sbr.rel (%p3870) target = $region84
        $region83: #{tpu_custom_call.1} parent=63 // pred_region
          %s3873 = smul.u32 4, %s35
          %s3875 = ssub.s32 1024, 1024
          %3876 = vsyncadd %s3866, %s3875
          %s3877 = smul.addr %s3873, 2
          %s3878 = smul.addr %s3877, 128
          %s3879 = scalar_lea.hbm %s11, %s3878
          %s3880 = sshll.u32 %s3869, 4
          %s3881 = int_to_ptr.vmem [resolvable:$true] %s3880
          %3886 = dma.vmem_to_hbm [thread:$0]  %s3881, 1024, %s3879, %s3866, 128, 128, 8
        $region84: #{tpu_custom_call.1} parent=63 // pred_fallthru
          _
      $region64: #{tpu_custom_call.1} parent=5 // pred_fallthru
        _
      %p3887 = scmp.le.s32.totalorder 2, %s26
      // Predicated region
      $region85: #{tpu_custom_call.1} parent=5 // pred_check
        %p3888 = pneg %p3887
      $region86: #{tpu_custom_call.1} parent=5 // pred_check_branch
        %3890 = sbr.rel (%p3888) target = $region88
      $region87: #{tpu_custom_call.1} parent=5 // pred_region
        %s3891 = ssub.s32 %s26, 2
        // Predicated region
        $region89: #{tpu_custom_call.1} parent=87 // pred_check
          %p3892 = pneg %p338
        $region90: #{tpu_custom_call.1} parent=87 // pred_check_branch
          %3894 = sbr.rel (%p3892) target = $region92
        $region91: #{tpu_custom_call.1} parent=87 // pred_region
          %s3895 = sand.u32 %s323, 1
          %s3896 = scalar_lea.sflag [#allocation6], %s3895
          %s3897 = sand.u32 %s323, 1
          %s3898 = smul.addr %s3897, 64
          %s3899 = scalar_lea.vmem [#allocation9], %s3898
          %3900 = dma.done %s3896, 1024
        $region92: #{tpu_custom_call.1} parent=87 // pred_fallthru
          _
      $region88: #{tpu_custom_call.1} parent=5 // pred_fallthru
        _
    $region6: #{tpu_custom_call.1} parent=1 // loop_footer
      %s30 = sadd.s32 1, %s26
    $region7: #{tpu_custom_call.1} parent=1 // loop_footer_branch
      %25 = sbr.rel target = $region3
    $region8: #{tpu_custom_call.1} parent=1 // loop_exit
      _
    %3901 = vsyncpa [#allocation5], 1
    %s3902 = scalar_lea.sflag [#allocation5], 1
    %3903 = vsyncpa %s3902, 1
    %3904 = vsyncpa [#allocation8], 1
    %s3905 = scalar_lea.sflag [#allocation8], 1
    %3906 = vsyncpa %s3905, 1
    %3907 = vsyncpa [#allocation6], 1
    %s3908 = scalar_lea.sflag [#allocation6], 1
    %3909 = vsyncpa %s3908, 1

</llo_original>
